<compile_context>
chip_gen: v7x
topology: tpu7x:2x2x1
jax: 0.10.0
libtpu: 0.0.40
codegen_flags: <defaults>
</compile_context>

<pallas_src>
import functools

import jax
import jax.numpy as jnp
from jax import lax
from jax.experimental import pallas as pl
from jax.experimental.pallas import tpu as pltpu


def _gcn_kernel(seqs_ref, tm_ref, amask_ref, wcat_ref, bcat_ref,
                gamma_ref, beta_ref, out_ref, tio_ref,
                *, head_num, K, eps_div=1e-6, eps_ln=1e-8):
    f32, bf16 = jnp.float32, jnp.bfloat16
    L = seqs_ref.shape[1]
    D = seqs_ref.shape[2]
    hs = D // head_num

    x_b = seqs_ref[0].astype(bf16)                      # (L, D)
    amask = amask_ref[...] > 0.5                        # (L, L), True => masked

    dn_t = (((1,), (1,)), ((), ()))                     # x @ w.T

    # One fused (L, D) @ (D, 3D) MXU matmul for conv1 / conv2 / W (full column
    # fill on the 256-wide MXU instead of three hs/D-wide pushes).
    proj = lax.dot_general(x_b, wcat_ref[...], dn_t,
                           preferred_element_type=f32) + bcat_ref[...]  # (L, 3D)

    col_i = lax.broadcasted_iota(jnp.int32, (L, L), 1)

    out_heads = []
    tio_heads = []
    for h in range(head_num):                           # static, head_num small
        a_h = proj[:, h * hs:(h + 1) * hs]              # (L, hs) f32
        b_h = proj[:, D + h * hs:D + (h + 1) * hs]      # (L, hs) f32
        sv_h = proj[:, 2 * D + h * hs:2 * D + (h + 1) * hs]

        # This head's slice of the full-D resident time block (static lane
        # slice; no wrapper re-layout, no extra DMA per head).
        T_hb = tm_ref[0, :, :, pl.ds(h * hs, hs)]       # (L, L, hs) bf16
        T_hf = T_hb.astype(f32)

        # numerator: a_i . (b_j + T_ij) = a @ b.T + sum_d T * a
        att = lax.dot_general(a_h.astype(bf16), b_h.astype(bf16), dn_t,
                              preferred_element_type=f32)              # (L, L)
        tia = jnp.sum(T_hf * a_h[:, None, :], axis=-1)                 # (L, L)

        # ||b_j + T_ij|| directly (single fused add/square/reduce pass over T;
        # no separate ||b||^2 / T.b / T.T passes, no cancellation).
        bt = T_hf + b_h[None, :, :]
        bt_norm = jnp.sqrt(jnp.sum(bt * bt, axis=-1))                  # (L, L)
        a_norm = jnp.sqrt(jnp.sum(a_h * a_h, axis=-1, keepdims=True))  # (L, 1)

        raw = (att + tia) / (a_norm * bt_norm + eps_div)   # exact f32 divide
        raw = jnp.where(amask, 0.0, raw)

        # Iterative top-K per row (lowest-index tie-break) as a fori_loop so
        # the (L, L) live ranges are bounded; unrolled for small K.
        def topk_body(_, carry):
            work, rm = carry
            mx = jnp.max(work, axis=-1, keepdims=True)
            idx = jnp.min(jnp.where(work == mx, col_i, L),
                          axis=-1, keepdims=True)
            sel = col_i == idx
            return (jnp.where(sel, -jnp.inf, work),
                    jnp.where(sel, 1.0, rm))

        _, rm = lax.fori_loop(0, K, topk_body,
                              (raw, jnp.zeros((L, L), f32)),
                              unroll=K <= 8)

        # Symmetrize the selection mask: mask = M | M.T (XLU transpose; the
        # MXU identity-matmul trick is not needed).
        mask_sym = jnp.maximum(rm, jnp.transpose(rm))
        # masked entries of raw are already exactly zero -> no second masking.
        sparse = raw * mask_sym
        sp_b = sparse.astype(bf16)

        # outputs_h = sparse @ W(seqs)_h
        out_heads.append(
            lax.dot_general(sp_b, sv_h.astype(bf16), (((1,), (0,)), ((), ())),
                            preferred_element_type=f32))               # (L, hs)

        # tio[i, d] = sum_j sparse[i, j] * T[i, j, d] as row-batched
        # (1 x L) @ (L x hs) matmuls.  The MXU has plenty of slack here (the
        # VPU passes over the (L, L, hs) tensor dominate), so this avoids any
        # (L, L, hs) broadcast temp / sublane reduction.
        tio3 = lax.dot_general(sp_b.reshape(L, 1, L), T_hb,
                               (((2,), (1,)), ((0,), (0,))),
                               preferred_element_type=f32)             # (L,1,hs)
        tio_heads.append(tio3[:, 0, :])

    out_full = jnp.concatenate(out_heads, axis=-1)                     # (L, D)
    tio_full = jnp.concatenate(tio_heads, axis=-1)                     # (L, D)

    # LayerNorm(eps=1e-8) over the lane-dense (L, D) slab, single dense store.
    mu = jnp.mean(out_full, axis=-1, keepdims=True)
    d = out_full - mu
    var = jnp.mean(d * d, axis=-1, keepdims=True)
    out_ref[0] = d * lax.rsqrt(var + eps_ln) * gamma_ref[...] + beta_ref[...]
    tio_ref[0] = tio_full


def gcn_forward(seqs, attention_mask, time_matrices, params, *, head_num, K):
    B, L, D = seqs.shape
    assert D % head_num == 0
    w1, b1, w2, b2, ww, bw, gamma, beta = params
    f32, bf16 = jnp.float32, jnp.bfloat16

    seqs_f = seqs.astype(f32)
    amask_f = attention_mask.astype(f32)
    # The time tensor keeps its ORIGINAL (B, L, L, D) layout (no head-split
    # transpose / HBM copy) and goes to the kernel in bf16: halves the
    # dominant HBM DMA and VMEM footprint; in a real model this cast fuses
    # into the upstream producer.
    tm_bf = time_matrices.astype(bf16)

    # Fused projection weights: [conv1; conv2; W] -> one (3D, D) bf16 weight.
    wcat = jnp.concatenate([w1, w2, ww], axis=0).astype(bf16)          # (3D, D)
    bcat = jnp.concatenate([b1, b2, bw], axis=0).astype(f32).reshape(1, 3 * D)
    gamma2 = gamma.astype(f32).reshape(1, D)
    beta2 = beta.astype(f32).reshape(1, D)

    kernel = functools.partial(_gcn_kernel, head_num=head_num, K=K)

    # VMEM budget: double-buffered bf16 time block dominates; clamp to 48 MiB
    # so the same setting is safe on v7x (64 MiB physical).  Raise towards
    # 64-100 MiB on v5e/v6e if much larger L/D tiles are used.
    t_block = 2 * (L * L * D * 2)                       # 2-deep bf16 T buffers
    misc = 6 * (L * D * 4) + 10 * (L * L * 4) + (4 * D * D + 8 * D) * 4
    vmem_limit = int(min(48 << 20, max(32 << 20, 2 * (t_block + misc))))

    out_ln, tio = pl.pallas_call(
        kernel,
        out_shape=(jax.ShapeDtypeStruct((B, L, D), f32),
                   jax.ShapeDtypeStruct((B, L, D), f32)),
        grid=(B,),
        in_specs=[
            pl.BlockSpec((1, L, D), lambda b: (b, 0, 0)),              # seqs
            pl.BlockSpec((1, L, L, D), lambda b: (b, 0, 0, 0)),        # T (bf16)
            pl.BlockSpec((L, L), lambda b: (0, 0)),                    # attn mask
            pl.BlockSpec((3 * D, D), lambda b: (0, 0)),                # fused W
            pl.BlockSpec((1, 3 * D), lambda b: (0, 0)),                # fused bias
            pl.BlockSpec((1, D), lambda b: (0, 0)),                    # LN gamma
            pl.BlockSpec((1, D), lambda b: (0, 0)),                    # LN beta
        ],
        out_specs=(pl.BlockSpec((1, L, D), lambda b: (b, 0, 0)),       # LN(out)
                   pl.BlockSpec((1, L, D), lambda b: (b, 0, 0))),      # tio
        compiler_params=pltpu.CompilerParams(
            dimension_semantics=("parallel",),       # batch -> megacore / 2 TCs
            vmem_limit_bytes=vmem_limit),
    )(seqs_f, tm_bf, amask_f, wcat, bcat, gamma2, beta2)
    return out_ln, tio


def gcn_reference(seqs, attention_mask, time_matrices, params, *, head_num, K):
    """Pure-JAX mirror of the PyTorch forward, with the same bf16-input /
    f32-accumulate matmul precision and bf16 time tensor as the kernel, and the
    same lowest-index top-K tie-break."""
    B, L, D = seqs.shape
    w1, b1, w2, b2, ww, bw, gamma, beta = params
    f32, bf16 = jnp.float32, jnp.bfloat16
    c = lambda x: x.astype(bf16)
    mm = functools.partial(jnp.einsum, preferred_element_type=f32)

    a_ = mm('bld,od->blo', c(seqs), c(w1)) + b1
    b_ = mm('bld,od->blo', c(seqs), c(w2)) + b2
    s_ = mm('bld,od->blo', c(seqs), c(ww)) + bw
    headify = lambda x: jnp.concatenate(jnp.split(x, head_num, axis=2), axis=0)
    a, b, sv = headify(a_), headify(b_), headify(s_)
    # Time tensor is consumed through a bf16 cast, as in the kernel's layout.
    T_b = jnp.concatenate(jnp.split(c(time_matrices), head_num, axis=3), axis=0)
    T = T_b.astype(f32)

    att = mm('nid,njd->nij', c(a), c(b))
    a_2 = jnp.sqrt(jnp.sum(a * a, axis=-1))[..., None]
    b_t = b[:, None, :, :] + T
    b_t_2 = jnp.sqrt(jnp.sum(b_t * b_t, axis=-1))
    att = att + jnp.sum(T * a[:, :, None, :], axis=-1)
    raw = att / (a_2 * b_t_2 + 1e-6)
    amask = jnp.broadcast_to(attention_mask[None], raw.shape)
    raw = jnp.where(amask, 0.0, raw)

    work = raw
    col = jnp.arange(L)[None, None, :]
    rowm = jnp.zeros_like(raw)
    for _ in range(K):
        mx = jnp.max(work, axis=-1, keepdims=True)
        sel_idx = jnp.min(jnp.where(work == mx, col, L), axis=-1, keepdims=True)
        sel = col == sel_idx
        rowm = jnp.where(sel, 1.0, rowm)
        work = jnp.where(sel, -jnp.inf, work)
    mask = jnp.maximum(rowm, jnp.swapaxes(rowm, 1, 2))
    sparse = jnp.where(amask, 0.0, raw * mask)

    out_h = mm('nij,njd->nid', c(sparse), c(sv))
    tio_h = mm('nij,nijd->nid', c(sparse), T_b)
    unheadify = lambda x: jnp.concatenate(jnp.split(x, head_num, axis=0), axis=2)
    out, tio = unheadify(out_h), unheadify(tio_h)
    mu = jnp.mean(out, axis=-1, keepdims=True)
    var = jnp.mean((out - mu) ** 2, axis=-1, keepdims=True)
    ln = (out - mu) / jnp.sqrt(var + 1e-8) * gamma + beta
    return ln, tio


if __name__ == "__main__":
    B, L, D, H, K = 2, 16, 32, 2, 3     # batch, seq-len, dims, head_num, top-k
    key = jax.random.PRNGKey(0)
    ks = jax.random.split(key, 8)

    seqs = jax.random.normal(ks[0], (B, L, D), jnp.float32)
    time_matrices = 0.5 * jax.random.normal(ks[1], (B, L, L, D), jnp.float32)
    idx = jnp.arange(L)
    attention_mask = idx[None, :] > idx[:, None]     # bool (L, L), True => zeroed

    # Deterministic parameter init (shapes from the module __init__).
    # conv1: xavier_uniform with relu gain; the original code re-inits
    # conv1.weight and uses the same tensor for conv2.weight, so w2 == w1.
    bound1 = float(jnp.sqrt(2.0) * jnp.sqrt(6.0 / (D + D)))
    w1 = jax.random.uniform(ks[2], (D, D), jnp.float32, -bound1, bound1)
    w2 = w1
    bb = 1.0 / float(jnp.sqrt(D))
    b1 = jax.random.uniform(ks[3], (D,), jnp.float32, -bb, bb)
    b2 = jax.random.uniform(ks[4], (D,), jnp.float32, -bb, bb)
    ww = jax.random.uniform(ks[5], (D, D), jnp.float32, -bb, bb)
    bw = jax.random.uniform(ks[6], (D,), jnp.float32, -bb, bb)
    gamma = jnp.ones((D,), jnp.float32)              # LayerNorm default init
    beta = jnp.zeros((D,), jnp.float32)
    # NOTE: time_weight / time_weight2 Linear layers are never used in forward().
    params = (w1, b1, w2, b2, ww, bw, gamma, beta)

    out_ln, tio = gcn_forward(seqs, attention_mask, time_matrices, params,
                              head_num=H, K=K)
    jax.block_until_ready((out_ln, tio))

    ref_ln, ref_tio = gcn_reference(seqs, attention_mask, time_matrices, params,
                                    head_num=H, K=K)
    # Tolerance covers bf16-input matmul rounding differences between the
    # Mosaic kernel and the XLA reference; structural errors are O(0.1 - 1).
    assert jnp.allclose(out_ln, ref_ln, atol=3e-3, rtol=3e-3), \
        float(jnp.max(jnp.abs(out_ln - ref_ln)))
    assert jnp.allclose(tio, ref_tio, atol=3e-3, rtol=3e-3), \
        float(jnp.max(jnp.abs(tio - ref_tio)))
    print("KERNEL_OK")
</pallas_src>

<mosaic_0001>
module attributes {stable_mosaic.version = 11 : i64} {
  func.func @_gcn_kernel(%arg0: i32, %arg1: memref<1x16x32xf32, #tpu.memory_space<vmem>>, %arg2: memref<1x16x16x32xbf16, #tpu.memory_space<vmem>>, %arg3: memref<16x16xf32, #tpu.memory_space<vmem>>, %arg4: memref<96x32xbf16, #tpu.memory_space<vmem>>, %arg5: memref<1x96xf32, #tpu.memory_space<vmem>>, %arg6: memref<1x32xf32, #tpu.memory_space<vmem>>, %arg7: memref<1x32xf32, #tpu.memory_space<vmem>>, %arg8: memref<1x16x32xf32, #tpu.memory_space<vmem>>, %arg9: memref<1x16x32xf32, #tpu.memory_space<vmem>>) attributes {dimension_semantics = [#tpu.dimension_semantics<parallel>], iteration_bounds = array<i64: 2>, scalar_prefetch = 0 : i64, scratch_operands = 0 : i64, tpu.core_type = #tpu.core_type<tc>, window_params = [{transform_indices = @transform_0, window_bounds = array<i64: 1, 16, 32>}, {transform_indices = @transform_1, window_bounds = array<i64: 1, 16, 16, 32>}, {pipeline_mode = #tpu.pipeline_mode<synchronous>, transform_indices = @transform_2, window_bounds = array<i64: 16, 16>}, {pipeline_mode = #tpu.pipeline_mode<synchronous>, transform_indices = @transform_3, window_bounds = array<i64: 96, 32>}, {pipeline_mode = #tpu.pipeline_mode<synchronous>, transform_indices = @transform_4, window_bounds = array<i64: 1, 96>}, {pipeline_mode = #tpu.pipeline_mode<synchronous>, transform_indices = @transform_5, window_bounds = array<i64: 1, 32>}, {pipeline_mode = #tpu.pipeline_mode<synchronous>, transform_indices = @transform_6, window_bounds = array<i64: 1, 32>}, {transform_indices = @transform_7, window_bounds = array<i64: 1, 16, 32>}, {transform_indices = @transform_8, window_bounds = array<i64: 1, 16, 32>}]} {
    %c0 = arith.constant 0 : index
    %c0_0 = arith.constant 0 : index
    %c0_1 = arith.constant 0 : index
    %0 = vector.load %arg1[%c0, %c0_0, %c0_1] : memref<1x16x32xf32, #tpu.memory_space<vmem>>, vector<1x16x32xf32>
    %1 = vector.shape_cast %0 : vector<1x16x32xf32> to vector<16x32xf32>
    %2 = arith.truncf %1 : vector<16x32xf32> to vector<16x32xbf16>
    %c0_2 = arith.constant 0 : index
    %c0_3 = arith.constant 0 : index
    %3 = vector.load %arg3[%c0_2, %c0_3] : memref<16x16xf32, #tpu.memory_space<vmem>>, vector<16x16xf32>
    %cst = arith.constant 5.000000e-01 : f32
    %4 = vector.broadcast %cst : f32 to vector<16x16xf32>
    %5 = arith.cmpf ogt, %3, %4 : vector<16x16xf32>
    %c0_4 = arith.constant 0 : index
    %c0_5 = arith.constant 0 : index
    %6 = vector.load %arg4[%c0_4, %c0_5] : memref<96x32xbf16, #tpu.memory_space<vmem>>, vector<96x32xbf16>
    %cst_6 = arith.constant dense<0.000000e+00> : vector<16x96xf32>
    %7 = tpu.matmul %2, %6, %cst_6 {dimension_numbers = #tpu.dot_dimension_numbers<[1], [1], [0], [0], [0, 0, 1, 0], [], []>} : vector<16x32xbf16>, vector<96x32xbf16>, vector<16x96xf32> -> vector<16x96xf32>
    %c0_7 = arith.constant 0 : index
    %c0_8 = arith.constant 0 : index
    %8 = vector.load %arg5[%c0_7, %c0_8] : memref<1x96xf32, #tpu.memory_space<vmem>>, vector<1x96xf32>
    %9 = vector.broadcast %8 : vector<1x96xf32> to vector<16x96xf32>
    %10 = arith.addf %7, %9 : vector<16x96xf32>
    %11 = tpu.iota {dimensions = array<i32: 1>} : vector<16x16xi32>
    %12 = vector.extract_strided_slice %10 {offsets = [0, 0], sizes = [16, 16], strides = [1, 1]} : vector<16x96xf32> to vector<16x16xf32>
    %13 = vector.extract_strided_slice %10 {offsets = [0, 32], sizes = [16, 16], strides = [1, 1]} : vector<16x96xf32> to vector<16x16xf32>
    %14 = vector.extract_strided_slice %10 {offsets = [0, 64], sizes = [16, 16], strides = [1, 1]} : vector<16x96xf32> to vector<16x16xf32>
    %c0_9 = arith.constant 0 : index
    %c0_10 = arith.constant 0 : index
    %c0_11 = arith.constant 0 : index
    %c0_12 = arith.constant 0 : index
    %15 = vector.load %arg2[%c0_9, %c0_10, %c0_11, %c0_12] : memref<1x16x16x32xbf16, #tpu.memory_space<vmem>>, vector<1x16x16x16xbf16>
    %16 = vector.shape_cast %15 : vector<1x16x16x16xbf16> to vector<16x16x16xbf16>
    %17 = arith.extf %16 : vector<16x16x16xbf16> to vector<16x16x16xf32>
    %18 = arith.truncf %12 : vector<16x16xf32> to vector<16x16xbf16>
    %19 = arith.truncf %13 : vector<16x16xf32> to vector<16x16xbf16>
    %cst_13 = arith.constant dense<0.000000e+00> : vector<16x16xf32>
    %20 = tpu.matmul %18, %19, %cst_13 {dimension_numbers = #tpu.dot_dimension_numbers<[1], [1], [0], [0], [0, 0, 1, 0], [], []>} : vector<16x16xbf16>, vector<16x16xbf16>, vector<16x16xf32> -> vector<16x16xf32>
    %21 = vector.shape_cast %12 : vector<16x16xf32> to vector<16x1x16xf32>
    %22 = vector.broadcast %21 : vector<16x1x16xf32> to vector<16x16x16xf32>
    %23 = arith.mulf %17, %22 : vector<16x16x16xf32>
    %cst_14 = arith.constant dense<0.000000e+00> : vector<16x16xf32>
    %24 = vector.multi_reduction <add>, %23, %cst_14 [2] : vector<16x16x16xf32> to vector<16x16xf32>
    %25 = vector.shape_cast %13 : vector<16x16xf32> to vector<1x16x16xf32>
    %26 = vector.broadcast %25 : vector<1x16x16xf32> to vector<16x16x16xf32>
    %27 = arith.addf %17, %26 : vector<16x16x16xf32>
    %28 = arith.mulf %27, %27 : vector<16x16x16xf32>
    %cst_15 = arith.constant dense<0.000000e+00> : vector<16x16xf32>
    %29 = vector.multi_reduction <add>, %28, %cst_15 [2] : vector<16x16x16xf32> to vector<16x16xf32>
    %30 = math.sqrt %29 : vector<16x16xf32>
    %31 = arith.mulf %12, %12 : vector<16x16xf32>
    %cst_16 = arith.constant dense<0.000000e+00> : vector<16xf32>
    %32 = vector.multi_reduction <add>, %31, %cst_16 [1] : vector<16x16xf32> to vector<16xf32>
    %33 = vector.shape_cast %32 : vector<16xf32> to vector<16x1xf32>
    %34 = math.sqrt %33 : vector<16x1xf32>
    %35 = arith.addf %20, %24 : vector<16x16xf32>
    %36 = vector.broadcast %34 : vector<16x1xf32> to vector<16x16xf32>
    %37 = arith.mulf %36, %30 : vector<16x16xf32>
    %cst_17 = arith.constant 9.99999997E-7 : f32
    %38 = vector.broadcast %cst_17 : f32 to vector<16x16xf32>
    %39 = arith.addf %37, %38 : vector<16x16xf32>
    %40 = arith.divf %35, %39 : vector<16x16xf32>
    %cst_18 = arith.constant 0.000000e+00 : f32
    %41 = vector.broadcast %cst_18 : f32 to vector<16x16xf32>
    %42 = arith.select %5, %41, %40 : vector<16x16xi1>, vector<16x16xf32>
    %cst_19 = arith.constant 0.000000e+00 : f32
    %43 = vector.broadcast %cst_19 : f32 to vector<16x16xf32>
    %c0_i32 = arith.constant 0 : i32
    %cst_20 = arith.constant dense<0xFF800000> : vector<16xf32>
    %44 = vector.multi_reduction <maximumf>, %42, %cst_20 [1] : vector<16x16xf32> to vector<16xf32>
    %45 = vector.shape_cast %44 : vector<16xf32> to vector<16x1xf32>
    %46 = vector.broadcast %45 : vector<16x1xf32> to vector<16x16xf32>
    %47 = arith.cmpf oeq, %42, %46 : vector<16x16xf32>
    %c16_i32 = arith.constant 16 : i32
    %48 = vector.broadcast %c16_i32 : i32 to vector<16x16xi32>
    %49 = arith.select %47, %11, %48 : vector<16x16xi1>, vector<16x16xi32>
    %cst_21 = arith.constant dense<2147483647> : vector<16xi32>
    %50 = vector.multi_reduction <minsi>, %49, %cst_21 [1] : vector<16x16xi32> to vector<16xi32>
    %51 = vector.shape_cast %50 : vector<16xi32> to vector<16x1xi32>
    %52 = vector.broadcast %51 : vector<16x1xi32> to vector<16x16xi32>
    %53 = arith.cmpi eq, %11, %52 : vector<16x16xi32>
    %cst_22 = arith.constant 0xFF800000 : f32
    %54 = vector.broadcast %cst_22 : f32 to vector<16x16xf32>
    %55 = arith.select %53, %54, %42 : vector<16x16xi1>, vector<16x16xf32>
    %cst_23 = arith.constant 1.000000e+00 : f32
    %56 = vector.broadcast %cst_23 : f32 to vector<16x16xf32>
    %57 = arith.select %53, %56, %43 : vector<16x16xi1>, vector<16x16xf32>
    %c1_i32 = arith.constant 1 : i32
    %cst_24 = arith.constant dense<0xFF800000> : vector<16xf32>
    %58 = vector.multi_reduction <maximumf>, %55, %cst_24 [1] : vector<16x16xf32> to vector<16xf32>
    %59 = vector.shape_cast %58 : vector<16xf32> to vector<16x1xf32>
    %60 = vector.broadcast %59 : vector<16x1xf32> to vector<16x16xf32>
    %61 = arith.cmpf oeq, %55, %60 : vector<16x16xf32>
    %c16_i32_25 = arith.constant 16 : i32
    %62 = vector.broadcast %c16_i32_25 : i32 to vector<16x16xi32>
    %63 = arith.select %61, %11, %62 : vector<16x16xi1>, vector<16x16xi32>
    %cst_26 = arith.constant dense<2147483647> : vector<16xi32>
    %64 = vector.multi_reduction <minsi>, %63, %cst_26 [1] : vector<16x16xi32> to vector<16xi32>
    %65 = vector.shape_cast %64 : vector<16xi32> to vector<16x1xi32>
    %66 = vector.broadcast %65 : vector<16x1xi32> to vector<16x16xi32>
    %67 = arith.cmpi eq, %11, %66 : vector<16x16xi32>
    %cst_27 = arith.constant 0xFF800000 : f32
    %68 = vector.broadcast %cst_27 : f32 to vector<16x16xf32>
    %69 = arith.select %67, %68, %55 : vector<16x16xi1>, vector<16x16xf32>
    %cst_28 = arith.constant 1.000000e+00 : f32
    %70 = vector.broadcast %cst_28 : f32 to vector<16x16xf32>
    %71 = arith.select %67, %70, %57 : vector<16x16xi1>, vector<16x16xf32>
    %c2_i32 = arith.constant 2 : i32
    %cst_29 = arith.constant dense<0xFF800000> : vector<16xf32>
    %72 = vector.multi_reduction <maximumf>, %69, %cst_29 [1] : vector<16x16xf32> to vector<16xf32>
    %73 = vector.shape_cast %72 : vector<16xf32> to vector<16x1xf32>
    %74 = vector.broadcast %73 : vector<16x1xf32> to vector<16x16xf32>
    %75 = arith.cmpf oeq, %69, %74 : vector<16x16xf32>
    %c16_i32_30 = arith.constant 16 : i32
    %76 = vector.broadcast %c16_i32_30 : i32 to vector<16x16xi32>
    %77 = arith.select %75, %11, %76 : vector<16x16xi1>, vector<16x16xi32>
    %cst_31 = arith.constant dense<2147483647> : vector<16xi32>
    %78 = vector.multi_reduction <minsi>, %77, %cst_31 [1] : vector<16x16xi32> to vector<16xi32>
    %79 = vector.shape_cast %78 : vector<16xi32> to vector<16x1xi32>
    %80 = vector.broadcast %79 : vector<16x1xi32> to vector<16x16xi32>
    %81 = arith.cmpi eq, %11, %80 : vector<16x16xi32>
    %cst_32 = arith.constant 0xFF800000 : f32
    %82 = vector.broadcast %cst_32 : f32 to vector<16x16xf32>
    %83 = arith.select %81, %82, %69 : vector<16x16xi1>, vector<16x16xf32>
    %cst_33 = arith.constant 1.000000e+00 : f32
    %84 = vector.broadcast %cst_33 : f32 to vector<16x16xf32>
    %85 = arith.select %81, %84, %71 : vector<16x16xi1>, vector<16x16xf32>
    %86 = tpu.transpose %85, [1, 0] : vector<16x16xf32> -> vector<16x16xf32>
    %87 = arith.maximumf %85, %86 : vector<16x16xf32>
    %88 = arith.mulf %42, %87 : vector<16x16xf32>
    %89 = arith.truncf %88 : vector<16x16xf32> to vector<16x16xbf16>
    %90 = arith.truncf %14 : vector<16x16xf32> to vector<16x16xbf16>
    %cst_34 = arith.constant dense<0.000000e+00> : vector<16x16xf32>
    %91 = tpu.matmul %89, %90, %cst_34 {dimension_numbers = #tpu.dot_dimension_numbers<[1], [0], [0], [1], [0, 0, 1, 1], [], []>} : vector<16x16xbf16>, vector<16x16xbf16>, vector<16x16xf32> -> vector<16x16xf32>
    %92 = vector.shape_cast %89 : vector<16x16xbf16> to vector<16x1x16xbf16>
    %cst_35 = arith.constant dense<0.000000e+00> : vector<16x1x16xf32>
    %93 = tpu.matmul %92, %16, %cst_35 {dimension_numbers = #tpu.dot_dimension_numbers<[2], [1], [1], [2], [0, 0, 0, 1, 1, 2], [0], [0]>} : vector<16x1x16xbf16>, vector<16x16x16xbf16>, vector<16x1x16xf32> -> vector<16x1x16xf32>
    %94 = vector.shape_cast %93 : vector<16x1x16xf32> to vector<16x16xf32>
    %95 = vector.extract_strided_slice %10 {offsets = [0, 16], sizes = [16, 16], strides = [1, 1]} : vector<16x96xf32> to vector<16x16xf32>
    %96 = vector.extract_strided_slice %10 {offsets = [0, 48], sizes = [16, 16], strides = [1, 1]} : vector<16x96xf32> to vector<16x16xf32>
    %97 = vector.extract_strided_slice %10 {offsets = [0, 80], sizes = [16, 16], strides = [1, 1]} : vector<16x96xf32> to vector<16x16xf32>
    %c0_36 = arith.constant 0 : index
    %c0_37 = arith.constant 0 : index
    %c0_38 = arith.constant 0 : index
    %c16 = arith.constant 16 : index
    %98 = vector.load %arg2[%c0_36, %c0_37, %c0_38, %c16] : memref<1x16x16x32xbf16, #tpu.memory_space<vmem>>, vector<1x16x16x16xbf16>
    %99 = vector.shape_cast %98 : vector<1x16x16x16xbf16> to vector<16x16x16xbf16>
    %100 = arith.extf %99 : vector<16x16x16xbf16> to vector<16x16x16xf32>
    %101 = arith.truncf %95 : vector<16x16xf32> to vector<16x16xbf16>
    %102 = arith.truncf %96 : vector<16x16xf32> to vector<16x16xbf16>
    %cst_39 = arith.constant dense<0.000000e+00> : vector<16x16xf32>
    %103 = tpu.matmul %101, %102, %cst_39 {dimension_numbers = #tpu.dot_dimension_numbers<[1], [1], [0], [0], [0, 0, 1, 0], [], []>} : vector<16x16xbf16>, vector<16x16xbf16>, vector<16x16xf32> -> vector<16x16xf32>
    %104 = vector.shape_cast %95 : vector<16x16xf32> to vector<16x1x16xf32>
    %105 = vector.broadcast %104 : vector<16x1x16xf32> to vector<16x16x16xf32>
    %106 = arith.mulf %100, %105 : vector<16x16x16xf32>
    %cst_40 = arith.constant dense<0.000000e+00> : vector<16x16xf32>
    %107 = vector.multi_reduction <add>, %106, %cst_40 [2] : vector<16x16x16xf32> to vector<16x16xf32>
    %108 = vector.shape_cast %96 : vector<16x16xf32> to vector<1x16x16xf32>
    %109 = vector.broadcast %108 : vector<1x16x16xf32> to vector<16x16x16xf32>
    %110 = arith.addf %100, %109 : vector<16x16x16xf32>
    %111 = arith.mulf %110, %110 : vector<16x16x16xf32>
    %cst_41 = arith.constant dense<0.000000e+00> : vector<16x16xf32>
    %112 = vector.multi_reduction <add>, %111, %cst_41 [2] : vector<16x16x16xf32> to vector<16x16xf32>
    %113 = math.sqrt %112 : vector<16x16xf32>
    %114 = arith.mulf %95, %95 : vector<16x16xf32>
    %cst_42 = arith.constant dense<0.000000e+00> : vector<16xf32>
    %115 = vector.multi_reduction <add>, %114, %cst_42 [1] : vector<16x16xf32> to vector<16xf32>
    %116 = vector.shape_cast %115 : vector<16xf32> to vector<16x1xf32>
    %117 = math.sqrt %116 : vector<16x1xf32>
    %118 = arith.addf %103, %107 : vector<16x16xf32>
    %119 = vector.broadcast %117 : vector<16x1xf32> to vector<16x16xf32>
    %120 = arith.mulf %119, %113 : vector<16x16xf32>
    %cst_43 = arith.constant 9.99999997E-7 : f32
    %121 = vector.broadcast %cst_43 : f32 to vector<16x16xf32>
    %122 = arith.addf %120, %121 : vector<16x16xf32>
    %123 = arith.divf %118, %122 : vector<16x16xf32>
    %cst_44 = arith.constant 0.000000e+00 : f32
    %124 = vector.broadcast %cst_44 : f32 to vector<16x16xf32>
    %125 = arith.select %5, %124, %123 : vector<16x16xi1>, vector<16x16xf32>
    %cst_45 = arith.constant 0.000000e+00 : f32
    %126 = vector.broadcast %cst_45 : f32 to vector<16x16xf32>
    %c0_i32_46 = arith.constant 0 : i32
    %cst_47 = arith.constant dense<0xFF800000> : vector<16xf32>
    %127 = vector.multi_reduction <maximumf>, %125, %cst_47 [1] : vector<16x16xf32> to vector<16xf32>
    %128 = vector.shape_cast %127 : vector<16xf32> to vector<16x1xf32>
    %129 = vector.broadcast %128 : vector<16x1xf32> to vector<16x16xf32>
    %130 = arith.cmpf oeq, %125, %129 : vector<16x16xf32>
    %c16_i32_48 = arith.constant 16 : i32
    %131 = vector.broadcast %c16_i32_48 : i32 to vector<16x16xi32>
    %132 = arith.select %130, %11, %131 : vector<16x16xi1>, vector<16x16xi32>
    %cst_49 = arith.constant dense<2147483647> : vector<16xi32>
    %133 = vector.multi_reduction <minsi>, %132, %cst_49 [1] : vector<16x16xi32> to vector<16xi32>
    %134 = vector.shape_cast %133 : vector<16xi32> to vector<16x1xi32>
    %135 = vector.broadcast %134 : vector<16x1xi32> to vector<16x16xi32>
    %136 = arith.cmpi eq, %11, %135 : vector<16x16xi32>
    %cst_50 = arith.constant 0xFF800000 : f32
    %137 = vector.broadcast %cst_50 : f32 to vector<16x16xf32>
    %138 = arith.select %136, %137, %125 : vector<16x16xi1>, vector<16x16xf32>
    %cst_51 = arith.constant 1.000000e+00 : f32
    %139 = vector.broadcast %cst_51 : f32 to vector<16x16xf32>
    %140 = arith.select %136, %139, %126 : vector<16x16xi1>, vector<16x16xf32>
    %c1_i32_52 = arith.constant 1 : i32
    %cst_53 = arith.constant dense<0xFF800000> : vector<16xf32>
    %141 = vector.multi_reduction <maximumf>, %138, %cst_53 [1] : vector<16x16xf32> to vector<16xf32>
    %142 = vector.shape_cast %141 : vector<16xf32> to vector<16x1xf32>
    %143 = vector.broadcast %142 : vector<16x1xf32> to vector<16x16xf32>
    %144 = arith.cmpf oeq, %138, %143 : vector<16x16xf32>
    %c16_i32_54 = arith.constant 16 : i32
    %145 = vector.broadcast %c16_i32_54 : i32 to vector<16x16xi32>
    %146 = arith.select %144, %11, %145 : vector<16x16xi1>, vector<16x16xi32>
    %cst_55 = arith.constant dense<2147483647> : vector<16xi32>
    %147 = vector.multi_reduction <minsi>, %146, %cst_55 [1] : vector<16x16xi32> to vector<16xi32>
    %148 = vector.shape_cast %147 : vector<16xi32> to vector<16x1xi32>
    %149 = vector.broadcast %148 : vector<16x1xi32> to vector<16x16xi32>
    %150 = arith.cmpi eq, %11, %149 : vector<16x16xi32>
    %cst_56 = arith.constant 0xFF800000 : f32
    %151 = vector.broadcast %cst_56 : f32 to vector<16x16xf32>
    %152 = arith.select %150, %151, %138 : vector<16x16xi1>, vector<16x16xf32>
    %cst_57 = arith.constant 1.000000e+00 : f32
    %153 = vector.broadcast %cst_57 : f32 to vector<16x16xf32>
    %154 = arith.select %150, %153, %140 : vector<16x16xi1>, vector<16x16xf32>
    %c2_i32_58 = arith.constant 2 : i32
    %cst_59 = arith.constant dense<0xFF800000> : vector<16xf32>
    %155 = vector.multi_reduction <maximumf>, %152, %cst_59 [1] : vector<16x16xf32> to vector<16xf32>
    %156 = vector.shape_cast %155 : vector<16xf32> to vector<16x1xf32>
    %157 = vector.broadcast %156 : vector<16x1xf32> to vector<16x16xf32>
    %158 = arith.cmpf oeq, %152, %157 : vector<16x16xf32>
    %c16_i32_60 = arith.constant 16 : i32
    %159 = vector.broadcast %c16_i32_60 : i32 to vector<16x16xi32>
    %160 = arith.select %158, %11, %159 : vector<16x16xi1>, vector<16x16xi32>
    %cst_61 = arith.constant dense<2147483647> : vector<16xi32>
    %161 = vector.multi_reduction <minsi>, %160, %cst_61 [1] : vector<16x16xi32> to vector<16xi32>
    %162 = vector.shape_cast %161 : vector<16xi32> to vector<16x1xi32>
    %163 = vector.broadcast %162 : vector<16x1xi32> to vector<16x16xi32>
    %164 = arith.cmpi eq, %11, %163 : vector<16x16xi32>
    %cst_62 = arith.constant 0xFF800000 : f32
    %165 = vector.broadcast %cst_62 : f32 to vector<16x16xf32>
    %166 = arith.select %164, %165, %152 : vector<16x16xi1>, vector<16x16xf32>
    %cst_63 = arith.constant 1.000000e+00 : f32
    %167 = vector.broadcast %cst_63 : f32 to vector<16x16xf32>
    %168 = arith.select %164, %167, %154 : vector<16x16xi1>, vector<16x16xf32>
    %169 = tpu.transpose %168, [1, 0] : vector<16x16xf32> -> vector<16x16xf32>
    %170 = arith.maximumf %168, %169 : vector<16x16xf32>
    %171 = arith.mulf %125, %170 : vector<16x16xf32>
    %172 = arith.truncf %171 : vector<16x16xf32> to vector<16x16xbf16>
    %173 = arith.truncf %97 : vector<16x16xf32> to vector<16x16xbf16>
    %cst_64 = arith.constant dense<0.000000e+00> : vector<16x16xf32>
    %174 = tpu.matmul %172, %173, %cst_64 {dimension_numbers = #tpu.dot_dimension_numbers<[1], [0], [0], [1], [0, 0, 1, 1], [], []>} : vector<16x16xbf16>, vector<16x16xbf16>, vector<16x16xf32> -> vector<16x16xf32>
    %175 = vector.shape_cast %172 : vector<16x16xbf16> to vector<16x1x16xbf16>
    %cst_65 = arith.constant dense<0.000000e+00> : vector<16x1x16xf32>
    %176 = tpu.matmul %175, %99, %cst_65 {dimension_numbers = #tpu.dot_dimension_numbers<[2], [1], [1], [2], [0, 0, 0, 1, 1, 2], [0], [0]>} : vector<16x1x16xbf16>, vector<16x16x16xbf16>, vector<16x1x16xf32> -> vector<16x1x16xf32>
    %177 = vector.shape_cast %176 : vector<16x1x16xf32> to vector<16x16xf32>
    %178 = tpu.concatenate %91, %174 in 1 : vector<16x16xf32>, vector<16x16xf32> -> vector<16x32xf32>
    %179 = tpu.concatenate %94, %177 in 1 : vector<16x16xf32>, vector<16x16xf32> -> vector<16x32xf32>
    %cst_66 = arith.constant dense<0.000000e+00> : vector<16xf32>
    %180 = vector.multi_reduction <add>, %178, %cst_66 [1] : vector<16x32xf32> to vector<16xf32>
    %181 = vector.shape_cast %180 : vector<16xf32> to vector<16x1xf32>
    %cst_67 = arith.constant 3.200000e+01 : f32
    %182 = vector.broadcast %cst_67 : f32 to vector<16x1xf32>
    %183 = arith.divf %181, %182 : vector<16x1xf32>
    %184 = vector.broadcast %183 : vector<16x1xf32> to vector<16x32xf32>
    %185 = arith.subf %178, %184 : vector<16x32xf32>
    %186 = arith.mulf %185, %185 : vector<16x32xf32>
    %cst_68 = arith.constant dense<0.000000e+00> : vector<16xf32>
    %187 = vector.multi_reduction <add>, %186, %cst_68 [1] : vector<16x32xf32> to vector<16xf32>
    %188 = vector.shape_cast %187 : vector<16xf32> to vector<16x1xf32>
    %cst_69 = arith.constant 3.200000e+01 : f32
    %189 = vector.broadcast %cst_69 : f32 to vector<16x1xf32>
    %190 = arith.divf %188, %189 : vector<16x1xf32>
    %cst_70 = arith.constant 9.99999993E-9 : f32
    %191 = vector.broadcast %cst_70 : f32 to vector<16x1xf32>
    %192 = arith.addf %190, %191 : vector<16x1xf32>
    %193 = math.rsqrt %192 : vector<16x1xf32>
    %194 = vector.broadcast %193 : vector<16x1xf32> to vector<16x32xf32>
    %195 = arith.mulf %185, %194 : vector<16x32xf32>
    %c0_71 = arith.constant 0 : index
    %c0_72 = arith.constant 0 : index
    %196 = vector.load %arg6[%c0_71, %c0_72] : memref<1x32xf32, #tpu.memory_space<vmem>>, vector<1x32xf32>
    %197 = vector.broadcast %196 : vector<1x32xf32> to vector<16x32xf32>
    %198 = arith.mulf %195, %197 : vector<16x32xf32>
    %c0_73 = arith.constant 0 : index
    %c0_74 = arith.constant 0 : index
    %199 = vector.load %arg7[%c0_73, %c0_74] : memref<1x32xf32, #tpu.memory_space<vmem>>, vector<1x32xf32>
    %200 = vector.broadcast %199 : vector<1x32xf32> to vector<16x32xf32>
    %201 = arith.addf %198, %200 : vector<16x32xf32>
    %c0_75 = arith.constant 0 : index
    %c0_76 = arith.constant 0 : index
    %c0_77 = arith.constant 0 : index
    %202 = vector.load %arg8[%c0_75, %c0_76, %c0_77] : memref<1x16x32xf32, #tpu.memory_space<vmem>>, vector<1x16x32xf32>
    %203 = vector.shape_cast %202 : vector<1x16x32xf32> to vector<16x32xf32>
    %204 = vector.shape_cast %201 : vector<16x32xf32> to vector<1x16x32xf32>
    tpu.vector_store %arg8[%c0_75, %c0_76, %c0_77], %204 {strides = array<i32>} : memref<1x16x32xf32, #tpu.memory_space<vmem>>, vector<1x16x32xf32>,
    %c0_78 = arith.constant 0 : index
    %c0_79 = arith.constant 0 : index
    %c0_80 = arith.constant 0 : index
    %205 = vector.load %arg9[%c0_78, %c0_79, %c0_80] : memref<1x16x32xf32, #tpu.memory_space<vmem>>, vector<1x16x32xf32>
    %206 = vector.shape_cast %205 : vector<1x16x32xf32> to vector<16x32xf32>
    %207 = vector.shape_cast %179 : vector<16x32xf32> to vector<1x16x32xf32>
    tpu.vector_store %arg9[%c0_78, %c0_79, %c0_80], %207 {strides = array<i32>} : memref<1x16x32xf32, #tpu.memory_space<vmem>>, vector<1x16x32xf32>,
    return
  }
  func.func @transform_0(%arg0: i32) -> (i32, i32, i32) {
    %c0_i32 = arith.constant 0 : i32
    %c0_i32_0 = arith.constant 0 : i32
    %c0_i32_1 = arith.constant 0 : i32
    return %arg0, %c0_i32, %c0_i32_0 : i32, i32, i32
  }
  func.func @transform_1(%arg0: i32) -> (i32, i32, i32, i32) {
    %c0_i32 = arith.constant 0 : i32
    %c0_i32_0 = arith.constant 0 : i32
    %c0_i32_1 = arith.constant 0 : i32
    %c0_i32_2 = arith.constant 0 : i32
    return %arg0, %c0_i32, %c0_i32_0, %c0_i32_1 : i32, i32, i32, i32
  }
  func.func @transform_2(%arg0: i32) -> (i32, i32) {
    %c0_i32 = arith.constant 0 : i32
    %c0_i32_0 = arith.constant 0 : i32
    %c0_i32_1 = arith.constant 0 : i32
    return %c0_i32, %c0_i32_0 : i32, i32
  }
  func.func @transform_3(%arg0: i32) -> (i32, i32) {
    %c0_i32 = arith.constant 0 : i32
    %c0_i32_0 = arith.constant 0 : i32
    %c0_i32_1 = arith.constant 0 : i32
    return %c0_i32, %c0_i32_0 : i32, i32
  }
  func.func @transform_4(%arg0: i32) -> (i32, i32) {
    %c0_i32 = arith.constant 0 : i32
    %c0_i32_0 = arith.constant 0 : i32
    %c0_i32_1 = arith.constant 0 : i32
    return %c0_i32, %c0_i32_0 : i32, i32
  }
  func.func @transform_5(%arg0: i32) -> (i32, i32) {
    %c0_i32 = arith.constant 0 : i32
    %c0_i32_0 = arith.constant 0 : i32
    %c0_i32_1 = arith.constant 0 : i32
    return %c0_i32, %c0_i32_0 : i32, i32
  }
  func.func @transform_6(%arg0: i32) -> (i32, i32) {
    %c0_i32 = arith.constant 0 : i32
    %c0_i32_0 = arith.constant 0 : i32
    %c0_i32_1 = arith.constant 0 : i32
    return %c0_i32, %c0_i32_0 : i32, i32
  }
  func.func @transform_7(%arg0: i32) -> (i32, i32, i32) {
    %c0_i32 = arith.constant 0 : i32
    %c0_i32_0 = arith.constant 0 : i32
    %c0_i32_1 = arith.constant 0 : i32
    return %arg0, %c0_i32, %c0_i32_0 : i32, i32, i32
  }
  func.func @transform_8(%arg0: i32) -> (i32, i32, i32) {
    %c0_i32 = arith.constant 0 : i32
    %c0_i32_0 = arith.constant 0 : i32
    %c0_i32_1 = arith.constant 0 : i32
    return %arg0, %c0_i32, %c0_i32_0 : i32, i32, i32
  }
}

</mosaic_0001>

<llo_original>
// kernel: tpu_custom_call.1
$region0: #{tpu_custom_call.1}
  #allocation0 [shape = 'u32[]', space=smem, size = 0x4, offset = 0x4, fixed_abs, tag = 'smem constant byte address 0x4 - core index']
  #allocation1 [shape = 'u32[144,128]{1,0:T(1,128)}', space=vmem, size = 0x12000, scoped, tag = 'internal scratch']
  %s0 = inlined_call_operand.vmem [shape: f32[2,16,32], index: 0, kind: input, shape index: {}]
  %s1 = inlined_call_operand.hbm [shape: bf16[2,16,16,32], index: 1, kind: input, shape index: {}]
  %s2 = inlined_call_operand.vmem [shape: f32[16,16], index: 2, kind: input, shape index: {}]
  %s3 = inlined_call_operand.vmem [shape: bf16[96,32], index: 3, kind: input, shape index: {}]
  %s4 = inlined_call_operand.vmem [shape: f32[1,96], index: 4, kind: input, shape index: {}]
  %s5 = inlined_call_operand.vmem [shape: f32[1,32], index: 5, kind: input, shape index: {}]
  %s6 = inlined_call_operand.vmem [shape: f32[1,32], index: 6, kind: input, shape index: {}]
  %s7 = inlined_call_operand.hbm [shape: f32[2,16,32], index: 7, kind: output, shape index: {0}]
  %s8 = inlined_call_operand.hbm [shape: f32[2,16,32], index: 8, kind: output, shape index: {1}]
  %9 = xla_tuple %s7, %s8
  %s10 = sld [smem:[#allocation0]]
  $region73: #{tpu_custom_call.1} parent=0
    _
  %s12 = ssub.s32 1, %s10
  %s13 = scalar_select 0, %s12, %s10
  $region1: #{tpu_custom_call.1} parent=0
    #allocation2 [shape = 'u8[131072]{0}', space=vmem, size = 0x20000, scoped, tag = 'input window, operand 1']
    #allocation3 [shape = 's32[2]{0}', space=sflag, size = 0x8, scoped, tag = 'scoped memory for tpu_custom_call.1']
    #allocation4 [shape = 's32[2]{0}', space=sflag, size = 0x8, scoped, tag = 'scoped memory for tpu_custom_call.1']
    #allocation5 [shape = 'u8[16384]{0}', space=vmem, size = 0x4000, scoped, tag = 'output window, operand 0']
    #allocation6 [shape = 'u8[16384]{0}', space=vmem, size = 0x4000, scoped, tag = 'output window, operand 1']
    #allocation7 [shape = 's32[2]{0}', space=sflag, size = 0x8, scoped, tag = 'scoped memory for tpu_custom_call.1']
    %14 = vsyncpa [#allocation3], 0
    %s15 = scalar_lea.sflag [#allocation3], 1
    %16 = vsyncpa %s15, 0
    %17 = vsyncpa [#allocation4], 0
    %s18 = scalar_lea.sflag [#allocation4], 1
    %19 = vsyncpa %s18, 0
    %20 = vsyncpa [#allocation7], 0
    %s21 = scalar_lea.sflag [#allocation7], 1
    %22 = vsyncpa %s21, 0
    loop: start=0, step=1, limit=4
    $region2: #{tpu_custom_call.1} parent=1 // loop_pre_header
      _
    $region3: #{tpu_custom_call.1} parent=1 // loop_header
      %s24 = sphi 0, %s28
      %p25 = scmp.ge.s32.totalorder %s24, 4
      %s34 = sphi 0, %s36
      %s37 = sphi 0, %s34
      %s38 = sphi 0, %s37
      %s54 = sphi 0, %s38
      %s60 = sphi 0, %s62
      %s63 = sphi 0, %s60
      %s64 = sphi 0, %s63
      %s80 = sphi 0, %s64
      %s84 = sphi 0, %s84
      %s86 = sphi 0, %s84
      %s87 = sphi 0, %s86
      %s101 = sphi 0, %s87
      %s105 = sphi 0, %s105
      %s107 = sphi 0, %s105
      %s108 = sphi 0, %s107
      %s122 = sphi 0, %s108
      %s126 = sphi 0, %s126
      %s128 = sphi 0, %s126
      %s129 = sphi 0, %s128
      %s143 = sphi 0, %s129
      %s147 = sphi 0, %s147
      %s149 = sphi 0, %s147
      %s150 = sphi 0, %s149
      %s164 = sphi 0, %s150
      %s168 = sphi 0, %s168
      %s170 = sphi 0, %s168
      %s171 = sphi 0, %s170
      %s185 = sphi 0, %s171
      %s191 = sphi 0, %s193
      %s194 = sphi 0, %s191
      %s195 = sphi 0, %s194
      %s211 = sphi 0, %s195
      %s217 = sphi 0, %s219
      %s220 = sphi 0, %s217
      %s221 = sphi 0, %s220
      %s237 = sphi 0, %s221
    $region4: #{tpu_custom_call.1} parent=1 // loop_header_branch
      %27 = sbr.rel (%p25) target = $region8
    $region5: #{tpu_custom_call.1} parent=1 // loop_body
      %s29 = ssub.s32 %s24, 1
      %s30 = ssub.s32 %s24, 2
      %s31 = sadd.s32 %s24, 1
      %s32 = ssub.s32 %s24, %s31
      %p33 = scmp.eq.s32.totalorder %s32, 0
      %s35 = sadd.s32 %s34, 1
      %s36 = scalar_select %p33, %s34, %s35
      %p39 = pneg %p33
      %p40 = scmp.eq.s32.totalorder %s24, 1
      %p41 = por %p39, %p40
      %p42 = scmp.ne.s32.totalorder %s34, %s37
      %p43 = scmp.eq.s32.totalorder %s24, 0
      %p44 = por %p42, %p43
      %p45 = scmp.ne.s32.totalorder %s34, %s37
      %p46 = scmp.eq.s32.totalorder %s29, 1
      %p47 = por %p45, %p46
      %p48 = scmp.ne.s32.totalorder %s37, %s38
      %p49 = scmp.eq.s32.totalorder %s29, 0
      %p50 = por %p48, %p49
      %p51 = scmp.ne.s32.totalorder %s37, %s38
      %p52 = scmp.eq.s32.totalorder %s30, 1
      %p53 = por %p51, %p52
      %p55 = scmp.ne.s32.totalorder %s38, %s54
      %p56 = scmp.eq.s32.totalorder %s30, 0
      %p57 = por %p55, %p56
      %s58 = ssub.s32 %s24, %s31
      %p59 = scmp.eq.s32.totalorder %s58, 0
      %s61 = sadd.s32 %s60, 1
      %s62 = scalar_select %p59, %s60, %s61
      %p65 = pneg %p59
      %p66 = scmp.eq.s32.totalorder %s24, 1
      %p67 = por %p65, %p66
      %p68 = scmp.ne.s32.totalorder %s60, %s63
      %p69 = scmp.eq.s32.totalorder %s24, 0
      %p70 = por %p68, %p69
      %p71 = scmp.ne.s32.totalorder %s60, %s63
      %p72 = scmp.eq.s32.totalorder %s29, 1
      %p73 = por %p71, %p72
      %p74 = scmp.ne.s32.totalorder %s63, %s64
      %p75 = scmp.eq.s32.totalorder %s29, 0
      %p76 = por %p74, %p75
      %p77 = scmp.ne.s32.totalorder %s63, %s64
      %p78 = scmp.eq.s32.totalorder %s30, 1
      %p79 = por %p77, %p78
      %p81 = scmp.ne.s32.totalorder %s64, %s80
      %p82 = scmp.eq.s32.totalorder %s30, 0
      %p83 = por %p81, %p82
      %s85 = sadd.s32 %s84, 1
      %p88 = scmp.eq.s32.totalorder %s24, 1
      %p89 = scmp.ne.s32.totalorder %s84, %s86
      %p90 = scmp.eq.s32.totalorder %s24, 0
      %p91 = por %p89, %p90
      %p92 = scmp.ne.s32.totalorder %s84, %s86
      %p93 = scmp.eq.s32.totalorder %s29, 1
      %p94 = por %p92, %p93
      %p95 = scmp.ne.s32.totalorder %s86, %s87
      %p96 = scmp.eq.s32.totalorder %s29, 0
      %p97 = por %p95, %p96
      %p98 = scmp.ne.s32.totalorder %s86, %s87
      %p99 = scmp.eq.s32.totalorder %s30, 1
      %p100 = por %p98, %p99
      %p102 = scmp.ne.s32.totalorder %s87, %s101
      %p103 = scmp.eq.s32.totalorder %s30, 0
      %p104 = por %p102, %p103
      %s106 = sadd.s32 %s105, 1
      %p109 = scmp.eq.s32.totalorder %s24, 1
      %p110 = scmp.ne.s32.totalorder %s105, %s107
      %p111 = scmp.eq.s32.totalorder %s24, 0
      %p112 = por %p110, %p111
      %p113 = scmp.ne.s32.totalorder %s105, %s107
      %p114 = scmp.eq.s32.totalorder %s29, 1
      %p115 = por %p113, %p114
      %p116 = scmp.ne.s32.totalorder %s107, %s108
      %p117 = scmp.eq.s32.totalorder %s29, 0
      %p118 = por %p116, %p117
      %p119 = scmp.ne.s32.totalorder %s107, %s108
      %p120 = scmp.eq.s32.totalorder %s30, 1
      %p121 = por %p119, %p120
      %p123 = scmp.ne.s32.totalorder %s108, %s122
      %p124 = scmp.eq.s32.totalorder %s30, 0
      %p125 = por %p123, %p124
      %s127 = sadd.s32 %s126, 1
      %p130 = scmp.eq.s32.totalorder %s24, 1
      %p131 = scmp.ne.s32.totalorder %s126, %s128
      %p132 = scmp.eq.s32.totalorder %s24, 0
      %p133 = por %p131, %p132
      %p134 = scmp.ne.s32.totalorder %s126, %s128
      %p135 = scmp.eq.s32.totalorder %s29, 1
      %p136 = por %p134, %p135
      %p137 = scmp.ne.s32.totalorder %s128, %s129
      %p138 = scmp.eq.s32.totalorder %s29, 0
      %p139 = por %p137, %p138
      %p140 = scmp.ne.s32.totalorder %s128, %s129
      %p141 = scmp.eq.s32.totalorder %s30, 1
      %p142 = por %p140, %p141
      %p144 = scmp.ne.s32.totalorder %s129, %s143
      %p145 = scmp.eq.s32.totalorder %s30, 0
      %p146 = por %p144, %p145
      %s148 = sadd.s32 %s147, 1
      %p151 = scmp.eq.s32.totalorder %s24, 1
      %p152 = scmp.ne.s32.totalorder %s147, %s149
      %p153 = scmp.eq.s32.totalorder %s24, 0
      %p154 = por %p152, %p153
      %p155 = scmp.ne.s32.totalorder %s147, %s149
      %p156 = scmp.eq.s32.totalorder %s29, 1
      %p157 = por %p155, %p156
      %p158 = scmp.ne.s32.totalorder %s149, %s150
      %p159 = scmp.eq.s32.totalorder %s29, 0
      %p160 = por %p158, %p159
      %p161 = scmp.ne.s32.totalorder %s149, %s150
      %p162 = scmp.eq.s32.totalorder %s30, 1
      %p163 = por %p161, %p162
      %p165 = scmp.ne.s32.totalorder %s150, %s164
      %p166 = scmp.eq.s32.totalorder %s30, 0
      %p167 = por %p165, %p166
      %s169 = sadd.s32 %s168, 1
      %p172 = scmp.eq.s32.totalorder %s24, 1
      %p173 = scmp.ne.s32.totalorder %s168, %s170
      %p174 = scmp.eq.s32.totalorder %s24, 0
      %p175 = por %p173, %p174
      %p176 = scmp.ne.s32.totalorder %s168, %s170
      %p177 = scmp.eq.s32.totalorder %s29, 1
      %p178 = por %p176, %p177
      %p179 = scmp.ne.s32.totalorder %s170, %s171
      %p180 = scmp.eq.s32.totalorder %s29, 0
      %p181 = por %p179, %p180
      %p182 = scmp.ne.s32.totalorder %s170, %s171
      %p183 = scmp.eq.s32.totalorder %s30, 1
      %p184 = por %p182, %p183
      %p186 = scmp.ne.s32.totalorder %s171, %s185
      %p187 = scmp.eq.s32.totalorder %s30, 0
      %p188 = por %p186, %p187
      %s189 = ssub.s32 %s24, %s31
      %p190 = scmp.eq.s32.totalorder %s189, 0
      %s192 = sadd.s32 %s191, 1
      %s193 = scalar_select %p190, %s191, %s192
      %p196 = pneg %p190
      %p197 = scmp.eq.s32.totalorder %s24, 1
      %p198 = por %p196, %p197
      %p199 = scmp.ne.s32.totalorder %s191, %s194
      %p200 = scmp.eq.s32.totalorder %s24, 0
      %p201 = por %p199, %p200
      %p202 = scmp.ne.s32.totalorder %s191, %s194
      %p203 = scmp.eq.s32.totalorder %s29, 1
      %p204 = por %p202, %p203
      %p205 = scmp.ne.s32.totalorder %s194, %s195
      %p206 = scmp.eq.s32.totalorder %s29, 0
      %p207 = por %p205, %p206
      %p208 = scmp.ne.s32.totalorder %s194, %s195
      %p209 = scmp.eq.s32.totalorder %s30, 1
      %p210 = por %p208, %p209
      %p212 = scmp.ne.s32.totalorder %s195, %s211
      %p213 = scmp.eq.s32.totalorder %s30, 0
      %p214 = por %p212, %p213
      %s215 = ssub.s32 %s24, %s31
      %p216 = scmp.eq.s32.totalorder %s215, 0
      %s218 = sadd.s32 %s217, 1
      %s219 = scalar_select %p216, %s217, %s218
      %p222 = pneg %p216
      %p223 = scmp.eq.s32.totalorder %s24, 1
      %p224 = por %p222, %p223
      %p225 = scmp.ne.s32.totalorder %s217, %s220
      %p226 = scmp.eq.s32.totalorder %s24, 0
      %p227 = por %p225, %p226
      %p228 = scmp.ne.s32.totalorder %s217, %s220
      %p229 = scmp.eq.s32.totalorder %s29, 1
      %p230 = por %p228, %p229
      %p231 = scmp.ne.s32.totalorder %s220, %s221
      %p232 = scmp.eq.s32.totalorder %s29, 0
      %p233 = por %p231, %p232
      %p234 = scmp.ne.s32.totalorder %s220, %s221
      %p235 = scmp.eq.s32.totalorder %s30, 1
      %p236 = por %p234, %p235
      %p238 = scmp.ne.s32.totalorder %s221, %s237
      %p239 = scmp.eq.s32.totalorder %s30, 0
      %p240 = por %p238, %p239
      %p241 = scmp.le.s32.totalorder 1, %s24
      %p242 = scmp.lt.s32.totalorder %s24, 3
      %p243 = pnand %p241, %p242
      %p244 = pneg %p243
      // Predicated region
      $region9: #{tpu_custom_call.1} parent=5 // pred_check
        _
      $region10: #{tpu_custom_call.1} parent=5 // pred_check_branch
        %246 = sbr.rel (%p243) target = $region12
      $region11: #{tpu_custom_call.1} parent=5 // pred_region
        %s247 = ssub.s32 %s24, 1
        // Predicated region
        $region13: #{tpu_custom_call.1} parent=11 // pred_check
          %p248 = pneg %p97
        $region14: #{tpu_custom_call.1} parent=11 // pred_check_branch
          %250 = sbr.rel (%p248) target = $region16
        $region15: #{tpu_custom_call.1} parent=11 // pred_region
          _
        $region16: #{tpu_custom_call.1} parent=11 // pred_fallthru
          _
        // Predicated region
        $region17: #{tpu_custom_call.1} parent=11 // pred_check
          %p251 = pneg %p118
        $region18: #{tpu_custom_call.1} parent=11 // pred_check_branch
          %253 = sbr.rel (%p251) target = $region20
        $region19: #{tpu_custom_call.1} parent=11 // pred_region
          _
        $region20: #{tpu_custom_call.1} parent=11 // pred_fallthru
          _
        // Predicated region
        $region21: #{tpu_custom_call.1} parent=11 // pred_check
          %p254 = pneg %p139
        $region22: #{tpu_custom_call.1} parent=11 // pred_check_branch
          %256 = sbr.rel (%p254) target = $region24
        $region23: #{tpu_custom_call.1} parent=11 // pred_region
          _
        $region24: #{tpu_custom_call.1} parent=11 // pred_fallthru
          _
        // Predicated region
        $region25: #{tpu_custom_call.1} parent=11 // pred_check
          %p257 = pneg %p160
        $region26: #{tpu_custom_call.1} parent=11 // pred_check_branch
          %259 = sbr.rel (%p257) target = $region28
        $region27: #{tpu_custom_call.1} parent=11 // pred_region
          _
        $region28: #{tpu_custom_call.1} parent=11 // pred_fallthru
          _
        // Predicated region
        $region29: #{tpu_custom_call.1} parent=11 // pred_check
          %p260 = pneg %p181
        $region30: #{tpu_custom_call.1} parent=11 // pred_check_branch
          %262 = sbr.rel (%p260) target = $region32
        $region31: #{tpu_custom_call.1} parent=11 // pred_region
          _
        $region32: #{tpu_custom_call.1} parent=11 // pred_fallthru
          _
      $region12: #{tpu_custom_call.1} parent=5 // pred_fallthru
        _
      %p263 = scmp.lt.s32.totalorder %s24, 2
      // Predicated region
      $region33: #{tpu_custom_call.1} parent=5 // pred_check
        %p264 = pneg %p263
      $region34: #{tpu_custom_call.1} parent=5 // pred_check_branch
        %266 = sbr.rel (%p264) target = $region36
      $region35: #{tpu_custom_call.1} parent=5 // pred_region
        // Predicated region
        $region37: #{tpu_custom_call.1} parent=35 // pred_check
          %p267 = pneg %p44
        $region38: #{tpu_custom_call.1} parent=35 // pred_check_branch
          %269 = sbr.rel (%p267) target = $region40
        $region39: #{tpu_custom_call.1} parent=35 // pred_region
          %p270 = scmp.lt.s32.totalorder %s24, 1
          %s271 = scalar_select %p270, %s24, 1
          %s272 = smul.addr %s271, 2
          %s273 = smul.addr %s272, 8
          %s274 = scalar_lea.vmem %s0, %s273
        $region40: #{tpu_custom_call.1} parent=35 // pred_fallthru
          _
        // Predicated region
        $region41: #{tpu_custom_call.1} parent=35 // pred_check
          %p275 = pneg %p70
        $region42: #{tpu_custom_call.1} parent=35 // pred_check_branch
          %277 = sbr.rel (%p275) target = $region44
        $region43: #{tpu_custom_call.1} parent=35 // pred_region
          %s278 = sand.u32 %s60, 1
          %s279 = scalar_lea.sflag [#allocation3], %s278
          %s280 = sand.u32 %s60, 1
          %s281 = smul.addr %s280, 128
          %s282 = scalar_lea.vmem [#allocation2], %s281
          %s284 = ssub.s32 2048, 2048
          %285 = vsyncadd %s279, %s284
          %s286 = smul.addr %s24, 32
          %s287 = smul.addr %s286, 64
          %s288 = scalar_lea.hbm %s1, %s287
          %s289 = sshll.u32 %s282, 4
          %s290 = int_to_ptr.vmem [resolvable:$true] %s289
          %295 = dma.hbm_to_vmem [thread:$0]  %s288, 2048, %s290, %s279, 64, 64, 4
        $region44: #{tpu_custom_call.1} parent=35 // pred_fallthru
          _
      $region36: #{tpu_custom_call.1} parent=5 // pred_fallthru
        _
      %p296 = scmp.le.s32.totalorder 1, %s24
      %p297 = scmp.lt.s32.totalorder %s24, 3
      %p298 = pnand %p296, %p297
      %p299 = pneg %p298
      // Predicated region
      $region45: #{tpu_custom_call.1} parent=5 // pred_check
        _
      $region46: #{tpu_custom_call.1} parent=5 // pred_check_branch
        %301 = sbr.rel (%p298) target = $region48
      $region47: #{tpu_custom_call.1} parent=5 // pred_region
        %s302 = ssub.s32 %s24, 1
        %s303 = sand.u32 %s63, 1
        %s304 = scalar_lea.sflag [#allocation3], %s303
        %s305 = sand.u32 %s63, 1
        %s306 = smul.addr %s305, 128
        %s307 = scalar_lea.vmem [#allocation2], %s306
        // Predicated region
        $region49: #{tpu_custom_call.1} parent=47 // pred_check
          %p308 = pneg %p76
        $region50: #{tpu_custom_call.1} parent=47 // pred_check_branch
          %310 = sbr.rel (%p308) target = $region52
        $region51: #{tpu_custom_call.1} parent=47 // pred_region
          %311 = dma.done %s304, 2048
        $region52: #{tpu_custom_call.1} parent=47 // pred_fallthru
          _
        %p312 = scmp.lt.s32.totalorder %s29, 1
        %s313 = scalar_select %p312, %s29, 1
        %s314 = smul.addr %s313, 2
        %s315 = smul.addr %s314, 8
        %s316 = scalar_lea.vmem %s0, %s315
        %p317 = pneg %p50
        %p318 = pneg %p47
        %s319 = sand.u32 %s63, 1
        %s320 = scalar_lea.sflag [#allocation3], %s319
        %s321 = sand.u32 %s63, 1
        %s322 = smul.addr %s321, 128
        %s323 = scalar_lea.vmem [#allocation2], %s322
        %p324 = pneg %p76
        %p325 = pneg %p73
        %p326 = pneg %p97
        %p327 = pneg %p94
        %p328 = pneg %p118
        %p329 = pneg %p115
        %p330 = pneg %p139
        %p331 = pneg %p136
        %p332 = pneg %p160
        %p333 = pneg %p157
        %p334 = pneg %p181
        %p335 = pneg %p178
        %p336 = pneg %p207
        %p337 = pneg %p204
        %s338 = sand.u32 %s194, 1
        %s339 = scalar_lea.sflag [#allocation4], %s338
        %s340 = sand.u32 %s194, 1
        %s341 = smul.addr %s340, 16
        %s342 = scalar_lea.vmem [#allocation5], %s341
        %p343 = pneg %p233
        %p344 = pneg %p230
        %s345 = sand.u32 %s220, 1
        %s346 = scalar_lea.sflag [#allocation7], %s345
        %s347 = sand.u32 %s220, 1
        %s348 = smul.addr %s347, 16
        %s349 = scalar_lea.vmem [#allocation6], %s348
        %p350 = scmp.lt.s32.totalorder %s29, 1
        %s351 = scalar_select %p350, %s29, 1
        %s352 = smul.addr %s351, 2
        %s353 = smul.addr %s352, 8
        %s354 = scalar_lea.vmem %s0, %s353
        %v356 = vld [vmem:[%s354] sm:$0xff]
        %v357 = vld [vmem:[%s354 + $0x8] sm:$0xff]
        %v358 = vpack.c.bf16 %v357, %v356
        %v359 = vld [vmem:[%s2] sm:$0xff]
        %v360 = vld [vmem:[%s2 + $0x8] sm:$0xff]
        %vm361 = vcmp.gt.f32.partialorder %v359, 0.5
        %vm362 = vcmp.gt.f32.partialorder %v360, 0.5
        %v363 = vld [vmem:[%s3] sm:$0xf]
        %v364 = vld [vmem:[%s3 + $0x4] sm:$0xf]
        %v365 = vld [vmem:[%s3 + $0x8] sm:$0xf]
        %v366 = vld [vmem:[%s3 + $0xc] sm:$0xf]
        %v367 = vld [vmem:[%s3 + $0x10] sm:$0xf]
        %v368 = vld [vmem:[%s3 + $0x14] sm:$0xf]
        %v369 = vld [vmem:[%s3 + $0x18] sm:$0xf]
        %v370 = vld [vmem:[%s3 + $0x1c] sm:$0xf]
        %v371 = vld [vmem:[%s3 + $0x20] sm:$0xf]
        %v372 = vld [vmem:[%s3 + $0x24] sm:$0xf]
        %v373 = vld [vmem:[%s3 + $0x28] sm:$0xf]
        %v374 = vld [vmem:[%s3 + $0x2c] sm:$0xf]
        %v375 = vld [vmem:[%s4] sm:$0x1]
        %v377 = vlaneseq
        %v378 = vshrl.u32 %v377, 7
        %v379 = vsub.s32 0, %v378
        %v380 = vrot.slane %v375, %v379
        %v394 = vunpack.c.l.b16 %v363
        %v395 = vunpack.c.l.b16 %v364
        %v396 = vunpack.c.l.b16 %v365
        %v397 = vunpack.c.l.b16 %v366
        %v398 = vunpack.c.l.b16 %v367
        %v399 = vunpack.c.l.b16 %v368
        %v400 = vunpack.c.l.b16 %v369
        %v401 = vunpack.c.l.b16 %v370
        %v402 = vunpack.c.l.b16 %v371
        %v403 = vunpack.c.l.b16 %v372
        %v404 = vunpack.c.l.b16 %v373
        %v405 = vunpack.c.l.b16 %v374
        %v406 = vpack.c.b16 %v395, %v394
        %v407 = vpack.c.b16 %v397, %v396
        %v408 = vpack.c.b16 %v399, %v398
        %v409 = vpack.c.b16 %v401, %v400
        %v410 = vpack.c.b16 %v403, %v402
        %v411 = vpack.c.b16 %v405, %v404
        %vm412 = vcmask 261120
        %v414 = vsel %vm412, %v358, 0
        %v417 = vsel %vm412, %v406, 0
        %v420 = vsel %vm412, %v407, 0
        %v423 = vsel %vm412, %v408, 0
        %v426 = vsel %vm412, %v409, 0
        %v429 = vsel %vm412, %v410, 0
        %v432 = vsel %vm412, %v411, 0
        %434 = vmatprep.subr.bf16.mxu0 0
        %435 = vmatpush1.bf16.xpose.msra.mxu0 %v417
        %436 = vmatprep.subr.bf16.mxu0 0
        %437 = vmatpush1.bf16.xpose.msra.mxu0 %v420
        %438 = vmatprep.subr.bf16.mxu0 0
        %439 = vmatpush1.bf16.xpose.msra.mxu0 %v423
        %440 = vmatprep.subr.bf16.mxu0 0
        %441 = vmatpush1.bf16.xpose.msra.mxu0 %v426
        %442 = vmatprep.subr.bf16.mxu0 0
        %443 = vmatpush1.bf16.xpose.msra.mxu0 %v429
        %444 = vmatprep.subr.bf16.mxu0 0
        %445 = vmatpush1.bf16.xpose.msra.mxu0 %v432
        %446 = vmatprep.subr.bf16.mxu0 0
        %447 = vmatpush1.bf16.xpose.msra.mxu0 0
        %448 = vmatprep.subr.bf16.mxu0 0
        %449 = vmatpush1.bf16.xpose.msra.mxu0 0
        %450 = vmatprep.subr.bf16.mxu0 0
        %451 = vmatpush1.bf16.xpose.msra.mxu0 0
        %452 = vmatprep.subr.bf16.mxu0 0
        %453 = vmatpush1.bf16.xpose.msra.mxu0 0
        %454 = vmatprep.subr.bf16.mxu0 0
        %455 = vmatpush1.bf16.xpose.msra.mxu0 0
        %456 = vmatprep.subr.bf16.mxu0 0
        %457 = vmatpush1.bf16.xpose.msra.mxu0 0
        %458 = vmatprep.subr.bf16.mxu0 0
        %459 = vmatpush1.bf16.xpose.msra.mxu0 0
        %460 = vmatprep.subr.bf16.mxu0 0
        %461 = vmatpush1.bf16.xpose.msra.mxu0 0
        %462 = vmatprep.subr.bf16.mxu0 0
        %463 = vmatpush1.bf16.xpose.msra.mxu0 0
        %464 = vmatprep.subr.bf16.mxu0 0
        %465 = vmatpush1.bf16.xpose.msra.mxu0 0
        %466 = vmatprep.mubr.bf16.mxu0 0
        %467 = vmatmul.mubr.bf16.gmra.mrb[0].mxu0 %v414
        %v468 = vpop.f32.mrb[0].mxu0
        %v469 = vadd.f32 %v380, %v468
        %v470 = vpop.f32.mrb[0].mxu0
        %v471 = vpop.f32.mrb[0].mxu0
        %v472 = vadd.f32 %v380, %v471
        %v473 = vpop.f32.mrb[0].mxu0
        %474 = vdwg.mxu0
        %v475 = vlaneseq
        %v476 = vand.u32 %v475, 127
        %v477 = vld [vmem:[%s307] sm:$0xf]
        %v478 = vld [vmem:[%s307 + $0x4] sm:$0xf]
        %v479 = vld [vmem:[%s307 + $0x8] sm:$0xf]
        %v480 = vld [vmem:[%s307 + $0xc] sm:$0xf]
        %v481 = vld [vmem:[%s307 + $0x10] sm:$0xf]
        %v482 = vld [vmem:[%s307 + $0x14] sm:$0xf]
        %v483 = vld [vmem:[%s307 + $0x18] sm:$0xf]
        %v484 = vld [vmem:[%s307 + $0x1c] sm:$0xf]
        %v485 = vld [vmem:[%s307 + $0x20] sm:$0xf]
        %v486 = vld [vmem:[%s307 + $0x24] sm:$0xf]
        %v487 = vld [vmem:[%s307 + $0x28] sm:$0xf]
        %v488 = vld [vmem:[%s307 + $0x2c] sm:$0xf]
        %v489 = vld [vmem:[%s307 + $0x30] sm:$0xf]
        %v490 = vld [vmem:[%s307 + $0x34] sm:$0xf]
        %v491 = vld [vmem:[%s307 + $0x38] sm:$0xf]
        %v492 = vld [vmem:[%s307 + $0x3c] sm:$0xf]
        %v493 = vld [vmem:[%s307 + $0x40] sm:$0xf]
        %v494 = vld [vmem:[%s307 + $0x44] sm:$0xf]
        %v495 = vld [vmem:[%s307 + $0x48] sm:$0xf]
        %v496 = vld [vmem:[%s307 + $0x4c] sm:$0xf]
        %v497 = vld [vmem:[%s307 + $0x50] sm:$0xf]
        %v498 = vld [vmem:[%s307 + $0x54] sm:$0xf]
        %v499 = vld [vmem:[%s307 + $0x58] sm:$0xf]
        %v500 = vld [vmem:[%s307 + $0x5c] sm:$0xf]
        %v501 = vld [vmem:[%s307 + $0x60] sm:$0xf]
        %v502 = vld [vmem:[%s307 + $0x64] sm:$0xf]
        %v503 = vld [vmem:[%s307 + $0x68] sm:$0xf]
        %v504 = vld [vmem:[%s307 + $0x6c] sm:$0xf]
        %v505 = vld [vmem:[%s307 + $0x70] sm:$0xf]
        %v506 = vld [vmem:[%s307 + $0x74] sm:$0xf]
        %v507 = vld [vmem:[%s307 + $0x78] sm:$0xf]
        %v508 = vld [vmem:[%s307 + $0x7c] sm:$0xf]
        %v509 = vunpack.c.l.bf16 %v477
        %v510 = vunpack.c.l.bf16 %v478
        %v511 = vunpack.c.l.bf16 %v479
        %v512 = vunpack.c.l.bf16 %v480
        %v513 = vunpack.c.l.bf16 %v481
        %v514 = vunpack.c.l.bf16 %v482
        %v515 = vunpack.c.l.bf16 %v483
        %v516 = vunpack.c.l.bf16 %v484
        %v517 = vunpack.c.l.bf16 %v485
        %v518 = vunpack.c.l.bf16 %v486
        %v519 = vunpack.c.l.bf16 %v487
        %v520 = vunpack.c.l.bf16 %v488
        %v521 = vunpack.c.l.bf16 %v489
        %v522 = vunpack.c.l.bf16 %v490
        %v523 = vunpack.c.l.bf16 %v491
        %v524 = vunpack.c.l.bf16 %v492
        %v525 = vunpack.c.l.bf16 %v493
        %v526 = vunpack.c.l.bf16 %v494
        %v527 = vunpack.c.l.bf16 %v495
        %v528 = vunpack.c.l.bf16 %v496
        %v529 = vunpack.c.l.bf16 %v497
        %v530 = vunpack.c.l.bf16 %v498
        %v531 = vunpack.c.l.bf16 %v499
        %v532 = vunpack.c.l.bf16 %v500
        %v533 = vunpack.c.l.bf16 %v501
        %v534 = vunpack.c.l.bf16 %v502
        %v535 = vunpack.c.l.bf16 %v503
        %v536 = vunpack.c.l.bf16 %v504
        %v537 = vunpack.c.l.bf16 %v505
        %v538 = vunpack.c.l.bf16 %v506
        %v539 = vunpack.c.l.bf16 %v507
        %v540 = vunpack.c.l.bf16 %v508
        %v541 = vpack.c.bf16 %v472, %v469
        %v544 = vcombine.high %v469, %v469
        %v546 = vunpack.c.l.s4 1966171168
        %v547 = vunpack.c.0.s8 %v546
        %v548 = vlaneseq
        %v549 = vshrl.u32 %v548, 7
        %v550 = vsub.s32 %v547, %v549
        %v551 = vrot.slane %v469, %v550
        %v553 = vunpack.c.l.s4 1966171168
        %v554 = vunpack.c.0.s8 %v553
        %v555 = vlaneseq
        %v556 = vshrl.u32 %v555, 7
        %v557 = vsub.s32 %v554, %v556
        %v558 = vrot.slane %v544, %v557
        %v559 = vcombine.high %v551, %v551
        %v560 = vcombine.high %v558, %v558
        %v562 = vunpack.c.l.s4 1966171168
        %v563 = vunpack.c.0.s8 %v562
        %v564 = vlaneseq
        %v565 = vshrl.u32 %v564, 7
        %v566 = vsub.s32 %v563, %v565
        %v567 = vrot.slane %v551, %v566
        %v569 = vunpack.c.l.s4 1966171168
        %v570 = vunpack.c.0.s8 %v569
        %v571 = vlaneseq
        %v572 = vshrl.u32 %v571, 7
        %v573 = vsub.s32 %v570, %v572
        %v574 = vrot.slane %v558, %v573
        %v576 = vunpack.c.l.s4 1966171168
        %v577 = vunpack.c.0.s8 %v576
        %v578 = vlaneseq
        %v579 = vshrl.u32 %v578, 7
        %v580 = vsub.s32 %v577, %v579
        %v581 = vrot.slane %v559, %v580
        %v583 = vunpack.c.l.s4 1966171168
        %v584 = vunpack.c.0.s8 %v583
        %v585 = vlaneseq
        %v586 = vshrl.u32 %v585, 7
        %v587 = vsub.s32 %v584, %v586
        %v588 = vrot.slane %v560, %v587
        %v589 = vcombine.high %v567, %v567
        %v590 = vcombine.high %v574, %v574
        %v591 = vcombine.high %v581, %v581
        %v592 = vcombine.high %v588, %v588
        %v593 = vcombine.high %v472, %v472
        %v595 = vunpack.c.l.s4 1966171168
        %v596 = vunpack.c.0.s8 %v595
        %v597 = vlaneseq
        %v598 = vshrl.u32 %v597, 7
        %v599 = vsub.s32 %v596, %v598
        %v600 = vrot.slane %v472, %v599
        %v602 = vunpack.c.l.s4 1966171168
        %v603 = vunpack.c.0.s8 %v602
        %v604 = vlaneseq
        %v605 = vshrl.u32 %v604, 7
        %v606 = vsub.s32 %v603, %v605
        %v607 = vrot.slane %v593, %v606
        %v608 = vcombine.high %v600, %v600
        %v609 = vcombine.high %v607, %v607
        %v611 = vunpack.c.l.s4 1966171168
        %v612 = vunpack.c.0.s8 %v611
        %v613 = vlaneseq
        %v614 = vshrl.u32 %v613, 7
        %v615 = vsub.s32 %v612, %v614
        %v616 = vrot.slane %v600, %v615
        %v618 = vunpack.c.l.s4 1966171168
        %v619 = vunpack.c.0.s8 %v618
        %v620 = vlaneseq
        %v621 = vshrl.u32 %v620, 7
        %v622 = vsub.s32 %v619, %v621
        %v623 = vrot.slane %v607, %v622
        %v625 = vunpack.c.l.s4 1966171168
        %v626 = vunpack.c.0.s8 %v625
        %v627 = vlaneseq
        %v628 = vshrl.u32 %v627, 7
        %v629 = vsub.s32 %v626, %v628
        %v630 = vrot.slane %v608, %v629
        %v632 = vunpack.c.l.s4 1966171168
        %v633 = vunpack.c.0.s8 %v632
        %v634 = vlaneseq
        %v635 = vshrl.u32 %v634, 7
        %v636 = vsub.s32 %v633, %v635
        %v637 = vrot.slane %v609, %v636
        %v638 = vcombine.high %v616, %v616
        %v639 = vcombine.high %v623, %v623
        %v640 = vcombine.high %v630, %v630
        %v641 = vcombine.high %v637, %v637
        %v642 = vlaneseq
        %v643 = vshrl.u32 %v642, 7
        %v644 = vsub.s32 0, %v643
        %v645 = vrot.slane %v567, %v644
        %v646 = vlaneseq
        %v647 = vshrl.u32 %v646, 7
        %v648 = vsub.s32 0, %v647
        %v649 = vrot.slane %v581, %v648
        %v650 = vlaneseq
        %v651 = vshrl.u32 %v650, 7
        %v652 = vsub.s32 0, %v651
        %v653 = vrot.slane %v589, %v652
        %v654 = vlaneseq
        %v655 = vshrl.u32 %v654, 7
        %v656 = vsub.s32 0, %v655
        %v657 = vrot.slane %v591, %v656
        %v658 = vlaneseq
        %v659 = vshrl.u32 %v658, 7
        %v660 = vsub.s32 0, %v659
        %v661 = vrot.slane %v574, %v660
        %v662 = vlaneseq
        %v663 = vshrl.u32 %v662, 7
        %v664 = vsub.s32 0, %v663
        %v665 = vrot.slane %v588, %v664
        %v666 = vlaneseq
        %v667 = vshrl.u32 %v666, 7
        %v668 = vsub.s32 0, %v667
        %v669 = vrot.slane %v590, %v668
        %v670 = vlaneseq
        %v671 = vshrl.u32 %v670, 7
        %v672 = vsub.s32 0, %v671
        %v673 = vrot.slane %v592, %v672
        %v674 = vlaneseq
        %v675 = vshrl.u32 %v674, 7
        %v676 = vsub.s32 0, %v675
        %v677 = vrot.slane %v616, %v676
        %v678 = vlaneseq
        %v679 = vshrl.u32 %v678, 7
        %v680 = vsub.s32 0, %v679
        %v681 = vrot.slane %v630, %v680
        %v682 = vlaneseq
        %v683 = vshrl.u32 %v682, 7
        %v684 = vsub.s32 0, %v683
        %v685 = vrot.slane %v638, %v684
        %v686 = vlaneseq
        %v687 = vshrl.u32 %v686, 7
        %v688 = vsub.s32 0, %v687
        %v689 = vrot.slane %v640, %v688
        %v690 = vlaneseq
        %v691 = vshrl.u32 %v690, 7
        %v692 = vsub.s32 0, %v691
        %v693 = vrot.slane %v623, %v692
        %v694 = vlaneseq
        %v695 = vshrl.u32 %v694, 7
        %v696 = vsub.s32 0, %v695
        %v697 = vrot.slane %v637, %v696
        %v698 = vlaneseq
        %v699 = vshrl.u32 %v698, 7
        %v700 = vsub.s32 0, %v699
        %v701 = vrot.slane %v639, %v700
        %v702 = vlaneseq
        %v703 = vshrl.u32 %v702, 7
        %v704 = vsub.s32 0, %v703
        %v705 = vrot.slane %v641, %v704
        %v722 = vmul.f32 %v509, %v645
        %v723 = vmul.f32 %v510, %v645
        %v724 = vmul.f32 %v511, %v649
        %v725 = vmul.f32 %v512, %v649
        %v726 = vmul.f32 %v513, %v653
        %v727 = vmul.f32 %v514, %v653
        %v728 = vmul.f32 %v515, %v657
        %v729 = vmul.f32 %v516, %v657
        %v730 = vmul.f32 %v517, %v661
        %v731 = vmul.f32 %v518, %v661
        %v732 = vmul.f32 %v519, %v665
        %v733 = vmul.f32 %v520, %v665
        %v734 = vmul.f32 %v521, %v669
        %v735 = vmul.f32 %v522, %v669
        %v736 = vmul.f32 %v523, %v673
        %v737 = vmul.f32 %v524, %v673
        %v738 = vmul.f32 %v525, %v677
        %v739 = vmul.f32 %v526, %v677
        %v740 = vmul.f32 %v527, %v681
        %v741 = vmul.f32 %v528, %v681
        %v742 = vmul.f32 %v529, %v685
        %v743 = vmul.f32 %v530, %v685
        %v744 = vmul.f32 %v531, %v689
        %v745 = vmul.f32 %v532, %v689
        %v746 = vmul.f32 %v533, %v693
        %v747 = vmul.f32 %v534, %v693
        %v748 = vmul.f32 %v535, %v697
        %v749 = vmul.f32 %v536, %v697
        %v750 = vmul.f32 %v537, %v701
        %v751 = vmul.f32 %v538, %v701
        %v752 = vmul.f32 %v539, %v705
        %v753 = vmul.f32 %v540, %v705
        %vm754 = vcmask 130048
        %v755 = vsel %vm754, %v722, 0.0
        %756 = vadd.xlane.f32.xlu0 %v755
        %v757 = vpop.xlane.xlu0 %756
        %v758 = vsel %vm754, %v723, 0.0
        %759 = vadd.xlane.f32.xlu0 %v758
        %v760 = vpop.xlane.xlu0 %759
        %v761 = vsel %vm754, %v724, 0.0
        %762 = vadd.xlane.f32.xlu0 %v761
        %v763 = vpop.xlane.xlu0 %762
        %v764 = vsel %vm754, %v725, 0.0
        %765 = vadd.xlane.f32.xlu0 %v764
        %v766 = vpop.xlane.xlu0 %765
        %v767 = vsel %vm754, %v726, 0.0
        %768 = vadd.xlane.f32.xlu0 %v767
        %v769 = vpop.xlane.xlu0 %768
        %v770 = vsel %vm754, %v727, 0.0
        %771 = vadd.xlane.f32.xlu0 %v770
        %v772 = vpop.xlane.xlu0 %771
        %v773 = vsel %vm754, %v728, 0.0
        %774 = vadd.xlane.f32.xlu0 %v773
        %v775 = vpop.xlane.xlu0 %774
        %v776 = vsel %vm754, %v729, 0.0
        %777 = vadd.xlane.f32.xlu0 %v776
        %v778 = vpop.xlane.xlu0 %777
        %v779 = vsel %vm754, %v730, 0.0
        %780 = vadd.xlane.f32.xlu0 %v779
        %v781 = vpop.xlane.xlu0 %780
        %v782 = vsel %vm754, %v731, 0.0
        %783 = vadd.xlane.f32.xlu0 %v782
        %v784 = vpop.xlane.xlu0 %783
        %v785 = vsel %vm754, %v732, 0.0
        %786 = vadd.xlane.f32.xlu0 %v785
        %v787 = vpop.xlane.xlu0 %786
        %v788 = vsel %vm754, %v733, 0.0
        %789 = vadd.xlane.f32.xlu0 %v788
        %v790 = vpop.xlane.xlu0 %789
        %v791 = vsel %vm754, %v734, 0.0
        %792 = vadd.xlane.f32.xlu0 %v791
        %v793 = vpop.xlane.xlu0 %792
        %v794 = vsel %vm754, %v735, 0.0
        %795 = vadd.xlane.f32.xlu0 %v794
        %v796 = vpop.xlane.xlu0 %795
        %v797 = vsel %vm754, %v736, 0.0
        %798 = vadd.xlane.f32.xlu0 %v797
        %v799 = vpop.xlane.xlu0 %798
        %v800 = vsel %vm754, %v737, 0.0
        %801 = vadd.xlane.f32.xlu0 %v800
        %v802 = vpop.xlane.xlu0 %801
        %v803 = vsel %vm754, %v738, 0.0
        %804 = vadd.xlane.f32.xlu0 %v803
        %v805 = vpop.xlane.xlu0 %804
        %v806 = vsel %vm754, %v739, 0.0
        %807 = vadd.xlane.f32.xlu0 %v806
        %v808 = vpop.xlane.xlu0 %807
        %v809 = vsel %vm754, %v740, 0.0
        %810 = vadd.xlane.f32.xlu0 %v809
        %v811 = vpop.xlane.xlu0 %810
        %v812 = vsel %vm754, %v741, 0.0
        %813 = vadd.xlane.f32.xlu0 %v812
        %v814 = vpop.xlane.xlu0 %813
        %v815 = vsel %vm754, %v742, 0.0
        %816 = vadd.xlane.f32.xlu0 %v815
        %v817 = vpop.xlane.xlu0 %816
        %v818 = vsel %vm754, %v743, 0.0
        %819 = vadd.xlane.f32.xlu0 %v818
        %v820 = vpop.xlane.xlu0 %819
        %v821 = vsel %vm754, %v744, 0.0
        %822 = vadd.xlane.f32.xlu0 %v821
        %v823 = vpop.xlane.xlu0 %822
        %v824 = vsel %vm754, %v745, 0.0
        %825 = vadd.xlane.f32.xlu0 %v824
        %v826 = vpop.xlane.xlu0 %825
        %v827 = vsel %vm754, %v746, 0.0
        %828 = vadd.xlane.f32.xlu0 %v827
        %v829 = vpop.xlane.xlu0 %828
        %v830 = vsel %vm754, %v747, 0.0
        %831 = vadd.xlane.f32.xlu0 %v830
        %v832 = vpop.xlane.xlu0 %831
        %v833 = vsel %vm754, %v748, 0.0
        %834 = vadd.xlane.f32.xlu0 %v833
        %v835 = vpop.xlane.xlu0 %834
        %v836 = vsel %vm754, %v749, 0.0
        %837 = vadd.xlane.f32.xlu0 %v836
        %v838 = vpop.xlane.xlu0 %837
        %v839 = vsel %vm754, %v750, 0.0
        %840 = vadd.xlane.f32.xlu0 %v839
        %v841 = vpop.xlane.xlu0 %840
        %v842 = vsel %vm754, %v751, 0.0
        %843 = vadd.xlane.f32.xlu0 %v842
        %v844 = vpop.xlane.xlu0 %843
        %v845 = vsel %vm754, %v752, 0.0
        %846 = vadd.xlane.f32.xlu0 %v845
        %v847 = vpop.xlane.xlu0 %846
        %v848 = vsel %vm754, %v753, 0.0
        %849 = vadd.xlane.f32.xlu0 %v848
        %v850 = vpop.xlane.xlu0 %849
        %851 = vrot.lane.b32.xlu0 %v469, 96
        %v852 = vpop.permute.xlu0 %851
        %853 = vrot.lane.b32.xlu0 %v472, 96
        %v854 = vpop.permute.xlu0 %853
        %v857 = vadd.f32 %v509, %v852
        %v858 = vadd.f32 %v510, %v854
        %v859 = vadd.f32 %v511, %v852
        %v860 = vadd.f32 %v512, %v854
        %v861 = vadd.f32 %v513, %v852
        %v862 = vadd.f32 %v514, %v854
        %v863 = vadd.f32 %v515, %v852
        %v864 = vadd.f32 %v516, %v854
        %v865 = vadd.f32 %v517, %v852
        %v866 = vadd.f32 %v518, %v854
        %v867 = vadd.f32 %v519, %v852
        %v868 = vadd.f32 %v520, %v854
        %v869 = vadd.f32 %v521, %v852
        %v870 = vadd.f32 %v522, %v854
        %v871 = vadd.f32 %v523, %v852
        %v872 = vadd.f32 %v524, %v854
        %v873 = vadd.f32 %v525, %v852
        %v874 = vadd.f32 %v526, %v854
        %v875 = vadd.f32 %v527, %v852
        %v876 = vadd.f32 %v528, %v854
        %v877 = vadd.f32 %v529, %v852
        %v878 = vadd.f32 %v530, %v854
        %v879 = vadd.f32 %v531, %v852
        %v880 = vadd.f32 %v532, %v854
        %v881 = vadd.f32 %v533, %v852
        %v882 = vadd.f32 %v534, %v854
        %v883 = vadd.f32 %v535, %v852
        %v884 = vadd.f32 %v536, %v854
        %v885 = vadd.f32 %v537, %v852
        %v886 = vadd.f32 %v538, %v854
        %v887 = vadd.f32 %v539, %v852
        %v888 = vadd.f32 %v540, %v854
        %v889 = vmul.f32 %v857, %v857
        %v890 = vmul.f32 %v858, %v858
        %v891 = vmul.f32 %v859, %v859
        %v892 = vmul.f32 %v860, %v860
        %v893 = vmul.f32 %v861, %v861
        %v894 = vmul.f32 %v862, %v862
        %v895 = vmul.f32 %v863, %v863
        %v896 = vmul.f32 %v864, %v864
        %v897 = vmul.f32 %v865, %v865
        %v898 = vmul.f32 %v866, %v866
        %v899 = vmul.f32 %v867, %v867
        %v900 = vmul.f32 %v868, %v868
        %v901 = vmul.f32 %v869, %v869
        %v902 = vmul.f32 %v870, %v870
        %v903 = vmul.f32 %v871, %v871
        %v904 = vmul.f32 %v872, %v872
        %v905 = vmul.f32 %v873, %v873
        %v906 = vmul.f32 %v874, %v874
        %v907 = vmul.f32 %v875, %v875
        %v908 = vmul.f32 %v876, %v876
        %v909 = vmul.f32 %v877, %v877
        %v910 = vmul.f32 %v878, %v878
        %v911 = vmul.f32 %v879, %v879
        %v912 = vmul.f32 %v880, %v880
        %v913 = vmul.f32 %v881, %v881
        %v914 = vmul.f32 %v882, %v882
        %v915 = vmul.f32 %v883, %v883
        %v916 = vmul.f32 %v884, %v884
        %v917 = vmul.f32 %v885, %v885
        %v918 = vmul.f32 %v886, %v886
        %v919 = vmul.f32 %v887, %v887
        %v920 = vmul.f32 %v888, %v888
        %v921 = vsel %vm754, %v889, 0.0
        %922 = vadd.xlane.f32.xlu0 %v921
        %v923 = vpop.xlane.xlu0 %922
        %v924 = vsel %vm754, %v890, 0.0
        %925 = vadd.xlane.f32.xlu0 %v924
        %v926 = vpop.xlane.xlu0 %925
        %v927 = vsel %vm754, %v891, 0.0
        %928 = vadd.xlane.f32.xlu0 %v927
        %v929 = vpop.xlane.xlu0 %928
        %v930 = vsel %vm754, %v892, 0.0
        %931 = vadd.xlane.f32.xlu0 %v930
        %v932 = vpop.xlane.xlu0 %931
        %v933 = vsel %vm754, %v893, 0.0
        %934 = vadd.xlane.f32.xlu0 %v933
        %v935 = vpop.xlane.xlu0 %934
        %v936 = vsel %vm754, %v894, 0.0
        %937 = vadd.xlane.f32.xlu0 %v936
        %v938 = vpop.xlane.xlu0 %937
        %v939 = vsel %vm754, %v895, 0.0
        %940 = vadd.xlane.f32.xlu0 %v939
        %v941 = vpop.xlane.xlu0 %940
        %v942 = vsel %vm754, %v896, 0.0
        %943 = vadd.xlane.f32.xlu0 %v942
        %v944 = vpop.xlane.xlu0 %943
        %v945 = vsel %vm754, %v897, 0.0
        %946 = vadd.xlane.f32.xlu0 %v945
        %v947 = vpop.xlane.xlu0 %946
        %v948 = vsel %vm754, %v898, 0.0
        %949 = vadd.xlane.f32.xlu0 %v948
        %v950 = vpop.xlane.xlu0 %949
        %v951 = vsel %vm754, %v899, 0.0
        %952 = vadd.xlane.f32.xlu0 %v951
        %v953 = vpop.xlane.xlu0 %952
        %v954 = vsel %vm754, %v900, 0.0
        %955 = vadd.xlane.f32.xlu0 %v954
        %v956 = vpop.xlane.xlu0 %955
        %v957 = vsel %vm754, %v901, 0.0
        %958 = vadd.xlane.f32.xlu0 %v957
        %v959 = vpop.xlane.xlu0 %958
        %v960 = vsel %vm754, %v902, 0.0
        %961 = vadd.xlane.f32.xlu0 %v960
        %v962 = vpop.xlane.xlu0 %961
        %v963 = vsel %vm754, %v903, 0.0
        %964 = vadd.xlane.f32.xlu0 %v963
        %v965 = vpop.xlane.xlu0 %964
        %v966 = vsel %vm754, %v904, 0.0
        %967 = vadd.xlane.f32.xlu0 %v966
        %v968 = vpop.xlane.xlu0 %967
        %v969 = vsel %vm754, %v905, 0.0
        %970 = vadd.xlane.f32.xlu0 %v969
        %v971 = vpop.xlane.xlu0 %970
        %v972 = vsel %vm754, %v906, 0.0
        %973 = vadd.xlane.f32.xlu0 %v972
        %v974 = vpop.xlane.xlu0 %973
        %v975 = vsel %vm754, %v907, 0.0
        %976 = vadd.xlane.f32.xlu0 %v975
        %v977 = vpop.xlane.xlu0 %976
        %v978 = vsel %vm754, %v908, 0.0
        %979 = vadd.xlane.f32.xlu0 %v978
        %v980 = vpop.xlane.xlu0 %979
        %v981 = vsel %vm754, %v909, 0.0
        %982 = vadd.xlane.f32.xlu0 %v981
        %v983 = vpop.xlane.xlu0 %982
        %v984 = vsel %vm754, %v910, 0.0
        %985 = vadd.xlane.f32.xlu0 %v984
        %v986 = vpop.xlane.xlu0 %985
        %v987 = vsel %vm754, %v911, 0.0
        %988 = vadd.xlane.f32.xlu0 %v987
        %v989 = vpop.xlane.xlu0 %988
        %v990 = vsel %vm754, %v912, 0.0
        %991 = vadd.xlane.f32.xlu0 %v990
        %v992 = vpop.xlane.xlu0 %991
        %v993 = vsel %vm754, %v913, 0.0
        %994 = vadd.xlane.f32.xlu0 %v993
        %v995 = vpop.xlane.xlu0 %994
        %v996 = vsel %vm754, %v914, 0.0
        %997 = vadd.xlane.f32.xlu0 %v996
        %v998 = vpop.xlane.xlu0 %997
        %v999 = vsel %vm754, %v915, 0.0
        %1000 = vadd.xlane.f32.xlu0 %v999
        %v1001 = vpop.xlane.xlu0 %1000
        %v1002 = vsel %vm754, %v916, 0.0
        %1003 = vadd.xlane.f32.xlu0 %v1002
        %v1004 = vpop.xlane.xlu0 %1003
        %v1005 = vsel %vm754, %v917, 0.0
        %1006 = vadd.xlane.f32.xlu0 %v1005
        %v1007 = vpop.xlane.xlu0 %1006
        %v1008 = vsel %vm754, %v918, 0.0
        %1009 = vadd.xlane.f32.xlu0 %v1008
        %v1010 = vpop.xlane.xlu0 %1009
        %v1011 = vsel %vm754, %v919, 0.0
        %1012 = vadd.xlane.f32.xlu0 %v1011
        %v1013 = vpop.xlane.xlu0 %1012
        %v1014 = vsel %vm754, %v920, 0.0
        %1015 = vadd.xlane.f32.xlu0 %v1014
        %v1016 = vpop.xlane.xlu0 %1015
        %v1017 = vrsqrt.pop %v923
        %v1018 = vmul.f32 %v923, %v1017
        %vm1019 = vcmp.eq.f32.partialorder %v923, inf
        %v1020 = vsel %vm1019, %v923, %v1018
        %vm1021 = vcmp.eq.f32.partialorder %v923, 0.0
        %v1022 = vand.u32 %v923, 2147483648
        %v1023 = vsel %vm1021, %v1022, %v1020
        %v1024 = vrsqrt.pop %v926
        %v1025 = vmul.f32 %v926, %v1024
        %vm1026 = vcmp.eq.f32.partialorder %v926, inf
        %v1027 = vsel %vm1026, %v926, %v1025
        %vm1028 = vcmp.eq.f32.partialorder %v926, 0.0
        %v1029 = vand.u32 %v926, 2147483648
        %v1030 = vsel %vm1028, %v1029, %v1027
        %v1031 = vrsqrt.pop %v929
        %v1032 = vmul.f32 %v929, %v1031
        %vm1033 = vcmp.eq.f32.partialorder %v929, inf
        %v1034 = vsel %vm1033, %v929, %v1032
        %vm1035 = vcmp.eq.f32.partialorder %v929, 0.0
        %v1036 = vand.u32 %v929, 2147483648
        %v1037 = vsel %vm1035, %v1036, %v1034
        %v1038 = vrsqrt.pop %v932
        %v1039 = vmul.f32 %v932, %v1038
        %vm1040 = vcmp.eq.f32.partialorder %v932, inf
        %v1041 = vsel %vm1040, %v932, %v1039
        %vm1042 = vcmp.eq.f32.partialorder %v932, 0.0
        %v1043 = vand.u32 %v932, 2147483648
        %v1044 = vsel %vm1042, %v1043, %v1041
        %v1045 = vrsqrt.pop %v935
        %v1046 = vmul.f32 %v935, %v1045
        %vm1047 = vcmp.eq.f32.partialorder %v935, inf
        %v1048 = vsel %vm1047, %v935, %v1046
        %vm1049 = vcmp.eq.f32.partialorder %v935, 0.0
        %v1050 = vand.u32 %v935, 2147483648
        %v1051 = vsel %vm1049, %v1050, %v1048
        %v1052 = vrsqrt.pop %v938
        %v1053 = vmul.f32 %v938, %v1052
        %vm1054 = vcmp.eq.f32.partialorder %v938, inf
        %v1055 = vsel %vm1054, %v938, %v1053
        %vm1056 = vcmp.eq.f32.partialorder %v938, 0.0
        %v1057 = vand.u32 %v938, 2147483648
        %v1058 = vsel %vm1056, %v1057, %v1055
        %v1059 = vrsqrt.pop %v941
        %v1060 = vmul.f32 %v941, %v1059
        %vm1061 = vcmp.eq.f32.partialorder %v941, inf
        %v1062 = vsel %vm1061, %v941, %v1060
        %vm1063 = vcmp.eq.f32.partialorder %v941, 0.0
        %v1064 = vand.u32 %v941, 2147483648
        %v1065 = vsel %vm1063, %v1064, %v1062
        %v1066 = vrsqrt.pop %v944
        %v1067 = vmul.f32 %v944, %v1066
        %vm1068 = vcmp.eq.f32.partialorder %v944, inf
        %v1069 = vsel %vm1068, %v944, %v1067
        %vm1070 = vcmp.eq.f32.partialorder %v944, 0.0
        %v1071 = vand.u32 %v944, 2147483648
        %v1072 = vsel %vm1070, %v1071, %v1069
        %v1073 = vrsqrt.pop %v947
        %v1074 = vmul.f32 %v947, %v1073
        %vm1075 = vcmp.eq.f32.partialorder %v947, inf
        %v1076 = vsel %vm1075, %v947, %v1074
        %vm1077 = vcmp.eq.f32.partialorder %v947, 0.0
        %v1078 = vand.u32 %v947, 2147483648
        %v1079 = vsel %vm1077, %v1078, %v1076
        %v1080 = vrsqrt.pop %v950
        %v1081 = vmul.f32 %v950, %v1080
        %vm1082 = vcmp.eq.f32.partialorder %v950, inf
        %v1083 = vsel %vm1082, %v950, %v1081
        %vm1084 = vcmp.eq.f32.partialorder %v950, 0.0
        %v1085 = vand.u32 %v950, 2147483648
        %v1086 = vsel %vm1084, %v1085, %v1083
        %v1087 = vrsqrt.pop %v953
        %v1088 = vmul.f32 %v953, %v1087
        %vm1089 = vcmp.eq.f32.partialorder %v953, inf
        %v1090 = vsel %vm1089, %v953, %v1088
        %vm1091 = vcmp.eq.f32.partialorder %v953, 0.0
        %v1092 = vand.u32 %v953, 2147483648
        %v1093 = vsel %vm1091, %v1092, %v1090
        %v1094 = vrsqrt.pop %v956
        %v1095 = vmul.f32 %v956, %v1094
        %vm1096 = vcmp.eq.f32.partialorder %v956, inf
        %v1097 = vsel %vm1096, %v956, %v1095
        %vm1098 = vcmp.eq.f32.partialorder %v956, 0.0
        %v1099 = vand.u32 %v956, 2147483648
        %v1100 = vsel %vm1098, %v1099, %v1097
        %v1101 = vrsqrt.pop %v959
        %v1102 = vmul.f32 %v959, %v1101
        %vm1103 = vcmp.eq.f32.partialorder %v959, inf
        %v1104 = vsel %vm1103, %v959, %v1102
        %vm1105 = vcmp.eq.f32.partialorder %v959, 0.0
        %v1106 = vand.u32 %v959, 2147483648
        %v1107 = vsel %vm1105, %v1106, %v1104
        %v1108 = vrsqrt.pop %v962
        %v1109 = vmul.f32 %v962, %v1108
        %vm1110 = vcmp.eq.f32.partialorder %v962, inf
        %v1111 = vsel %vm1110, %v962, %v1109
        %vm1112 = vcmp.eq.f32.partialorder %v962, 0.0
        %v1113 = vand.u32 %v962, 2147483648
        %v1114 = vsel %vm1112, %v1113, %v1111
        %v1115 = vrsqrt.pop %v965
        %v1116 = vmul.f32 %v965, %v1115
        %vm1117 = vcmp.eq.f32.partialorder %v965, inf
        %v1118 = vsel %vm1117, %v965, %v1116
        %vm1119 = vcmp.eq.f32.partialorder %v965, 0.0
        %v1120 = vand.u32 %v965, 2147483648
        %v1121 = vsel %vm1119, %v1120, %v1118
        %v1122 = vrsqrt.pop %v968
        %v1123 = vmul.f32 %v968, %v1122
        %vm1124 = vcmp.eq.f32.partialorder %v968, inf
        %v1125 = vsel %vm1124, %v968, %v1123
        %vm1126 = vcmp.eq.f32.partialorder %v968, 0.0
        %v1127 = vand.u32 %v968, 2147483648
        %v1128 = vsel %vm1126, %v1127, %v1125
        %v1129 = vrsqrt.pop %v971
        %v1130 = vmul.f32 %v971, %v1129
        %vm1131 = vcmp.eq.f32.partialorder %v971, inf
        %v1132 = vsel %vm1131, %v971, %v1130
        %vm1133 = vcmp.eq.f32.partialorder %v971, 0.0
        %v1134 = vand.u32 %v971, 2147483648
        %v1135 = vsel %vm1133, %v1134, %v1132
        %v1136 = vrsqrt.pop %v974
        %v1137 = vmul.f32 %v974, %v1136
        %vm1138 = vcmp.eq.f32.partialorder %v974, inf
        %v1139 = vsel %vm1138, %v974, %v1137
        %vm1140 = vcmp.eq.f32.partialorder %v974, 0.0
        %v1141 = vand.u32 %v974, 2147483648
        %v1142 = vsel %vm1140, %v1141, %v1139
        %v1143 = vrsqrt.pop %v977
        %v1144 = vmul.f32 %v977, %v1143
        %vm1145 = vcmp.eq.f32.partialorder %v977, inf
        %v1146 = vsel %vm1145, %v977, %v1144
        %vm1147 = vcmp.eq.f32.partialorder %v977, 0.0
        %v1148 = vand.u32 %v977, 2147483648
        %v1149 = vsel %vm1147, %v1148, %v1146
        %v1150 = vrsqrt.pop %v980
        %v1151 = vmul.f32 %v980, %v1150
        %vm1152 = vcmp.eq.f32.partialorder %v980, inf
        %v1153 = vsel %vm1152, %v980, %v1151
        %vm1154 = vcmp.eq.f32.partialorder %v980, 0.0
        %v1155 = vand.u32 %v980, 2147483648
        %v1156 = vsel %vm1154, %v1155, %v1153
        %v1157 = vrsqrt.pop %v983
        %v1158 = vmul.f32 %v983, %v1157
        %vm1159 = vcmp.eq.f32.partialorder %v983, inf
        %v1160 = vsel %vm1159, %v983, %v1158
        %vm1161 = vcmp.eq.f32.partialorder %v983, 0.0
        %v1162 = vand.u32 %v983, 2147483648
        %v1163 = vsel %vm1161, %v1162, %v1160
        %v1164 = vrsqrt.pop %v986
        %v1165 = vmul.f32 %v986, %v1164
        %vm1166 = vcmp.eq.f32.partialorder %v986, inf
        %v1167 = vsel %vm1166, %v986, %v1165
        %vm1168 = vcmp.eq.f32.partialorder %v986, 0.0
        %v1169 = vand.u32 %v986, 2147483648
        %v1170 = vsel %vm1168, %v1169, %v1167
        %v1171 = vrsqrt.pop %v989
        %v1172 = vmul.f32 %v989, %v1171
        %vm1173 = vcmp.eq.f32.partialorder %v989, inf
        %v1174 = vsel %vm1173, %v989, %v1172
        %vm1175 = vcmp.eq.f32.partialorder %v989, 0.0
        %v1176 = vand.u32 %v989, 2147483648
        %v1177 = vsel %vm1175, %v1176, %v1174
        %v1178 = vrsqrt.pop %v992
        %v1179 = vmul.f32 %v992, %v1178
        %vm1180 = vcmp.eq.f32.partialorder %v992, inf
        %v1181 = vsel %vm1180, %v992, %v1179
        %vm1182 = vcmp.eq.f32.partialorder %v992, 0.0
        %v1183 = vand.u32 %v992, 2147483648
        %v1184 = vsel %vm1182, %v1183, %v1181
        %v1185 = vrsqrt.pop %v995
        %v1186 = vmul.f32 %v995, %v1185
        %vm1187 = vcmp.eq.f32.partialorder %v995, inf
        %v1188 = vsel %vm1187, %v995, %v1186
        %vm1189 = vcmp.eq.f32.partialorder %v995, 0.0
        %v1190 = vand.u32 %v995, 2147483648
        %v1191 = vsel %vm1189, %v1190, %v1188
        %v1192 = vrsqrt.pop %v998
        %v1193 = vmul.f32 %v998, %v1192
        %vm1194 = vcmp.eq.f32.partialorder %v998, inf
        %v1195 = vsel %vm1194, %v998, %v1193
        %vm1196 = vcmp.eq.f32.partialorder %v998, 0.0
        %v1197 = vand.u32 %v998, 2147483648
        %v1198 = vsel %vm1196, %v1197, %v1195
        %v1199 = vrsqrt.pop %v1001
        %v1200 = vmul.f32 %v1001, %v1199
        %vm1201 = vcmp.eq.f32.partialorder %v1001, inf
        %v1202 = vsel %vm1201, %v1001, %v1200
        %vm1203 = vcmp.eq.f32.partialorder %v1001, 0.0
        %v1204 = vand.u32 %v1001, 2147483648
        %v1205 = vsel %vm1203, %v1204, %v1202
        %v1206 = vrsqrt.pop %v1004
        %v1207 = vmul.f32 %v1004, %v1206
        %vm1208 = vcmp.eq.f32.partialorder %v1004, inf
        %v1209 = vsel %vm1208, %v1004, %v1207
        %vm1210 = vcmp.eq.f32.partialorder %v1004, 0.0
        %v1211 = vand.u32 %v1004, 2147483648
        %v1212 = vsel %vm1210, %v1211, %v1209
        %v1213 = vrsqrt.pop %v1007
        %v1214 = vmul.f32 %v1007, %v1213
        %vm1215 = vcmp.eq.f32.partialorder %v1007, inf
        %v1216 = vsel %vm1215, %v1007, %v1214
        %vm1217 = vcmp.eq.f32.partialorder %v1007, 0.0
        %v1218 = vand.u32 %v1007, 2147483648
        %v1219 = vsel %vm1217, %v1218, %v1216
        %v1220 = vrsqrt.pop %v1010
        %v1221 = vmul.f32 %v1010, %v1220
        %vm1222 = vcmp.eq.f32.partialorder %v1010, inf
        %v1223 = vsel %vm1222, %v1010, %v1221
        %vm1224 = vcmp.eq.f32.partialorder %v1010, 0.0
        %v1225 = vand.u32 %v1010, 2147483648
        %v1226 = vsel %vm1224, %v1225, %v1223
        %v1227 = vrsqrt.pop %v1013
        %v1228 = vmul.f32 %v1013, %v1227
        %vm1229 = vcmp.eq.f32.partialorder %v1013, inf
        %v1230 = vsel %vm1229, %v1013, %v1228
        %vm1231 = vcmp.eq.f32.partialorder %v1013, 0.0
        %v1232 = vand.u32 %v1013, 2147483648
        %v1233 = vsel %vm1231, %v1232, %v1230
        %v1234 = vrsqrt.pop %v1016
        %v1235 = vmul.f32 %v1016, %v1234
        %vm1236 = vcmp.eq.f32.partialorder %v1016, inf
        %v1237 = vsel %vm1236, %v1016, %v1235
        %vm1238 = vcmp.eq.f32.partialorder %v1016, 0.0
        %v1239 = vand.u32 %v1016, 2147483648
        %v1240 = vsel %vm1238, %v1239, %v1237
        %v1241 = vmul.f32 %v469, %v469
        %v1242 = vmul.f32 %v472, %v472
        %v1243 = vsel %vm754, %v1241, 0.0
        %1244 = vadd.xlane.f32.xlu0 %v1243
        %v1245 = vpop.xlane.xlu0 %1244
        %v1246 = vsel %vm754, %v1242, 0.0
        %1247 = vadd.xlane.f32.xlu0 %v1246
        %v1248 = vpop.xlane.xlu0 %1247
        %v1249 = vrsqrt.pop %v1245
        %v1250 = vmul.f32 %v1245, %v1249
        %vm1251 = vcmp.eq.f32.partialorder %v1245, inf
        %v1252 = vsel %vm1251, %v1245, %v1250
        %vm1253 = vcmp.eq.f32.partialorder %v1245, 0.0
        %v1254 = vand.u32 %v1245, 2147483648
        %v1255 = vsel %vm1253, %v1254, %v1252
        %v1256 = vrsqrt.pop %v1248
        %v1257 = vmul.f32 %v1248, %v1256
        %vm1258 = vcmp.eq.f32.partialorder %v1248, inf
        %v1259 = vsel %vm1258, %v1248, %v1257
        %vm1260 = vcmp.eq.f32.partialorder %v1248, 0.0
        %v1261 = vand.u32 %v1248, 2147483648
        %v1262 = vsel %vm1260, %v1261, %v1259
        %1264 = vrot.lane.b32.xlu0 %v541, 96
        %v1265 = vpop.permute.xlu0 %1264
        %v1298 = vlaneseq
        %v1299 = vshrl.u32 %v1298, 7
        %v1300 = vsub.s32 %v476, %v1299
        %v1301 = vrot.slane %v757, %v1300
        %v1302 = vadd.s32 %v476, 4294967288
        %v1303 = vlaneseq
        %v1304 = vshrl.u32 %v1303, 7
        %v1305 = vsub.s32 %v1302, %v1304
        %v1306 = vrot.slane %v760, %v1305
        %vm1307 = vcmask 130112
        %v1308 = vsel %vm1307, %v1306, %v1301
        %v1309 = vlaneseq
        %v1310 = vshrl.u32 %v1309, 7
        %v1311 = vsub.s32 %v476, %v1310
        %v1312 = vrot.slane %v763, %v1311
        %v1313 = vlaneseq
        %v1314 = vshrl.u32 %v1313, 7
        %v1315 = vsub.s32 %v1302, %v1314
        %v1316 = vrot.slane %v766, %v1315
        %v1317 = vsel %vm1307, %v1316, %v1312
        %v1318 = vlaneseq
        %v1319 = vshrl.u32 %v1318, 7
        %v1320 = vsub.s32 %v476, %v1319
        %v1321 = vrot.slane %v769, %v1320
        %v1322 = vlaneseq
        %v1323 = vshrl.u32 %v1322, 7
        %v1324 = vsub.s32 %v1302, %v1323
        %v1325 = vrot.slane %v772, %v1324
        %v1326 = vsel %vm1307, %v1325, %v1321
        %v1327 = vlaneseq
        %v1328 = vshrl.u32 %v1327, 7
        %v1329 = vsub.s32 %v476, %v1328
        %v1330 = vrot.slane %v775, %v1329
        %v1331 = vlaneseq
        %v1332 = vshrl.u32 %v1331, 7
        %v1333 = vsub.s32 %v1302, %v1332
        %v1334 = vrot.slane %v778, %v1333
        %v1335 = vsel %vm1307, %v1334, %v1330
        %v1336 = vlaneseq
        %v1337 = vshrl.u32 %v1336, 7
        %v1338 = vsub.s32 %v476, %v1337
        %v1339 = vrot.slane %v781, %v1338
        %v1340 = vlaneseq
        %v1341 = vshrl.u32 %v1340, 7
        %v1342 = vsub.s32 %v1302, %v1341
        %v1343 = vrot.slane %v784, %v1342
        %v1344 = vsel %vm1307, %v1343, %v1339
        %v1345 = vlaneseq
        %v1346 = vshrl.u32 %v1345, 7
        %v1347 = vsub.s32 %v476, %v1346
        %v1348 = vrot.slane %v787, %v1347
        %v1349 = vlaneseq
        %v1350 = vshrl.u32 %v1349, 7
        %v1351 = vsub.s32 %v1302, %v1350
        %v1352 = vrot.slane %v790, %v1351
        %v1353 = vsel %vm1307, %v1352, %v1348
        %v1354 = vlaneseq
        %v1355 = vshrl.u32 %v1354, 7
        %v1356 = vsub.s32 %v476, %v1355
        %v1357 = vrot.slane %v793, %v1356
        %v1358 = vlaneseq
        %v1359 = vshrl.u32 %v1358, 7
        %v1360 = vsub.s32 %v1302, %v1359
        %v1361 = vrot.slane %v796, %v1360
        %v1362 = vsel %vm1307, %v1361, %v1357
        %v1363 = vlaneseq
        %v1364 = vshrl.u32 %v1363, 7
        %v1365 = vsub.s32 %v476, %v1364
        %v1366 = vrot.slane %v799, %v1365
        %v1367 = vlaneseq
        %v1368 = vshrl.u32 %v1367, 7
        %v1369 = vsub.s32 %v1302, %v1368
        %v1370 = vrot.slane %v802, %v1369
        %v1371 = vsel %vm1307, %v1370, %v1366
        %v1372 = vlaneseq
        %v1373 = vshrl.u32 %v1372, 7
        %v1374 = vsub.s32 %v476, %v1373
        %v1375 = vrot.slane %v805, %v1374
        %v1376 = vlaneseq
        %v1377 = vshrl.u32 %v1376, 7
        %v1378 = vsub.s32 %v1302, %v1377
        %v1379 = vrot.slane %v808, %v1378
        %v1380 = vsel %vm1307, %v1379, %v1375
        %v1381 = vlaneseq
        %v1382 = vshrl.u32 %v1381, 7
        %v1383 = vsub.s32 %v476, %v1382
        %v1384 = vrot.slane %v811, %v1383
        %v1385 = vlaneseq
        %v1386 = vshrl.u32 %v1385, 7
        %v1387 = vsub.s32 %v1302, %v1386
        %v1388 = vrot.slane %v814, %v1387
        %v1389 = vsel %vm1307, %v1388, %v1384
        %v1390 = vlaneseq
        %v1391 = vshrl.u32 %v1390, 7
        %v1392 = vsub.s32 %v476, %v1391
        %v1393 = vrot.slane %v817, %v1392
        %v1394 = vlaneseq
        %v1395 = vshrl.u32 %v1394, 7
        %v1396 = vsub.s32 %v1302, %v1395
        %v1397 = vrot.slane %v820, %v1396
        %v1398 = vsel %vm1307, %v1397, %v1393
        %v1399 = vlaneseq
        %v1400 = vshrl.u32 %v1399, 7
        %v1401 = vsub.s32 %v476, %v1400
        %v1402 = vrot.slane %v823, %v1401
        %v1403 = vlaneseq
        %v1404 = vshrl.u32 %v1403, 7
        %v1405 = vsub.s32 %v1302, %v1404
        %v1406 = vrot.slane %v826, %v1405
        %v1407 = vsel %vm1307, %v1406, %v1402
        %v1408 = vlaneseq
        %v1409 = vshrl.u32 %v1408, 7
        %v1410 = vsub.s32 %v476, %v1409
        %v1411 = vrot.slane %v829, %v1410
        %v1412 = vlaneseq
        %v1413 = vshrl.u32 %v1412, 7
        %v1414 = vsub.s32 %v1302, %v1413
        %v1415 = vrot.slane %v832, %v1414
        %v1416 = vsel %vm1307, %v1415, %v1411
        %v1417 = vlaneseq
        %v1418 = vshrl.u32 %v1417, 7
        %v1419 = vsub.s32 %v476, %v1418
        %v1420 = vrot.slane %v835, %v1419
        %v1421 = vlaneseq
        %v1422 = vshrl.u32 %v1421, 7
        %v1423 = vsub.s32 %v1302, %v1422
        %v1424 = vrot.slane %v838, %v1423
        %v1425 = vsel %vm1307, %v1424, %v1420
        %v1426 = vlaneseq
        %v1427 = vshrl.u32 %v1426, 7
        %v1428 = vsub.s32 %v476, %v1427
        %v1429 = vrot.slane %v841, %v1428
        %v1430 = vlaneseq
        %v1431 = vshrl.u32 %v1430, 7
        %v1432 = vsub.s32 %v1302, %v1431
        %v1433 = vrot.slane %v844, %v1432
        %v1434 = vsel %vm1307, %v1433, %v1429
        %v1435 = vlaneseq
        %v1436 = vshrl.u32 %v1435, 7
        %v1437 = vsub.s32 %v476, %v1436
        %v1438 = vrot.slane %v847, %v1437
        %v1439 = vlaneseq
        %v1440 = vshrl.u32 %v1439, 7
        %v1441 = vsub.s32 %v1302, %v1440
        %v1442 = vrot.slane %v850, %v1441
        %v1443 = vsel %vm1307, %v1442, %v1438
        %vm1444 = vcmask 1041409
        %v1445 = vsel %vm1444, %v1317, %v1308
        %vm1446 = vcmask 1042434
        %v1447 = vsel %vm1446, %v1326, %v1445
        %vm1448 = vcmask 1043459
        %v1449 = vsel %vm1448, %v1335, %v1447
        %vm1450 = vcmask 1044484
        %v1451 = vsel %vm1450, %v1344, %v1449
        %vm1452 = vcmask 1045509
        %v1453 = vsel %vm1452, %v1353, %v1451
        %vm1454 = vcmask 1046534
        %v1455 = vsel %vm1454, %v1362, %v1453
        %vm1456 = vcmask 1047559
        %v1457 = vsel %vm1456, %v1371, %v1455
        %v1458 = vsel %vm1444, %v1389, %v1380
        %v1459 = vsel %vm1446, %v1398, %v1458
        %v1460 = vsel %vm1448, %v1407, %v1459
        %v1461 = vsel %vm1450, %v1416, %v1460
        %v1462 = vsel %vm1452, %v1425, %v1461
        %v1463 = vsel %vm1454, %v1434, %v1462
        %v1464 = vsel %vm1456, %v1443, %v1463
        %v1468 = vsel %vm754, %v541, 0
        %v1471 = vsel %vm754, %v1265, 0
        %1473 = vmatprep.subr.bf16.mxu0 0
        %1474 = vmatpush1.bf16.xpose.msra.mxu0 %v1471
        %1475 = vmatprep.subr.bf16.mxu0 0
        %1476 = vmatpush1.bf16.xpose.msra.mxu0 0
        %1477 = vmatprep.subr.bf16.mxu0 0
        %1478 = vmatpush1.bf16.xpose.msra.mxu0 0
        %1479 = vmatprep.subr.bf16.mxu0 0
        %1480 = vmatpush1.bf16.xpose.msra.mxu0 0
        %1481 = vmatprep.subr.bf16.mxu0 0
        %1482 = vmatpush1.bf16.xpose.msra.mxu0 0
        %1483 = vmatprep.subr.bf16.mxu0 0
        %1484 = vmatpush1.bf16.xpose.msra.mxu0 0
        %1485 = vmatprep.subr.bf16.mxu0 0
        %1486 = vmatpush1.bf16.xpose.msra.mxu0 0
        %1487 = vmatprep.subr.bf16.mxu0 0
        %1488 = vmatpush1.bf16.xpose.msra.mxu0 0
        %1489 = vmatprep.subr.bf16.mxu0 0
        %1490 = vmatpush1.bf16.xpose.msra.mxu0 0
        %1491 = vmatprep.subr.bf16.mxu0 0
        %1492 = vmatpush1.bf16.xpose.msra.mxu0 0
        %1493 = vmatprep.subr.bf16.mxu0 0
        %1494 = vmatpush1.bf16.xpose.msra.mxu0 0
        %1495 = vmatprep.subr.bf16.mxu0 0
        %1496 = vmatpush1.bf16.xpose.msra.mxu0 0
        %1497 = vmatprep.subr.bf16.mxu0 0
        %1498 = vmatpush1.bf16.xpose.msra.mxu0 0
        %1499 = vmatprep.subr.bf16.mxu0 0
        %1500 = vmatpush1.bf16.xpose.msra.mxu0 0
        %1501 = vmatprep.subr.bf16.mxu0 0
        %1502 = vmatpush1.bf16.xpose.msra.mxu0 0
        %1503 = vmatprep.subr.bf16.mxu0 0
        %1504 = vmatpush1.bf16.xpose.msra.mxu0 0
        %1505 = vmatprep.mubr.bf16.mxu0 0
        %1506 = vmatmul.mubr.bf16.gmra.mrb[0].mxu0 %v1468
        %v1507 = vpop.f32.mrb[0].mxu0
        %v1508 = vadd.f32 %v1457, %v1507
        %v1509 = vpop.f32.mrb[0].mxu0
        %v1510 = vpop.f32.mrb[0].mxu0
        %v1511 = vadd.f32 %v1464, %v1510
        %v1512 = vpop.f32.mrb[0].mxu0
        %1513 = vdwg.mxu0
        %v1546 = vlaneseq
        %v1547 = vshrl.u32 %v1546, 7
        %v1548 = vsub.s32 %v476, %v1547
        %v1549 = vrot.slane %v1023, %v1548
        %v1550 = vlaneseq
        %v1551 = vshrl.u32 %v1550, 7
        %v1552 = vsub.s32 %v1302, %v1551
        %v1553 = vrot.slane %v1030, %v1552
        %v1554 = vsel %vm1307, %v1553, %v1549
        %v1555 = vlaneseq
        %v1556 = vshrl.u32 %v1555, 7
        %v1557 = vsub.s32 %v476, %v1556
        %v1558 = vrot.slane %v1037, %v1557
        %v1559 = vlaneseq
        %v1560 = vshrl.u32 %v1559, 7
        %v1561 = vsub.s32 %v1302, %v1560
        %v1562 = vrot.slane %v1044, %v1561
        %v1563 = vsel %vm1307, %v1562, %v1558
        %v1564 = vlaneseq
        %v1565 = vshrl.u32 %v1564, 7
        %v1566 = vsub.s32 %v476, %v1565
        %v1567 = vrot.slane %v1051, %v1566
        %v1568 = vlaneseq
        %v1569 = vshrl.u32 %v1568, 7
        %v1570 = vsub.s32 %v1302, %v1569
        %v1571 = vrot.slane %v1058, %v1570
        %v1572 = vsel %vm1307, %v1571, %v1567
        %v1573 = vlaneseq
        %v1574 = vshrl.u32 %v1573, 7
        %v1575 = vsub.s32 %v476, %v1574
        %v1576 = vrot.slane %v1065, %v1575
        %v1577 = vlaneseq
        %v1578 = vshrl.u32 %v1577, 7
        %v1579 = vsub.s32 %v1302, %v1578
        %v1580 = vrot.slane %v1072, %v1579
        %v1581 = vsel %vm1307, %v1580, %v1576
        %v1582 = vlaneseq
        %v1583 = vshrl.u32 %v1582, 7
        %v1584 = vsub.s32 %v476, %v1583
        %v1585 = vrot.slane %v1079, %v1584
        %v1586 = vlaneseq
        %v1587 = vshrl.u32 %v1586, 7
        %v1588 = vsub.s32 %v1302, %v1587
        %v1589 = vrot.slane %v1086, %v1588
        %v1590 = vsel %vm1307, %v1589, %v1585
        %v1591 = vlaneseq
        %v1592 = vshrl.u32 %v1591, 7
        %v1593 = vsub.s32 %v476, %v1592
        %v1594 = vrot.slane %v1093, %v1593
        %v1595 = vlaneseq
        %v1596 = vshrl.u32 %v1595, 7
        %v1597 = vsub.s32 %v1302, %v1596
        %v1598 = vrot.slane %v1100, %v1597
        %v1599 = vsel %vm1307, %v1598, %v1594
        %v1600 = vlaneseq
        %v1601 = vshrl.u32 %v1600, 7
        %v1602 = vsub.s32 %v476, %v1601
        %v1603 = vrot.slane %v1107, %v1602
        %v1604 = vlaneseq
        %v1605 = vshrl.u32 %v1604, 7
        %v1606 = vsub.s32 %v1302, %v1605
        %v1607 = vrot.slane %v1114, %v1606
        %v1608 = vsel %vm1307, %v1607, %v1603
        %v1609 = vlaneseq
        %v1610 = vshrl.u32 %v1609, 7
        %v1611 = vsub.s32 %v476, %v1610
        %v1612 = vrot.slane %v1121, %v1611
        %v1613 = vlaneseq
        %v1614 = vshrl.u32 %v1613, 7
        %v1615 = vsub.s32 %v1302, %v1614
        %v1616 = vrot.slane %v1128, %v1615
        %v1617 = vsel %vm1307, %v1616, %v1612
        %v1618 = vlaneseq
        %v1619 = vshrl.u32 %v1618, 7
        %v1620 = vsub.s32 %v476, %v1619
        %v1621 = vrot.slane %v1135, %v1620
        %v1622 = vlaneseq
        %v1623 = vshrl.u32 %v1622, 7
        %v1624 = vsub.s32 %v1302, %v1623
        %v1625 = vrot.slane %v1142, %v1624
        %v1626 = vsel %vm1307, %v1625, %v1621
        %v1627 = vlaneseq
        %v1628 = vshrl.u32 %v1627, 7
        %v1629 = vsub.s32 %v476, %v1628
        %v1630 = vrot.slane %v1149, %v1629
        %v1631 = vlaneseq
        %v1632 = vshrl.u32 %v1631, 7
        %v1633 = vsub.s32 %v1302, %v1632
        %v1634 = vrot.slane %v1156, %v1633
        %v1635 = vsel %vm1307, %v1634, %v1630
        %v1636 = vlaneseq
        %v1637 = vshrl.u32 %v1636, 7
        %v1638 = vsub.s32 %v476, %v1637
        %v1639 = vrot.slane %v1163, %v1638
        %v1640 = vlaneseq
        %v1641 = vshrl.u32 %v1640, 7
        %v1642 = vsub.s32 %v1302, %v1641
        %v1643 = vrot.slane %v1170, %v1642
        %v1644 = vsel %vm1307, %v1643, %v1639
        %v1645 = vlaneseq
        %v1646 = vshrl.u32 %v1645, 7
        %v1647 = vsub.s32 %v476, %v1646
        %v1648 = vrot.slane %v1177, %v1647
        %v1649 = vlaneseq
        %v1650 = vshrl.u32 %v1649, 7
        %v1651 = vsub.s32 %v1302, %v1650
        %v1652 = vrot.slane %v1184, %v1651
        %v1653 = vsel %vm1307, %v1652, %v1648
        %v1654 = vlaneseq
        %v1655 = vshrl.u32 %v1654, 7
        %v1656 = vsub.s32 %v476, %v1655
        %v1657 = vrot.slane %v1191, %v1656
        %v1658 = vlaneseq
        %v1659 = vshrl.u32 %v1658, 7
        %v1660 = vsub.s32 %v1302, %v1659
        %v1661 = vrot.slane %v1198, %v1660
        %v1662 = vsel %vm1307, %v1661, %v1657
        %v1663 = vlaneseq
        %v1664 = vshrl.u32 %v1663, 7
        %v1665 = vsub.s32 %v476, %v1664
        %v1666 = vrot.slane %v1205, %v1665
        %v1667 = vlaneseq
        %v1668 = vshrl.u32 %v1667, 7
        %v1669 = vsub.s32 %v1302, %v1668
        %v1670 = vrot.slane %v1212, %v1669
        %v1671 = vsel %vm1307, %v1670, %v1666
        %v1672 = vlaneseq
        %v1673 = vshrl.u32 %v1672, 7
        %v1674 = vsub.s32 %v476, %v1673
        %v1675 = vrot.slane %v1219, %v1674
        %v1676 = vlaneseq
        %v1677 = vshrl.u32 %v1676, 7
        %v1678 = vsub.s32 %v1302, %v1677
        %v1679 = vrot.slane %v1226, %v1678
        %v1680 = vsel %vm1307, %v1679, %v1675
        %v1681 = vlaneseq
        %v1682 = vshrl.u32 %v1681, 7
        %v1683 = vsub.s32 %v476, %v1682
        %v1684 = vrot.slane %v1233, %v1683
        %v1685 = vlaneseq
        %v1686 = vshrl.u32 %v1685, 7
        %v1687 = vsub.s32 %v1302, %v1686
        %v1688 = vrot.slane %v1240, %v1687
        %v1689 = vsel %vm1307, %v1688, %v1684
        %v1690 = vsel %vm1444, %v1563, %v1554
        %v1691 = vsel %vm1446, %v1572, %v1690
        %v1692 = vsel %vm1448, %v1581, %v1691
        %v1693 = vsel %vm1450, %v1590, %v1692
        %v1694 = vsel %vm1452, %v1599, %v1693
        %v1695 = vsel %vm1454, %v1608, %v1694
        %v1696 = vsel %vm1456, %v1617, %v1695
        %v1697 = vsel %vm1444, %v1635, %v1626
        %v1698 = vsel %vm1446, %v1644, %v1697
        %v1699 = vsel %vm1448, %v1653, %v1698
        %v1700 = vsel %vm1450, %v1662, %v1699
        %v1701 = vsel %vm1452, %v1671, %v1700
        %v1702 = vsel %vm1454, %v1680, %v1701
        %v1703 = vsel %vm1456, %v1689, %v1702
        %v1706 = vmul.f32 %v1255, %v1696
        %v1707 = vmul.f32 %v1262, %v1703
        %v1708 = vadd.f32 %v1706, 1e-06
        %v1709 = vadd.f32 %v1707, 1e-06
        %v1710 = vrcp.pop %v1708
        %v1711 = vmul.f32 %v1508, %v1710
        %v1712 = vrcp.pop %v1709
        %v1713 = vmul.f32 %v1511, %v1712
        %v1714 = vsel %vm361, 0.0, %v1711
        %v1715 = vsel %vm362, 0.0, %v1713
        %v1716 = vsel %vm754, %v1714, -inf
        %1717 = vmax.xlane.f32.xlu0 %v1716
        %v1718 = vpop.xlane.xlu0 %1717
        %v1719 = vsel %vm754, %v1715, -inf
        %1720 = vmax.xlane.f32.xlu0 %v1719
        %v1721 = vpop.xlane.xlu0 %1720
        %vm1722 = vcmp.eq.f32.partialorder %v1714, %v1718
        %vm1723 = vcmp.eq.f32.partialorder %v1715, %v1721
        %v1724 = vsel %vm1722, %v476, 16
        %v1725 = vsel %vm1723, %v476, 16
        %v1726 = vsel %vm754, %v1724, 2147483647
        %v1727 = vand.u32 %v1726, 65535
        %v1728 = vshra.s32 %v1726, 16
        %v1729 = vcvt.s32.f32 %v1727
        %v1730 = vcvt.s32.f32 %v1728
        %1731 = vmin.xlane.f32.xlu0 %v1730
        %v1732 = vpop.xlane.xlu0 %1731
        %vm1733 = vcmp.eq.f32.partialorder %v1730, %v1732
        %v1734 = vsel %vm1733, %v1729, inf
        %1735 = vmin.xlane.f32.xlu0 %v1734
        %v1736 = vpop.xlane.xlu0 %1735
        %v1737 = vcvt.f32.s32 %v1736
        %v1738 = vcvt.f32.s32 %v1732
        %v1739 = vshll.u32 %v1738, 16
        %v1740 = vadd.s32 %v1739, %v1737
        %v1741 = vsel %vm754, %v1725, 2147483647
        %v1742 = vand.u32 %v1741, 65535
        %v1743 = vshra.s32 %v1741, 16
        %v1744 = vcvt.s32.f32 %v1742
        %v1745 = vcvt.s32.f32 %v1743
        %1746 = vmin.xlane.f32.xlu0 %v1745
        %v1747 = vpop.xlane.xlu0 %1746
        %vm1748 = vcmp.eq.f32.partialorder %v1745, %v1747
        %v1749 = vsel %vm1748, %v1744, inf
        %1750 = vmin.xlane.f32.xlu0 %v1749
        %v1751 = vpop.xlane.xlu0 %1750
        %v1752 = vcvt.f32.s32 %v1751
        %v1753 = vcvt.f32.s32 %v1747
        %v1754 = vshll.u32 %v1753, 16
        %v1755 = vadd.s32 %v1754, %v1752
        %vm1756 = vcmp.eq.s32.totalorder %v476, %v1740
        %vm1757 = vcmp.eq.s32.totalorder %v476, %v1755
        %v1758 = vsel %vm1756, -inf, %v1714
        %v1759 = vsel %vm1757, -inf, %v1715
        %v1760 = vsel %vm1756, 1.0, 0.0
        %v1761 = vsel %vm1757, 1.0, 0.0
        %v1762 = vsel %vm754, %v1758, -inf
        %1763 = vmax.xlane.f32.xlu0 %v1762
        %v1764 = vpop.xlane.xlu0 %1763
        %v1765 = vsel %vm754, %v1759, -inf
        %1766 = vmax.xlane.f32.xlu0 %v1765
        %v1767 = vpop.xlane.xlu0 %1766
        %vm1768 = vcmp.eq.f32.partialorder %v1758, %v1764
        %vm1769 = vcmp.eq.f32.partialorder %v1759, %v1767
        %v1770 = vsel %vm1768, %v476, 16
        %v1771 = vsel %vm1769, %v476, 16
        %v1772 = vsel %vm754, %v1770, 2147483647
        %v1773 = vand.u32 %v1772, 65535
        %v1774 = vshra.s32 %v1772, 16
        %v1775 = vcvt.s32.f32 %v1773
        %v1776 = vcvt.s32.f32 %v1774
        %1777 = vmin.xlane.f32.xlu0 %v1776
        %v1778 = vpop.xlane.xlu0 %1777
        %vm1779 = vcmp.eq.f32.partialorder %v1776, %v1778
        %v1780 = vsel %vm1779, %v1775, inf
        %1781 = vmin.xlane.f32.xlu0 %v1780
        %v1782 = vpop.xlane.xlu0 %1781
        %v1783 = vcvt.f32.s32 %v1782
        %v1784 = vcvt.f32.s32 %v1778
        %v1785 = vshll.u32 %v1784, 16
        %v1786 = vadd.s32 %v1785, %v1783
        %v1787 = vsel %vm754, %v1771, 2147483647
        %v1788 = vand.u32 %v1787, 65535
        %v1789 = vshra.s32 %v1787, 16
        %v1790 = vcvt.s32.f32 %v1788
        %v1791 = vcvt.s32.f32 %v1789
        %1792 = vmin.xlane.f32.xlu0 %v1791
        %v1793 = vpop.xlane.xlu0 %1792
        %vm1794 = vcmp.eq.f32.partialorder %v1791, %v1793
        %v1795 = vsel %vm1794, %v1790, inf
        %1796 = vmin.xlane.f32.xlu0 %v1795
        %v1797 = vpop.xlane.xlu0 %1796
        %v1798 = vcvt.f32.s32 %v1797
        %v1799 = vcvt.f32.s32 %v1793
        %v1800 = vshll.u32 %v1799, 16
        %v1801 = vadd.s32 %v1800, %v1798
        %vm1802 = vcmp.eq.s32.totalorder %v476, %v1786
        %vm1803 = vcmp.eq.s32.totalorder %v476, %v1801
        %v1804 = vsel %vm1802, -inf, %v1758
        %v1805 = vsel %vm1803, -inf, %v1759
        %v1806 = vsel %vm1802, 1.0, %v1760
        %v1807 = vsel %vm1803, 1.0, %v1761
        %v1808 = vsel %vm754, %v1804, -inf
        %1809 = vmax.xlane.f32.xlu0 %v1808
        %v1810 = vpop.xlane.xlu0 %1809
        %v1811 = vsel %vm754, %v1805, -inf
        %1812 = vmax.xlane.f32.xlu0 %v1811
        %v1813 = vpop.xlane.xlu0 %1812
        %vm1814 = vcmp.eq.f32.partialorder %v1804, %v1810
        %vm1815 = vcmp.eq.f32.partialorder %v1805, %v1813
        %v1816 = vsel %vm1814, %v476, 16
        %v1817 = vsel %vm1815, %v476, 16
        %v1818 = vsel %vm754, %v1816, 2147483647
        %v1819 = vand.u32 %v1818, 65535
        %v1820 = vshra.s32 %v1818, 16
        %v1821 = vcvt.s32.f32 %v1819
        %v1822 = vcvt.s32.f32 %v1820
        %1823 = vmin.xlane.f32.xlu0 %v1822
        %v1824 = vpop.xlane.xlu0 %1823
        %vm1825 = vcmp.eq.f32.partialorder %v1822, %v1824
        %v1826 = vsel %vm1825, %v1821, inf
        %1827 = vmin.xlane.f32.xlu0 %v1826
        %v1828 = vpop.xlane.xlu0 %1827
        %v1829 = vcvt.f32.s32 %v1828
        %v1830 = vcvt.f32.s32 %v1824
        %v1831 = vshll.u32 %v1830, 16
        %v1832 = vadd.s32 %v1831, %v1829
        %v1833 = vsel %vm754, %v1817, 2147483647
        %v1834 = vand.u32 %v1833, 65535
        %v1835 = vshra.s32 %v1833, 16
        %v1836 = vcvt.s32.f32 %v1834
        %v1837 = vcvt.s32.f32 %v1835
        %1838 = vmin.xlane.f32.xlu0 %v1837
        %v1839 = vpop.xlane.xlu0 %1838
        %vm1840 = vcmp.eq.f32.partialorder %v1837, %v1839
        %v1841 = vsel %vm1840, %v1836, inf
        %1842 = vmin.xlane.f32.xlu0 %v1841
        %v1843 = vpop.xlane.xlu0 %1842
        %v1844 = vcvt.f32.s32 %v1843
        %v1845 = vcvt.f32.s32 %v1839
        %v1846 = vshll.u32 %v1845, 16
        %v1847 = vadd.s32 %v1846, %v1844
        %vm1848 = vcmp.eq.s32.totalorder %v476, %v1832
        %vm1849 = vcmp.eq.s32.totalorder %v476, %v1847
        %v1850 = vsel %vm1848, 1.0, %v1806
        %v1851 = vsel %vm1849, 1.0, %v1807
        %1852 = vxpose.xlu0.b32.start [1/16] %v1850, 128
        %1853 = vxpose.xlu0.b32.cont [2/16] %v1851, 128
        %1854 = vxpose.xlu0.b32.cont [3/16] 0.0, 128
        %1855 = vxpose.xlu0.b32.cont [4/16] 0.0, 128
        %1856 = vxpose.xlu0.b32.cont [5/16] 0.0, 128
        %1857 = vxpose.xlu0.b32.cont [6/16] 0.0, 128
        %1858 = vxpose.xlu0.b32.cont [7/16] 0.0, 128
        %1859 = vxpose.xlu0.b32.cont [8/16] 0.0, 128
        %1860 = vxpose.xlu0.b32.cont [9/16] 0.0, 128
        %1861 = vxpose.xlu0.b32.cont [10/16] 0.0, 128
        %1862 = vxpose.xlu0.b32.cont [11/16] 0.0, 128
        %1863 = vxpose.xlu0.b32.cont [12/16] 0.0, 128
        %1864 = vxpose.xlu0.b32.cont [13/16] 0.0, 128
        %1865 = vxpose.xlu0.b32.cont [14/16] 0.0, 128
        %1866 = vxpose.xlu0.b32.cont [15/16] 0.0, 128
        %1867 = vxpose.xlu0.b32.end [16/16] 0.0, 128
        %v1868 = vpop.trf.xlu0
        %v1869 = vpop.trf.xlu0
        %v1870 = vpop.trf.xlu0
        %v1871 = vpop.trf.xlu0
        %v1872 = vpop.trf.xlu0
        %v1873 = vpop.trf.xlu0
        %v1874 = vpop.trf.xlu0
        %v1875 = vpop.trf.xlu0
        %v1876 = vpop.trf.xlu0
        %v1877 = vpop.trf.xlu0
        %v1878 = vpop.trf.xlu0
        %v1879 = vpop.trf.xlu0
        %v1880 = vpop.trf.xlu0
        %v1881 = vpop.trf.xlu0
        %v1882 = vpop.trf.xlu0
        %v1883 = vpop.trf.xlu0
        %v1884 = vmax.f32 %v1850, %v1868
        %v1885 = vmax.f32 %v1851, %v1869
        %v1886 = vmul.f32 %v1714, %v1884
        %v1887 = vmul.f32 %v1715, %v1885
        %v1888 = vpack.c.bf16 %v1887, %v1886
        %1889 = vrot.lane.b32.xlu0 %v541, 64
        %v1890 = vpop.permute.xlu0 %1889
        %v1893 = vsel %vm754, %v1888, 0
        %1895 = vmatprep.subr.bf16.mxu0 0
        %1896 = vmatpush1.bf16.msra.mxu0 %v1890
        %1897 = vmatprep.subr.bf16.mxu0 0
        %1898 = vmatpush1.bf16.msra.mxu0 0
        %1899 = vmatprep.subr.bf16.mxu0 0
        %1900 = vmatpush1.bf16.msra.mxu0 0
        %1901 = vmatprep.subr.bf16.mxu0 0
        %1902 = vmatpush1.bf16.msra.mxu0 0
        %1903 = vmatprep.subr.bf16.mxu0 0
        %1904 = vmatpush1.bf16.msra.mxu0 0
        %1905 = vmatprep.subr.bf16.mxu0 0
        %1906 = vmatpush1.bf16.msra.mxu0 0
        %1907 = vmatprep.subr.bf16.mxu0 0
        %1908 = vmatpush1.bf16.msra.mxu0 0
        %1909 = vmatprep.subr.bf16.mxu0 0
        %1910 = vmatpush1.bf16.msra.mxu0 0
        %1911 = vmatprep.subr.bf16.mxu0 0
        %1912 = vmatpush1.bf16.msra.mxu0 0
        %1913 = vmatprep.subr.bf16.mxu0 0
        %1914 = vmatpush1.bf16.msra.mxu0 0
        %1915 = vmatprep.subr.bf16.mxu0 0
        %1916 = vmatpush1.bf16.msra.mxu0 0
        %1917 = vmatprep.subr.bf16.mxu0 0
        %1918 = vmatpush1.bf16.msra.mxu0 0
        %1919 = vmatprep.subr.bf16.mxu0 0
        %1920 = vmatpush1.bf16.msra.mxu0 0
        %1921 = vmatprep.subr.bf16.mxu0 0
        %1922 = vmatpush1.bf16.msra.mxu0 0
        %1923 = vmatprep.subr.bf16.mxu0 0
        %1924 = vmatpush1.bf16.msra.mxu0 0
        %1925 = vmatprep.subr.bf16.mxu0 0
        %1926 = vmatpush1.bf16.msra.mxu0 0
        %1927 = vmatprep.mubr.bf16.mxu0 0
        %1928 = vmatmul.mubr.bf16.gmra.mrb[0].mxu0 %v1893
        %v1929 = vpop.f32.mrb[0].mxu0
        %v1930 = vadd.f32 0.0, %v1929
        %v1931 = vpop.f32.mrb[0].mxu0
        %v1932 = vpop.f32.mrb[0].mxu0
        %v1933 = vadd.f32 0.0, %v1932
        %v1934 = vpop.f32.mrb[0].mxu0
        %1935 = vdwg.mxu0
        %v1937 = vcombine.high %v1888, %v1888
        %v1939 = vunpack.c.l.s4 1966171168
        %v1940 = vunpack.c.0.s8 %v1939
        %v1941 = vlaneseq
        %v1942 = vshrl.u32 %v1941, 7
        %v1943 = vsub.s32 %v1940, %v1942
        %v1944 = vrot.slane %v1888, %v1943
        %v1946 = vunpack.c.l.s4 1966171168
        %v1947 = vunpack.c.0.s8 %v1946
        %v1948 = vlaneseq
        %v1949 = vshrl.u32 %v1948, 7
        %v1950 = vsub.s32 %v1947, %v1949
        %v1951 = vrot.slane %v1937, %v1950
        %v1952 = vcombine.high %v1944, %v1944
        %v1953 = vcombine.high %v1951, %v1951
        %v1955 = vunpack.c.l.s4 1966171168
        %v1956 = vunpack.c.0.s8 %v1955
        %v1957 = vlaneseq
        %v1958 = vshrl.u32 %v1957, 7
        %v1959 = vsub.s32 %v1956, %v1958
        %v1960 = vrot.slane %v1944, %v1959
        %v1962 = vunpack.c.l.s4 1966171168
        %v1963 = vunpack.c.0.s8 %v1962
        %v1964 = vlaneseq
        %v1965 = vshrl.u32 %v1964, 7
        %v1966 = vsub.s32 %v1963, %v1965
        %v1967 = vrot.slane %v1951, %v1966
        %v1969 = vunpack.c.l.s4 1966171168
        %v1970 = vunpack.c.0.s8 %v1969
        %v1971 = vlaneseq
        %v1972 = vshrl.u32 %v1971, 7
        %v1973 = vsub.s32 %v1970, %v1972
        %v1974 = vrot.slane %v1952, %v1973
        %v1976 = vunpack.c.l.s4 1966171168
        %v1977 = vunpack.c.0.s8 %v1976
        %v1978 = vlaneseq
        %v1979 = vshrl.u32 %v1978, 7
        %v1980 = vsub.s32 %v1977, %v1979
        %v1981 = vrot.slane %v1953, %v1980
        %v1982 = vcombine.high %v1960, %v1960
        %v1983 = vcombine.high %v1967, %v1967
        %v1984 = vcombine.high %v1974, %v1974
        %v1985 = vcombine.high %v1981, %v1981
        %v1986 = vunpack.i.l.s16 %v1960
        %v1987 = vunpack.i.h.s16 %v1960
        %v1988 = vunpack.i.l.s16 %v1974
        %v1989 = vunpack.i.h.s16 %v1974
        %v1990 = vunpack.i.l.s16 %v1982
        %v1991 = vunpack.i.h.s16 %v1982
        %v1992 = vunpack.i.l.s16 %v1984
        %v1993 = vunpack.i.h.s16 %v1984
        %v1994 = vunpack.i.l.s16 %v1967
        %v1995 = vunpack.i.h.s16 %v1967
        %v1996 = vunpack.i.l.s16 %v1981
        %v1997 = vunpack.i.h.s16 %v1981
        %v1998 = vunpack.i.l.s16 %v1983
        %v1999 = vunpack.i.h.s16 %v1983
        %v2000 = vunpack.i.l.s16 %v1985
        %v2001 = vunpack.i.h.s16 %v1985
        %v2002 = vpack.i.b16 %v1986, %v1986
        %v2003 = vlaneseq
        %v2004 = vshrl.u32 %v2003, 7
        %v2005 = vsub.s32 0, %v2004
        %v2006 = vrot.slane %v2002, %v2005
        %v2009 = vunpack.c.l.b16 %v477
        %v2010 = vunpack.c.l.b16 %v478
        %v2011 = vpack.c.b16 %v2010, %v2009
        %v2014 = vsel %vm754, %v2006, 0
        %2016 = vmatprep.subr.bf16.mxu0 0
        %2017 = vmatpush1.bf16.msra.mxu0 %v2011
        %2018 = vmatprep.subr.bf16.mxu0 0
        %2019 = vmatpush1.bf16.msra.mxu0 0
        %2020 = vmatprep.subr.bf16.mxu0 0
        %2021 = vmatpush1.bf16.msra.mxu0 0
        %2022 = vmatprep.subr.bf16.mxu0 0
        %2023 = vmatpush1.bf16.msra.mxu0 0
        %2024 = vmatprep.subr.bf16.mxu0 0
        %2025 = vmatpush1.bf16.msra.mxu0 0
        %2026 = vmatprep.subr.bf16.mxu0 0
        %2027 = vmatpush1.bf16.msra.mxu0 0
        %2028 = vmatprep.subr.bf16.mxu0 0
        %2029 = vmatpush1.bf16.msra.mxu0 0
        %2030 = vmatprep.subr.bf16.mxu0 0
        %2031 = vmatpush1.bf16.msra.mxu0 0
        %2032 = vmatprep.subr.bf16.mxu0 0
        %2033 = vmatpush1.bf16.msra.mxu0 0
        %2034 = vmatprep.subr.bf16.mxu0 0
        %2035 = vmatpush1.bf16.msra.mxu0 0
        %2036 = vmatprep.subr.bf16.mxu0 0
        %2037 = vmatpush1.bf16.msra.mxu0 0
        %2038 = vmatprep.subr.bf16.mxu0 0
        %2039 = vmatpush1.bf16.msra.mxu0 0
        %2040 = vmatprep.subr.bf16.mxu0 0
        %2041 = vmatpush1.bf16.msra.mxu0 0
        %2042 = vmatprep.subr.bf16.mxu0 0
        %2043 = vmatpush1.bf16.msra.mxu0 0
        %2044 = vmatprep.subr.bf16.mxu0 0
        %2045 = vmatpush1.bf16.msra.mxu0 0
        %2046 = vmatprep.subr.bf16.mxu0 0
        %2047 = vmatpush1.bf16.msra.mxu0 0
        %2048 = vmatprep.mubr.bf16.mxu0 0
        %2049 = vmatmul.mubr.bf16.gmra.mrb[0].mxu0 %v2014
        %v2050 = vpop.f32.mrb[0].mxu0
        %v2051 = vadd.f32 0.0, %v2050
        %v2052 = vpop.f32.mrb[0].mxu0
        %v2053 = vpop.f32.mrb[0].mxu0
        %v2054 = vpop.f32.mrb[0].mxu0
        %2055 = vdwg.mxu0
        %v2056 = vpack.i.b16 %v1987, %v1987
        %v2057 = vlaneseq
        %v2058 = vshrl.u32 %v2057, 7
        %v2059 = vsub.s32 0, %v2058
        %v2060 = vrot.slane %v2056, %v2059
        %v2063 = vunpack.c.l.b16 %v479
        %v2064 = vunpack.c.l.b16 %v480
        %v2065 = vpack.c.b16 %v2064, %v2063
        %v2068 = vsel %vm754, %v2060, 0
        %2070 = vmatprep.subr.bf16.mxu0 0
        %2071 = vmatpush1.bf16.msra.mxu0 %v2065
        %2072 = vmatprep.subr.bf16.mxu0 0
        %2073 = vmatpush1.bf16.msra.mxu0 0
        %2074 = vmatprep.subr.bf16.mxu0 0
        %2075 = vmatpush1.bf16.msra.mxu0 0
        %2076 = vmatprep.subr.bf16.mxu0 0
        %2077 = vmatpush1.bf16.msra.mxu0 0
        %2078 = vmatprep.subr.bf16.mxu0 0
        %2079 = vmatpush1.bf16.msra.mxu0 0
        %2080 = vmatprep.subr.bf16.mxu0 0
        %2081 = vmatpush1.bf16.msra.mxu0 0
        %2082 = vmatprep.subr.bf16.mxu0 0
        %2083 = vmatpush1.bf16.msra.mxu0 0
        %2084 = vmatprep.subr.bf16.mxu0 0
        %2085 = vmatpush1.bf16.msra.mxu0 0
        %2086 = vmatprep.subr.bf16.mxu0 0
        %2087 = vmatpush1.bf16.msra.mxu0 0
        %2088 = vmatprep.subr.bf16.mxu0 0
        %2089 = vmatpush1.bf16.msra.mxu0 0
        %2090 = vmatprep.subr.bf16.mxu0 0
        %2091 = vmatpush1.bf16.msra.mxu0 0
        %2092 = vmatprep.subr.bf16.mxu0 0
        %2093 = vmatpush1.bf16.msra.mxu0 0
        %2094 = vmatprep.subr.bf16.mxu0 0
        %2095 = vmatpush1.bf16.msra.mxu0 0
        %2096 = vmatprep.subr.bf16.mxu0 0
        %2097 = vmatpush1.bf16.msra.mxu0 0
        %2098 = vmatprep.subr.bf16.mxu0 0
        %2099 = vmatpush1.bf16.msra.mxu0 0
        %2100 = vmatprep.subr.bf16.mxu0 0
        %2101 = vmatpush1.bf16.msra.mxu0 0
        %2102 = vmatprep.mubr.bf16.mxu0 0
        %2103 = vmatmul.mubr.bf16.gmra.mrb[0].mxu0 %v2068
        %v2104 = vpop.f32.mrb[0].mxu0
        %v2105 = vadd.f32 0.0, %v2104
        %v2106 = vpop.f32.mrb[0].mxu0
        %v2107 = vpop.f32.mrb[0].mxu0
        %v2108 = vpop.f32.mrb[0].mxu0
        %2109 = vdwg.mxu0
        %v2110 = vpack.i.b16 %v1988, %v1988
        %v2111 = vlaneseq
        %v2112 = vshrl.u32 %v2111, 7
        %v2113 = vsub.s32 0, %v2112
        %v2114 = vrot.slane %v2110, %v2113
        %v2117 = vunpack.c.l.b16 %v481
        %v2118 = vunpack.c.l.b16 %v482
        %v2119 = vpack.c.b16 %v2118, %v2117
        %v2122 = vsel %vm754, %v2114, 0
        %2124 = vmatprep.subr.bf16.mxu0 0
        %2125 = vmatpush1.bf16.msra.mxu0 %v2119
        %2126 = vmatprep.subr.bf16.mxu0 0
        %2127 = vmatpush1.bf16.msra.mxu0 0
        %2128 = vmatprep.subr.bf16.mxu0 0
        %2129 = vmatpush1.bf16.msra.mxu0 0
        %2130 = vmatprep.subr.bf16.mxu0 0
        %2131 = vmatpush1.bf16.msra.mxu0 0
        %2132 = vmatprep.subr.bf16.mxu0 0
        %2133 = vmatpush1.bf16.msra.mxu0 0
        %2134 = vmatprep.subr.bf16.mxu0 0
        %2135 = vmatpush1.bf16.msra.mxu0 0
        %2136 = vmatprep.subr.bf16.mxu0 0
        %2137 = vmatpush1.bf16.msra.mxu0 0
        %2138 = vmatprep.subr.bf16.mxu0 0
        %2139 = vmatpush1.bf16.msra.mxu0 0
        %2140 = vmatprep.subr.bf16.mxu0 0
        %2141 = vmatpush1.bf16.msra.mxu0 0
        %2142 = vmatprep.subr.bf16.mxu0 0
        %2143 = vmatpush1.bf16.msra.mxu0 0
        %2144 = vmatprep.subr.bf16.mxu0 0
        %2145 = vmatpush1.bf16.msra.mxu0 0
        %2146 = vmatprep.subr.bf16.mxu0 0
        %2147 = vmatpush1.bf16.msra.mxu0 0
        %2148 = vmatprep.subr.bf16.mxu0 0
        %2149 = vmatpush1.bf16.msra.mxu0 0
        %2150 = vmatprep.subr.bf16.mxu0 0
        %2151 = vmatpush1.bf16.msra.mxu0 0
        %2152 = vmatprep.subr.bf16.mxu0 0
        %2153 = vmatpush1.bf16.msra.mxu0 0
        %2154 = vmatprep.subr.bf16.mxu0 0
        %2155 = vmatpush1.bf16.msra.mxu0 0
        %2156 = vmatprep.mubr.bf16.mxu0 0
        %2157 = vmatmul.mubr.bf16.gmra.mrb[0].mxu0 %v2122
        %v2158 = vpop.f32.mrb[0].mxu0
        %v2159 = vadd.f32 0.0, %v2158
        %v2160 = vpop.f32.mrb[0].mxu0
        %v2161 = vpop.f32.mrb[0].mxu0
        %v2162 = vpop.f32.mrb[0].mxu0
        %2163 = vdwg.mxu0
        %v2164 = vpack.i.b16 %v1989, %v1989
        %v2165 = vlaneseq
        %v2166 = vshrl.u32 %v2165, 7
        %v2167 = vsub.s32 0, %v2166
        %v2168 = vrot.slane %v2164, %v2167
        %v2171 = vunpack.c.l.b16 %v483
        %v2172 = vunpack.c.l.b16 %v484
        %v2173 = vpack.c.b16 %v2172, %v2171
        %v2176 = vsel %vm754, %v2168, 0
        %2178 = vmatprep.subr.bf16.mxu0 0
        %2179 = vmatpush1.bf16.msra.mxu0 %v2173
        %2180 = vmatprep.subr.bf16.mxu0 0
        %2181 = vmatpush1.bf16.msra.mxu0 0
        %2182 = vmatprep.subr.bf16.mxu0 0
        %2183 = vmatpush1.bf16.msra.mxu0 0
        %2184 = vmatprep.subr.bf16.mxu0 0
        %2185 = vmatpush1.bf16.msra.mxu0 0
        %2186 = vmatprep.subr.bf16.mxu0 0
        %2187 = vmatpush1.bf16.msra.mxu0 0
        %2188 = vmatprep.subr.bf16.mxu0 0
        %2189 = vmatpush1.bf16.msra.mxu0 0
        %2190 = vmatprep.subr.bf16.mxu0 0
        %2191 = vmatpush1.bf16.msra.mxu0 0
        %2192 = vmatprep.subr.bf16.mxu0 0
        %2193 = vmatpush1.bf16.msra.mxu0 0
        %2194 = vmatprep.subr.bf16.mxu0 0
        %2195 = vmatpush1.bf16.msra.mxu0 0
        %2196 = vmatprep.subr.bf16.mxu0 0
        %2197 = vmatpush1.bf16.msra.mxu0 0
        %2198 = vmatprep.subr.bf16.mxu0 0
        %2199 = vmatpush1.bf16.msra.mxu0 0
        %2200 = vmatprep.subr.bf16.mxu0 0
        %2201 = vmatpush1.bf16.msra.mxu0 0
        %2202 = vmatprep.subr.bf16.mxu0 0
        %2203 = vmatpush1.bf16.msra.mxu0 0
        %2204 = vmatprep.subr.bf16.mxu0 0
        %2205 = vmatpush1.bf16.msra.mxu0 0
        %2206 = vmatprep.subr.bf16.mxu0 0
        %2207 = vmatpush1.bf16.msra.mxu0 0
        %2208 = vmatprep.subr.bf16.mxu0 0
        %2209 = vmatpush1.bf16.msra.mxu0 0
        %2210 = vmatprep.mubr.bf16.mxu0 0
        %2211 = vmatmul.mubr.bf16.gmra.mrb[0].mxu0 %v2176
        %v2212 = vpop.f32.mrb[0].mxu0
        %v2213 = vadd.f32 0.0, %v2212
        %v2214 = vpop.f32.mrb[0].mxu0
        %v2215 = vpop.f32.mrb[0].mxu0
        %v2216 = vpop.f32.mrb[0].mxu0
        %2217 = vdwg.mxu0
        %v2218 = vpack.i.b16 %v1990, %v1990
        %v2219 = vlaneseq
        %v2220 = vshrl.u32 %v2219, 7
        %v2221 = vsub.s32 0, %v2220
        %v2222 = vrot.slane %v2218, %v2221
        %v2225 = vunpack.c.l.b16 %v485
        %v2226 = vunpack.c.l.b16 %v486
        %v2227 = vpack.c.b16 %v2226, %v2225
        %v2230 = vsel %vm754, %v2222, 0
        %2232 = vmatprep.subr.bf16.mxu0 0
        %2233 = vmatpush1.bf16.msra.mxu0 %v2227
        %2234 = vmatprep.subr.bf16.mxu0 0
        %2235 = vmatpush1.bf16.msra.mxu0 0
        %2236 = vmatprep.subr.bf16.mxu0 0
        %2237 = vmatpush1.bf16.msra.mxu0 0
        %2238 = vmatprep.subr.bf16.mxu0 0
        %2239 = vmatpush1.bf16.msra.mxu0 0
        %2240 = vmatprep.subr.bf16.mxu0 0
        %2241 = vmatpush1.bf16.msra.mxu0 0
        %2242 = vmatprep.subr.bf16.mxu0 0
        %2243 = vmatpush1.bf16.msra.mxu0 0
        %2244 = vmatprep.subr.bf16.mxu0 0
        %2245 = vmatpush1.bf16.msra.mxu0 0
        %2246 = vmatprep.subr.bf16.mxu0 0
        %2247 = vmatpush1.bf16.msra.mxu0 0
        %2248 = vmatprep.subr.bf16.mxu0 0
        %2249 = vmatpush1.bf16.msra.mxu0 0
        %2250 = vmatprep.subr.bf16.mxu0 0
        %2251 = vmatpush1.bf16.msra.mxu0 0
        %2252 = vmatprep.subr.bf16.mxu0 0
        %2253 = vmatpush1.bf16.msra.mxu0 0
        %2254 = vmatprep.subr.bf16.mxu0 0
        %2255 = vmatpush1.bf16.msra.mxu0 0
        %2256 = vmatprep.subr.bf16.mxu0 0
        %2257 = vmatpush1.bf16.msra.mxu0 0
        %2258 = vmatprep.subr.bf16.mxu0 0
        %2259 = vmatpush1.bf16.msra.mxu0 0
        %2260 = vmatprep.subr.bf16.mxu0 0
        %2261 = vmatpush1.bf16.msra.mxu0 0
        %2262 = vmatprep.subr.bf16.mxu0 0
        %2263 = vmatpush1.bf16.msra.mxu0 0
        %2264 = vmatprep.mubr.bf16.mxu0 0
        %2265 = vmatmul.mubr.bf16.gmra.mrb[0].mxu0 %v2230
        %v2266 = vpop.f32.mrb[0].mxu0
        %v2267 = vadd.f32 0.0, %v2266
        %v2268 = vpop.f32.mrb[0].mxu0
        %v2269 = vpop.f32.mrb[0].mxu0
        %v2270 = vpop.f32.mrb[0].mxu0
        %2271 = vdwg.mxu0
        %v2272 = vpack.i.b16 %v1991, %v1991
        %v2273 = vlaneseq
        %v2274 = vshrl.u32 %v2273, 7
        %v2275 = vsub.s32 0, %v2274
        %v2276 = vrot.slane %v2272, %v2275
        %v2279 = vunpack.c.l.b16 %v487
        %v2280 = vunpack.c.l.b16 %v488
        %v2281 = vpack.c.b16 %v2280, %v2279
        %v2284 = vsel %vm754, %v2276, 0
        %2286 = vmatprep.subr.bf16.mxu0 0
        %2287 = vmatpush1.bf16.msra.mxu0 %v2281
        %2288 = vmatprep.subr.bf16.mxu0 0
        %2289 = vmatpush1.bf16.msra.mxu0 0
        %2290 = vmatprep.subr.bf16.mxu0 0
        %2291 = vmatpush1.bf16.msra.mxu0 0
        %2292 = vmatprep.subr.bf16.mxu0 0
        %2293 = vmatpush1.bf16.msra.mxu0 0
        %2294 = vmatprep.subr.bf16.mxu0 0
        %2295 = vmatpush1.bf16.msra.mxu0 0
        %2296 = vmatprep.subr.bf16.mxu0 0
        %2297 = vmatpush1.bf16.msra.mxu0 0
        %2298 = vmatprep.subr.bf16.mxu0 0
        %2299 = vmatpush1.bf16.msra.mxu0 0
        %2300 = vmatprep.subr.bf16.mxu0 0
        %2301 = vmatpush1.bf16.msra.mxu0 0
        %2302 = vmatprep.subr.bf16.mxu0 0
        %2303 = vmatpush1.bf16.msra.mxu0 0
        %2304 = vmatprep.subr.bf16.mxu0 0
        %2305 = vmatpush1.bf16.msra.mxu0 0
        %2306 = vmatprep.subr.bf16.mxu0 0
        %2307 = vmatpush1.bf16.msra.mxu0 0
        %2308 = vmatprep.subr.bf16.mxu0 0
        %2309 = vmatpush1.bf16.msra.mxu0 0
        %2310 = vmatprep.subr.bf16.mxu0 0
        %2311 = vmatpush1.bf16.msra.mxu0 0
        %2312 = vmatprep.subr.bf16.mxu0 0
        %2313 = vmatpush1.bf16.msra.mxu0 0
        %2314 = vmatprep.subr.bf16.mxu0 0
        %2315 = vmatpush1.bf16.msra.mxu0 0
        %2316 = vmatprep.subr.bf16.mxu0 0
        %2317 = vmatpush1.bf16.msra.mxu0 0
        %2318 = vmatprep.mubr.bf16.mxu0 0
        %2319 = vmatmul.mubr.bf16.gmra.mrb[0].mxu0 %v2284
        %v2320 = vpop.f32.mrb[0].mxu0
        %v2321 = vadd.f32 0.0, %v2320
        %v2322 = vpop.f32.mrb[0].mxu0
        %v2323 = vpop.f32.mrb[0].mxu0
        %v2324 = vpop.f32.mrb[0].mxu0
        %2325 = vdwg.mxu0
        %v2326 = vpack.i.b16 %v1992, %v1992
        %v2327 = vlaneseq
        %v2328 = vshrl.u32 %v2327, 7
        %v2329 = vsub.s32 0, %v2328
        %v2330 = vrot.slane %v2326, %v2329
        %v2333 = vunpack.c.l.b16 %v489
        %v2334 = vunpack.c.l.b16 %v490
        %v2335 = vpack.c.b16 %v2334, %v2333
        %v2338 = vsel %vm754, %v2330, 0
        %2340 = vmatprep.subr.bf16.mxu0 0
        %2341 = vmatpush1.bf16.msra.mxu0 %v2335
        %2342 = vmatprep.subr.bf16.mxu0 0
        %2343 = vmatpush1.bf16.msra.mxu0 0
        %2344 = vmatprep.subr.bf16.mxu0 0
        %2345 = vmatpush1.bf16.msra.mxu0 0
        %2346 = vmatprep.subr.bf16.mxu0 0
        %2347 = vmatpush1.bf16.msra.mxu0 0
        %2348 = vmatprep.subr.bf16.mxu0 0
        %2349 = vmatpush1.bf16.msra.mxu0 0
        %2350 = vmatprep.subr.bf16.mxu0 0
        %2351 = vmatpush1.bf16.msra.mxu0 0
        %2352 = vmatprep.subr.bf16.mxu0 0
        %2353 = vmatpush1.bf16.msra.mxu0 0
        %2354 = vmatprep.subr.bf16.mxu0 0
        %2355 = vmatpush1.bf16.msra.mxu0 0
        %2356 = vmatprep.subr.bf16.mxu0 0
        %2357 = vmatpush1.bf16.msra.mxu0 0
        %2358 = vmatprep.subr.bf16.mxu0 0
        %2359 = vmatpush1.bf16.msra.mxu0 0
        %2360 = vmatprep.subr.bf16.mxu0 0
        %2361 = vmatpush1.bf16.msra.mxu0 0
        %2362 = vmatprep.subr.bf16.mxu0 0
        %2363 = vmatpush1.bf16.msra.mxu0 0
        %2364 = vmatprep.subr.bf16.mxu0 0
        %2365 = vmatpush1.bf16.msra.mxu0 0
        %2366 = vmatprep.subr.bf16.mxu0 0
        %2367 = vmatpush1.bf16.msra.mxu0 0
        %2368 = vmatprep.subr.bf16.mxu0 0
        %2369 = vmatpush1.bf16.msra.mxu0 0
        %2370 = vmatprep.subr.bf16.mxu0 0
        %2371 = vmatpush1.bf16.msra.mxu0 0
        %2372 = vmatprep.mubr.bf16.mxu0 0
        %2373 = vmatmul.mubr.bf16.gmra.mrb[0].mxu0 %v2338
        %v2374 = vpop.f32.mrb[0].mxu0
        %v2375 = vadd.f32 0.0, %v2374
        %v2376 = vpop.f32.mrb[0].mxu0
        %v2377 = vpop.f32.mrb[0].mxu0
        %v2378 = vpop.f32.mrb[0].mxu0
        %2379 = vdwg.mxu0
        %v2380 = vpack.i.b16 %v1993, %v1993
        %v2381 = vlaneseq
        %v2382 = vshrl.u32 %v2381, 7
        %v2383 = vsub.s32 0, %v2382
        %v2384 = vrot.slane %v2380, %v2383
        %v2387 = vunpack.c.l.b16 %v491
        %v2388 = vunpack.c.l.b16 %v492
        %v2389 = vpack.c.b16 %v2388, %v2387
        %v2392 = vsel %vm754, %v2384, 0
        %2394 = vmatprep.subr.bf16.mxu0 0
        %2395 = vmatpush1.bf16.msra.mxu0 %v2389
        %2396 = vmatprep.subr.bf16.mxu0 0
        %2397 = vmatpush1.bf16.msra.mxu0 0
        %2398 = vmatprep.subr.bf16.mxu0 0
        %2399 = vmatpush1.bf16.msra.mxu0 0
        %2400 = vmatprep.subr.bf16.mxu0 0
        %2401 = vmatpush1.bf16.msra.mxu0 0
        %2402 = vmatprep.subr.bf16.mxu0 0
        %2403 = vmatpush1.bf16.msra.mxu0 0
        %2404 = vmatprep.subr.bf16.mxu0 0
        %2405 = vmatpush1.bf16.msra.mxu0 0
        %2406 = vmatprep.subr.bf16.mxu0 0
        %2407 = vmatpush1.bf16.msra.mxu0 0
        %2408 = vmatprep.subr.bf16.mxu0 0
        %2409 = vmatpush1.bf16.msra.mxu0 0
        %2410 = vmatprep.subr.bf16.mxu0 0
        %2411 = vmatpush1.bf16.msra.mxu0 0
        %2412 = vmatprep.subr.bf16.mxu0 0
        %2413 = vmatpush1.bf16.msra.mxu0 0
        %2414 = vmatprep.subr.bf16.mxu0 0
        %2415 = vmatpush1.bf16.msra.mxu0 0
        %2416 = vmatprep.subr.bf16.mxu0 0
        %2417 = vmatpush1.bf16.msra.mxu0 0
        %2418 = vmatprep.subr.bf16.mxu0 0
        %2419 = vmatpush1.bf16.msra.mxu0 0
        %2420 = vmatprep.subr.bf16.mxu0 0
        %2421 = vmatpush1.bf16.msra.mxu0 0
        %2422 = vmatprep.subr.bf16.mxu0 0
        %2423 = vmatpush1.bf16.msra.mxu0 0
        %2424 = vmatprep.subr.bf16.mxu0 0
        %2425 = vmatpush1.bf16.msra.mxu0 0
        %2426 = vmatprep.mubr.bf16.mxu0 0
        %2427 = vmatmul.mubr.bf16.gmra.mrb[0].mxu0 %v2392
        %v2428 = vpop.f32.mrb[0].mxu0
        %v2429 = vadd.f32 0.0, %v2428
        %v2430 = vpop.f32.mrb[0].mxu0
        %v2431 = vpop.f32.mrb[0].mxu0
        %v2432 = vpop.f32.mrb[0].mxu0
        %2433 = vdwg.mxu0
        %v2434 = vpack.i.b16 %v1994, %v1994
        %v2435 = vlaneseq
        %v2436 = vshrl.u32 %v2435, 7
        %v2437 = vsub.s32 0, %v2436
        %v2438 = vrot.slane %v2434, %v2437
        %v2441 = vunpack.c.l.b16 %v493
        %v2442 = vunpack.c.l.b16 %v494
        %v2443 = vpack.c.b16 %v2442, %v2441
        %v2446 = vsel %vm754, %v2438, 0
        %2448 = vmatprep.subr.bf16.mxu0 0
        %2449 = vmatpush1.bf16.msra.mxu0 %v2443
        %2450 = vmatprep.subr.bf16.mxu0 0
        %2451 = vmatpush1.bf16.msra.mxu0 0
        %2452 = vmatprep.subr.bf16.mxu0 0
        %2453 = vmatpush1.bf16.msra.mxu0 0
        %2454 = vmatprep.subr.bf16.mxu0 0
        %2455 = vmatpush1.bf16.msra.mxu0 0
        %2456 = vmatprep.subr.bf16.mxu0 0
        %2457 = vmatpush1.bf16.msra.mxu0 0
        %2458 = vmatprep.subr.bf16.mxu0 0
        %2459 = vmatpush1.bf16.msra.mxu0 0
        %2460 = vmatprep.subr.bf16.mxu0 0
        %2461 = vmatpush1.bf16.msra.mxu0 0
        %2462 = vmatprep.subr.bf16.mxu0 0
        %2463 = vmatpush1.bf16.msra.mxu0 0
        %2464 = vmatprep.subr.bf16.mxu0 0
        %2465 = vmatpush1.bf16.msra.mxu0 0
        %2466 = vmatprep.subr.bf16.mxu0 0
        %2467 = vmatpush1.bf16.msra.mxu0 0
        %2468 = vmatprep.subr.bf16.mxu0 0
        %2469 = vmatpush1.bf16.msra.mxu0 0
        %2470 = vmatprep.subr.bf16.mxu0 0
        %2471 = vmatpush1.bf16.msra.mxu0 0
        %2472 = vmatprep.subr.bf16.mxu0 0
        %2473 = vmatpush1.bf16.msra.mxu0 0
        %2474 = vmatprep.subr.bf16.mxu0 0
        %2475 = vmatpush1.bf16.msra.mxu0 0
        %2476 = vmatprep.subr.bf16.mxu0 0
        %2477 = vmatpush1.bf16.msra.mxu0 0
        %2478 = vmatprep.subr.bf16.mxu0 0
        %2479 = vmatpush1.bf16.msra.mxu0 0
        %2480 = vmatprep.mubr.bf16.mxu0 0
        %2481 = vmatmul.mubr.bf16.gmra.mrb[0].mxu0 %v2446
        %v2482 = vpop.f32.mrb[0].mxu0
        %v2483 = vadd.f32 0.0, %v2482
        %v2484 = vpop.f32.mrb[0].mxu0
        %v2485 = vpop.f32.mrb[0].mxu0
        %v2486 = vpop.f32.mrb[0].mxu0
        %2487 = vdwg.mxu0
        %v2488 = vpack.i.b16 %v1995, %v1995
        %v2489 = vlaneseq
        %v2490 = vshrl.u32 %v2489, 7
        %v2491 = vsub.s32 0, %v2490
        %v2492 = vrot.slane %v2488, %v2491
        %v2495 = vunpack.c.l.b16 %v495
        %v2496 = vunpack.c.l.b16 %v496
        %v2497 = vpack.c.b16 %v2496, %v2495
        %v2500 = vsel %vm754, %v2492, 0
        %2502 = vmatprep.subr.bf16.mxu0 0
        %2503 = vmatpush1.bf16.msra.mxu0 %v2497
        %2504 = vmatprep.subr.bf16.mxu0 0
        %2505 = vmatpush1.bf16.msra.mxu0 0
        %2506 = vmatprep.subr.bf16.mxu0 0
        %2507 = vmatpush1.bf16.msra.mxu0 0
        %2508 = vmatprep.subr.bf16.mxu0 0
        %2509 = vmatpush1.bf16.msra.mxu0 0
        %2510 = vmatprep.subr.bf16.mxu0 0
        %2511 = vmatpush1.bf16.msra.mxu0 0
        %2512 = vmatprep.subr.bf16.mxu0 0
        %2513 = vmatpush1.bf16.msra.mxu0 0
        %2514 = vmatprep.subr.bf16.mxu0 0
        %2515 = vmatpush1.bf16.msra.mxu0 0
        %2516 = vmatprep.subr.bf16.mxu0 0
        %2517 = vmatpush1.bf16.msra.mxu0 0
        %2518 = vmatprep.subr.bf16.mxu0 0
        %2519 = vmatpush1.bf16.msra.mxu0 0
        %2520 = vmatprep.subr.bf16.mxu0 0
        %2521 = vmatpush1.bf16.msra.mxu0 0
        %2522 = vmatprep.subr.bf16.mxu0 0
        %2523 = vmatpush1.bf16.msra.mxu0 0
        %2524 = vmatprep.subr.bf16.mxu0 0
        %2525 = vmatpush1.bf16.msra.mxu0 0
        %2526 = vmatprep.subr.bf16.mxu0 0
        %2527 = vmatpush1.bf16.msra.mxu0 0
        %2528 = vmatprep.subr.bf16.mxu0 0
        %2529 = vmatpush1.bf16.msra.mxu0 0
        %2530 = vmatprep.subr.bf16.mxu0 0
        %2531 = vmatpush1.bf16.msra.mxu0 0
        %2532 = vmatprep.subr.bf16.mxu0 0
        %2533 = vmatpush1.bf16.msra.mxu0 0
        %2534 = vmatprep.mubr.bf16.mxu0 0
        %2535 = vmatmul.mubr.bf16.gmra.mrb[0].mxu0 %v2500
        %v2536 = vpop.f32.mrb[0].mxu0
        %v2537 = vadd.f32 0.0, %v2536
        %v2538 = vpop.f32.mrb[0].mxu0
        %v2539 = vpop.f32.mrb[0].mxu0
        %v2540 = vpop.f32.mrb[0].mxu0
        %2541 = vdwg.mxu0
        %v2542 = vpack.i.b16 %v1996, %v1996
        %v2543 = vlaneseq
        %v2544 = vshrl.u32 %v2543, 7
        %v2545 = vsub.s32 0, %v2544
        %v2546 = vrot.slane %v2542, %v2545
        %v2549 = vunpack.c.l.b16 %v497
        %v2550 = vunpack.c.l.b16 %v498
        %v2551 = vpack.c.b16 %v2550, %v2549
        %v2554 = vsel %vm754, %v2546, 0
        %2556 = vmatprep.subr.bf16.mxu0 0
        %2557 = vmatpush1.bf16.msra.mxu0 %v2551
        %2558 = vmatprep.subr.bf16.mxu0 0
        %2559 = vmatpush1.bf16.msra.mxu0 0
        %2560 = vmatprep.subr.bf16.mxu0 0
        %2561 = vmatpush1.bf16.msra.mxu0 0
        %2562 = vmatprep.subr.bf16.mxu0 0
        %2563 = vmatpush1.bf16.msra.mxu0 0
        %2564 = vmatprep.subr.bf16.mxu0 0
        %2565 = vmatpush1.bf16.msra.mxu0 0
        %2566 = vmatprep.subr.bf16.mxu0 0
        %2567 = vmatpush1.bf16.msra.mxu0 0
        %2568 = vmatprep.subr.bf16.mxu0 0
        %2569 = vmatpush1.bf16.msra.mxu0 0
        %2570 = vmatprep.subr.bf16.mxu0 0
        %2571 = vmatpush1.bf16.msra.mxu0 0
        %2572 = vmatprep.subr.bf16.mxu0 0
        %2573 = vmatpush1.bf16.msra.mxu0 0
        %2574 = vmatprep.subr.bf16.mxu0 0
        %2575 = vmatpush1.bf16.msra.mxu0 0
        %2576 = vmatprep.subr.bf16.mxu0 0
        %2577 = vmatpush1.bf16.msra.mxu0 0
        %2578 = vmatprep.subr.bf16.mxu0 0
        %2579 = vmatpush1.bf16.msra.mxu0 0
        %2580 = vmatprep.subr.bf16.mxu0 0
        %2581 = vmatpush1.bf16.msra.mxu0 0
        %2582 = vmatprep.subr.bf16.mxu0 0
        %2583 = vmatpush1.bf16.msra.mxu0 0
        %2584 = vmatprep.subr.bf16.mxu0 0
        %2585 = vmatpush1.bf16.msra.mxu0 0
        %2586 = vmatprep.subr.bf16.mxu0 0
        %2587 = vmatpush1.bf16.msra.mxu0 0
        %2588 = vmatprep.mubr.bf16.mxu0 0
        %2589 = vmatmul.mubr.bf16.gmra.mrb[0].mxu0 %v2554
        %v2590 = vpop.f32.mrb[0].mxu0
        %v2591 = vadd.f32 0.0, %v2590
        %v2592 = vpop.f32.mrb[0].mxu0
        %v2593 = vpop.f32.mrb[0].mxu0
        %v2594 = vpop.f32.mrb[0].mxu0
        %2595 = vdwg.mxu0
        %v2596 = vpack.i.b16 %v1997, %v1997
        %v2597 = vlaneseq
        %v2598 = vshrl.u32 %v2597, 7
        %v2599 = vsub.s32 0, %v2598
        %v2600 = vrot.slane %v2596, %v2599
        %v2603 = vunpack.c.l.b16 %v499
        %v2604 = vunpack.c.l.b16 %v500
        %v2605 = vpack.c.b16 %v2604, %v2603
        %v2608 = vsel %vm754, %v2600, 0
        %2610 = vmatprep.subr.bf16.mxu0 0
        %2611 = vmatpush1.bf16.msra.mxu0 %v2605
        %2612 = vmatprep.subr.bf16.mxu0 0
        %2613 = vmatpush1.bf16.msra.mxu0 0
        %2614 = vmatprep.subr.bf16.mxu0 0
        %2615 = vmatpush1.bf16.msra.mxu0 0
        %2616 = vmatprep.subr.bf16.mxu0 0
        %2617 = vmatpush1.bf16.msra.mxu0 0
        %2618 = vmatprep.subr.bf16.mxu0 0
        %2619 = vmatpush1.bf16.msra.mxu0 0
        %2620 = vmatprep.subr.bf16.mxu0 0
        %2621 = vmatpush1.bf16.msra.mxu0 0
        %2622 = vmatprep.subr.bf16.mxu0 0
        %2623 = vmatpush1.bf16.msra.mxu0 0
        %2624 = vmatprep.subr.bf16.mxu0 0
        %2625 = vmatpush1.bf16.msra.mxu0 0
        %2626 = vmatprep.subr.bf16.mxu0 0
        %2627 = vmatpush1.bf16.msra.mxu0 0
        %2628 = vmatprep.subr.bf16.mxu0 0
        %2629 = vmatpush1.bf16.msra.mxu0 0
        %2630 = vmatprep.subr.bf16.mxu0 0
        %2631 = vmatpush1.bf16.msra.mxu0 0
        %2632 = vmatprep.subr.bf16.mxu0 0
        %2633 = vmatpush1.bf16.msra.mxu0 0
        %2634 = vmatprep.subr.bf16.mxu0 0
        %2635 = vmatpush1.bf16.msra.mxu0 0
        %2636 = vmatprep.subr.bf16.mxu0 0
        %2637 = vmatpush1.bf16.msra.mxu0 0
        %2638 = vmatprep.subr.bf16.mxu0 0
        %2639 = vmatpush1.bf16.msra.mxu0 0
        %2640 = vmatprep.subr.bf16.mxu0 0
        %2641 = vmatpush1.bf16.msra.mxu0 0
        %2642 = vmatprep.mubr.bf16.mxu0 0
        %2643 = vmatmul.mubr.bf16.gmra.mrb[0].mxu0 %v2608
        %v2644 = vpop.f32.mrb[0].mxu0
        %v2645 = vadd.f32 0.0, %v2644
        %v2646 = vpop.f32.mrb[0].mxu0
        %v2647 = vpop.f32.mrb[0].mxu0
        %v2648 = vpop.f32.mrb[0].mxu0
        %2649 = vdwg.mxu0
        %v2650 = vpack.i.b16 %v1998, %v1998
        %v2651 = vlaneseq
        %v2652 = vshrl.u32 %v2651, 7
        %v2653 = vsub.s32 0, %v2652
        %v2654 = vrot.slane %v2650, %v2653
        %v2657 = vunpack.c.l.b16 %v501
        %v2658 = vunpack.c.l.b16 %v502
        %v2659 = vpack.c.b16 %v2658, %v2657
        %v2662 = vsel %vm754, %v2654, 0
        %2664 = vmatprep.subr.bf16.mxu0 0
        %2665 = vmatpush1.bf16.msra.mxu0 %v2659
        %2666 = vmatprep.subr.bf16.mxu0 0
        %2667 = vmatpush1.bf16.msra.mxu0 0
        %2668 = vmatprep.subr.bf16.mxu0 0
        %2669 = vmatpush1.bf16.msra.mxu0 0
        %2670 = vmatprep.subr.bf16.mxu0 0
        %2671 = vmatpush1.bf16.msra.mxu0 0
        %2672 = vmatprep.subr.bf16.mxu0 0
        %2673 = vmatpush1.bf16.msra.mxu0 0
        %2674 = vmatprep.subr.bf16.mxu0 0
        %2675 = vmatpush1.bf16.msra.mxu0 0
        %2676 = vmatprep.subr.bf16.mxu0 0
        %2677 = vmatpush1.bf16.msra.mxu0 0
        %2678 = vmatprep.subr.bf16.mxu0 0
        %2679 = vmatpush1.bf16.msra.mxu0 0
        %2680 = vmatprep.subr.bf16.mxu0 0
        %2681 = vmatpush1.bf16.msra.mxu0 0
        %2682 = vmatprep.subr.bf16.mxu0 0
        %2683 = vmatpush1.bf16.msra.mxu0 0
        %2684 = vmatprep.subr.bf16.mxu0 0
        %2685 = vmatpush1.bf16.msra.mxu0 0
        %2686 = vmatprep.subr.bf16.mxu0 0
        %2687 = vmatpush1.bf16.msra.mxu0 0
        %2688 = vmatprep.subr.bf16.mxu0 0
        %2689 = vmatpush1.bf16.msra.mxu0 0
        %2690 = vmatprep.subr.bf16.mxu0 0
        %2691 = vmatpush1.bf16.msra.mxu0 0
        %2692 = vmatprep.subr.bf16.mxu0 0
        %2693 = vmatpush1.bf16.msra.mxu0 0
        %2694 = vmatprep.subr.bf16.mxu0 0
        %2695 = vmatpush1.bf16.msra.mxu0 0
        %2696 = vmatprep.mubr.bf16.mxu0 0
        %2697 = vmatmul.mubr.bf16.gmra.mrb[0].mxu0 %v2662
        %v2698 = vpop.f32.mrb[0].mxu0
        %v2699 = vadd.f32 0.0, %v2698
        %v2700 = vpop.f32.mrb[0].mxu0
        %v2701 = vpop.f32.mrb[0].mxu0
        %v2702 = vpop.f32.mrb[0].mxu0
        %2703 = vdwg.mxu0
        %v2704 = vpack.i.b16 %v1999, %v1999
        %v2705 = vlaneseq
        %v2706 = vshrl.u32 %v2705, 7
        %v2707 = vsub.s32 0, %v2706
        %v2708 = vrot.slane %v2704, %v2707
        %v2711 = vunpack.c.l.b16 %v503
        %v2712 = vunpack.c.l.b16 %v504
        %v2713 = vpack.c.b16 %v2712, %v2711
        %v2716 = vsel %vm754, %v2708, 0
        %2718 = vmatprep.subr.bf16.mxu0 0
        %2719 = vmatpush1.bf16.msra.mxu0 %v2713
        %2720 = vmatprep.subr.bf16.mxu0 0
        %2721 = vmatpush1.bf16.msra.mxu0 0
        %2722 = vmatprep.subr.bf16.mxu0 0
        %2723 = vmatpush1.bf16.msra.mxu0 0
        %2724 = vmatprep.subr.bf16.mxu0 0
        %2725 = vmatpush1.bf16.msra.mxu0 0
        %2726 = vmatprep.subr.bf16.mxu0 0
        %2727 = vmatpush1.bf16.msra.mxu0 0
        %2728 = vmatprep.subr.bf16.mxu0 0
        %2729 = vmatpush1.bf16.msra.mxu0 0
        %2730 = vmatprep.subr.bf16.mxu0 0
        %2731 = vmatpush1.bf16.msra.mxu0 0
        %2732 = vmatprep.subr.bf16.mxu0 0
        %2733 = vmatpush1.bf16.msra.mxu0 0
        %2734 = vmatprep.subr.bf16.mxu0 0
        %2735 = vmatpush1.bf16.msra.mxu0 0
        %2736 = vmatprep.subr.bf16.mxu0 0
        %2737 = vmatpush1.bf16.msra.mxu0 0
        %2738 = vmatprep.subr.bf16.mxu0 0
        %2739 = vmatpush1.bf16.msra.mxu0 0
        %2740 = vmatprep.subr.bf16.mxu0 0
        %2741 = vmatpush1.bf16.msra.mxu0 0
        %2742 = vmatprep.subr.bf16.mxu0 0
        %2743 = vmatpush1.bf16.msra.mxu0 0
        %2744 = vmatprep.subr.bf16.mxu0 0
        %2745 = vmatpush1.bf16.msra.mxu0 0
        %2746 = vmatprep.subr.bf16.mxu0 0
        %2747 = vmatpush1.bf16.msra.mxu0 0
        %2748 = vmatprep.subr.bf16.mxu0 0
        %2749 = vmatpush1.bf16.msra.mxu0 0
        %2750 = vmatprep.mubr.bf16.mxu0 0
        %2751 = vmatmul.mubr.bf16.gmra.mrb[0].mxu0 %v2716
        %v2752 = vpop.f32.mrb[0].mxu0
        %v2753 = vadd.f32 0.0, %v2752
        %v2754 = vpop.f32.mrb[0].mxu0
        %v2755 = vpop.f32.mrb[0].mxu0
        %v2756 = vpop.f32.mrb[0].mxu0
        %2757 = vdwg.mxu0
        %v2758 = vpack.i.b16 %v2000, %v2000
        %v2759 = vlaneseq
        %v2760 = vshrl.u32 %v2759, 7
        %v2761 = vsub.s32 0, %v2760
        %v2762 = vrot.slane %v2758, %v2761
        %v2765 = vunpack.c.l.b16 %v505
        %v2766 = vunpack.c.l.b16 %v506
        %v2767 = vpack.c.b16 %v2766, %v2765
        %v2770 = vsel %vm754, %v2762, 0
        %2772 = vmatprep.subr.bf16.mxu0 0
        %2773 = vmatpush1.bf16.msra.mxu0 %v2767
        %2774 = vmatprep.subr.bf16.mxu0 0
        %2775 = vmatpush1.bf16.msra.mxu0 0
        %2776 = vmatprep.subr.bf16.mxu0 0
        %2777 = vmatpush1.bf16.msra.mxu0 0
        %2778 = vmatprep.subr.bf16.mxu0 0
        %2779 = vmatpush1.bf16.msra.mxu0 0
        %2780 = vmatprep.subr.bf16.mxu0 0
        %2781 = vmatpush1.bf16.msra.mxu0 0
        %2782 = vmatprep.subr.bf16.mxu0 0
        %2783 = vmatpush1.bf16.msra.mxu0 0
        %2784 = vmatprep.subr.bf16.mxu0 0
        %2785 = vmatpush1.bf16.msra.mxu0 0
        %2786 = vmatprep.subr.bf16.mxu0 0
        %2787 = vmatpush1.bf16.msra.mxu0 0
        %2788 = vmatprep.subr.bf16.mxu0 0
        %2789 = vmatpush1.bf16.msra.mxu0 0
        %2790 = vmatprep.subr.bf16.mxu0 0
        %2791 = vmatpush1.bf16.msra.mxu0 0
        %2792 = vmatprep.subr.bf16.mxu0 0
        %2793 = vmatpush1.bf16.msra.mxu0 0
        %2794 = vmatprep.subr.bf16.mxu0 0
        %2795 = vmatpush1.bf16.msra.mxu0 0
        %2796 = vmatprep.subr.bf16.mxu0 0
        %2797 = vmatpush1.bf16.msra.mxu0 0
        %2798 = vmatprep.subr.bf16.mxu0 0
        %2799 = vmatpush1.bf16.msra.mxu0 0
        %2800 = vmatprep.subr.bf16.mxu0 0
        %2801 = vmatpush1.bf16.msra.mxu0 0
        %2802 = vmatprep.subr.bf16.mxu0 0
        %2803 = vmatpush1.bf16.msra.mxu0 0
        %2804 = vmatprep.mubr.bf16.mxu0 0
        %2805 = vmatmul.mubr.bf16.gmra.mrb[0].mxu0 %v2770
        %v2806 = vpop.f32.mrb[0].mxu0
        %v2807 = vadd.f32 0.0, %v2806
        %v2808 = vpop.f32.mrb[0].mxu0
        %v2809 = vpop.f32.mrb[0].mxu0
        %v2810 = vpop.f32.mrb[0].mxu0
        %2811 = vdwg.mxu0
        %v2812 = vpack.i.b16 %v2001, %v2001
        %v2813 = vlaneseq
        %v2814 = vshrl.u32 %v2813, 7
        %v2815 = vsub.s32 0, %v2814
        %v2816 = vrot.slane %v2812, %v2815
        %v2819 = vunpack.c.l.b16 %v507
        %v2820 = vunpack.c.l.b16 %v508
        %v2821 = vpack.c.b16 %v2820, %v2819
        %v2824 = vsel %vm754, %v2816, 0
        %2826 = vmatprep.subr.bf16.mxu0 0
        %2827 = vmatpush1.bf16.msra.mxu0 %v2821
        %2828 = vmatprep.subr.bf16.mxu0 0
        %2829 = vmatpush1.bf16.msra.mxu0 0
        %2830 = vmatprep.subr.bf16.mxu0 0
        %2831 = vmatpush1.bf16.msra.mxu0 0
        %2832 = vmatprep.subr.bf16.mxu0 0
        %2833 = vmatpush1.bf16.msra.mxu0 0
        %2834 = vmatprep.subr.bf16.mxu0 0
        %2835 = vmatpush1.bf16.msra.mxu0 0
        %2836 = vmatprep.subr.bf16.mxu0 0
        %2837 = vmatpush1.bf16.msra.mxu0 0
        %2838 = vmatprep.subr.bf16.mxu0 0
        %2839 = vmatpush1.bf16.msra.mxu0 0
        %2840 = vmatprep.subr.bf16.mxu0 0
        %2841 = vmatpush1.bf16.msra.mxu0 0
        %2842 = vmatprep.subr.bf16.mxu0 0
        %2843 = vmatpush1.bf16.msra.mxu0 0
        %2844 = vmatprep.subr.bf16.mxu0 0
        %2845 = vmatpush1.bf16.msra.mxu0 0
        %2846 = vmatprep.subr.bf16.mxu0 0
        %2847 = vmatpush1.bf16.msra.mxu0 0
        %2848 = vmatprep.subr.bf16.mxu0 0
        %2849 = vmatpush1.bf16.msra.mxu0 0
        %2850 = vmatprep.subr.bf16.mxu0 0
        %2851 = vmatpush1.bf16.msra.mxu0 0
        %2852 = vmatprep.subr.bf16.mxu0 0
        %2853 = vmatpush1.bf16.msra.mxu0 0
        %2854 = vmatprep.subr.bf16.mxu0 0
        %2855 = vmatpush1.bf16.msra.mxu0 0
        %2856 = vmatprep.subr.bf16.mxu0 0
        %2857 = vmatpush1.bf16.msra.mxu0 0
        %2858 = vmatprep.mubr.bf16.mxu0 0
        %2859 = vmatmul.mubr.bf16.gmra.mrb[0].mxu0 %v2824
        %v2860 = vpop.f32.mrb[0].mxu0
        %v2861 = vadd.f32 0.0, %v2860
        %v2862 = vpop.f32.mrb[0].mxu0
        %v2863 = vpop.f32.mrb[0].mxu0
        %v2864 = vpop.f32.mrb[0].mxu0
        %2865 = vdwg.mxu0
        %v2866 = vld [vmem:[%s307] sm:$0xf]
        %v2867 = vld [vmem:[%s307 + $0x4] sm:$0xf]
        %v2868 = vld [vmem:[%s307 + $0x8] sm:$0xf]
        %v2869 = vld [vmem:[%s307 + $0xc] sm:$0xf]
        %v2870 = vld [vmem:[%s307 + $0x10] sm:$0xf]
        %v2871 = vld [vmem:[%s307 + $0x14] sm:$0xf]
        %v2872 = vld [vmem:[%s307 + $0x18] sm:$0xf]
        %v2873 = vld [vmem:[%s307 + $0x1c] sm:$0xf]
        %v2874 = vld [vmem:[%s307 + $0x20] sm:$0xf]
        %v2875 = vld [vmem:[%s307 + $0x24] sm:$0xf]
        %v2876 = vld [vmem:[%s307 + $0x28] sm:$0xf]
        %v2877 = vld [vmem:[%s307 + $0x2c] sm:$0xf]
        %v2878 = vld [vmem:[%s307 + $0x30] sm:$0xf]
        %v2879 = vld [vmem:[%s307 + $0x34] sm:$0xf]
        %v2880 = vld [vmem:[%s307 + $0x38] sm:$0xf]
        %v2881 = vld [vmem:[%s307 + $0x3c] sm:$0xf]
        %v2882 = vld [vmem:[%s307 + $0x40] sm:$0xf]
        %v2883 = vld [vmem:[%s307 + $0x44] sm:$0xf]
        %v2884 = vld [vmem:[%s307 + $0x48] sm:$0xf]
        %v2885 = vld [vmem:[%s307 + $0x4c] sm:$0xf]
        %v2886 = vld [vmem:[%s307 + $0x50] sm:$0xf]
        %v2887 = vld [vmem:[%s307 + $0x54] sm:$0xf]
        %v2888 = vld [vmem:[%s307 + $0x58] sm:$0xf]
        %v2889 = vld [vmem:[%s307 + $0x5c] sm:$0xf]
        %v2890 = vld [vmem:[%s307 + $0x60] sm:$0xf]
        %v2891 = vld [vmem:[%s307 + $0x64] sm:$0xf]
        %v2892 = vld [vmem:[%s307 + $0x68] sm:$0xf]
        %v2893 = vld [vmem:[%s307 + $0x6c] sm:$0xf]
        %v2894 = vld [vmem:[%s307 + $0x70] sm:$0xf]
        %v2895 = vld [vmem:[%s307 + $0x74] sm:$0xf]
        %v2896 = vld [vmem:[%s307 + $0x78] sm:$0xf]
        %v2897 = vld [vmem:[%s307 + $0x7c] sm:$0xf]
        %v2898 = vunpack.c.l.bf16 %v2866
        %v2899 = vunpack.c.l.bf16 %v2867
        %v2900 = vunpack.c.l.bf16 %v2868
        %v2901 = vunpack.c.l.bf16 %v2869
        %v2902 = vunpack.c.l.bf16 %v2870
        %v2903 = vunpack.c.l.bf16 %v2871
        %v2904 = vunpack.c.l.bf16 %v2872
        %v2905 = vunpack.c.l.bf16 %v2873
        %v2906 = vunpack.c.l.bf16 %v2874
        %v2907 = vunpack.c.l.bf16 %v2875
        %v2908 = vunpack.c.l.bf16 %v2876
        %v2909 = vunpack.c.l.bf16 %v2877
        %v2910 = vunpack.c.l.bf16 %v2878
        %v2911 = vunpack.c.l.bf16 %v2879
        %v2912 = vunpack.c.l.bf16 %v2880
        %v2913 = vunpack.c.l.bf16 %v2881
        %v2914 = vunpack.c.l.bf16 %v2882
        %v2915 = vunpack.c.l.bf16 %v2883
        %v2916 = vunpack.c.l.bf16 %v2884
        %v2917 = vunpack.c.l.bf16 %v2885
        %v2918 = vunpack.c.l.bf16 %v2886
        %v2919 = vunpack.c.l.bf16 %v2887
        %v2920 = vunpack.c.l.bf16 %v2888
        %v2921 = vunpack.c.l.bf16 %v2889
        %v2922 = vunpack.c.l.bf16 %v2890
        %v2923 = vunpack.c.l.bf16 %v2891
        %v2924 = vunpack.c.l.bf16 %v2892
        %v2925 = vunpack.c.l.bf16 %v2893
        %v2926 = vunpack.c.l.bf16 %v2894
        %v2927 = vunpack.c.l.bf16 %v2895
        %v2928 = vunpack.c.l.bf16 %v2896
        %v2929 = vunpack.c.l.bf16 %v2897
        %v2930 = vmul.f32 %v2898, %v645
        %v2931 = vmul.f32 %v2899, %v645
        %v2932 = vmul.f32 %v2900, %v649
        %v2933 = vmul.f32 %v2901, %v649
        %v2934 = vmul.f32 %v2902, %v653
        %v2935 = vmul.f32 %v2903, %v653
        %v2936 = vmul.f32 %v2904, %v657
        %v2937 = vmul.f32 %v2905, %v657
        %v2938 = vmul.f32 %v2906, %v661
        %v2939 = vmul.f32 %v2907, %v661
        %v2940 = vmul.f32 %v2908, %v665
        %v2941 = vmul.f32 %v2909, %v665
        %v2942 = vmul.f32 %v2910, %v669
        %v2943 = vmul.f32 %v2911, %v669
        %v2944 = vmul.f32 %v2912, %v673
        %v2945 = vmul.f32 %v2913, %v673
        %v2946 = vmul.f32 %v2914, %v677
        %v2947 = vmul.f32 %v2915, %v677
        %v2948 = vmul.f32 %v2916, %v681
        %v2949 = vmul.f32 %v2917, %v681
        %v2950 = vmul.f32 %v2918, %v685
        %v2951 = vmul.f32 %v2919, %v685
        %v2952 = vmul.f32 %v2920, %v689
        %v2953 = vmul.f32 %v2921, %v689
        %v2954 = vmul.f32 %v2922, %v693
        %v2955 = vmul.f32 %v2923, %v693
        %v2956 = vmul.f32 %v2924, %v697
        %v2957 = vmul.f32 %v2925, %v697
        %v2958 = vmul.f32 %v2926, %v701
        %v2959 = vmul.f32 %v2927, %v701
        %v2960 = vmul.f32 %v2928, %v705
        %v2961 = vmul.f32 %v2929, %v705
        %2994 = vrot.lane.b32.xlu0 %v2930, 112
        %v2995 = vpop.permute.xlu0 %2994
        %2996 = vrot.lane.b32.xlu0 %v2931, 112
        %v2997 = vpop.permute.xlu0 %2996
        %2998 = vrot.lane.b32.xlu0 %v2932, 112
        %v2999 = vpop.permute.xlu0 %2998
        %3000 = vrot.lane.b32.xlu0 %v2933, 112
        %v3001 = vpop.permute.xlu0 %3000
        %3002 = vrot.lane.b32.xlu0 %v2934, 112
        %v3003 = vpop.permute.xlu0 %3002
        %3004 = vrot.lane.b32.xlu0 %v2935, 112
        %v3005 = vpop.permute.xlu0 %3004
        %3006 = vrot.lane.b32.xlu0 %v2936, 112
        %v3007 = vpop.permute.xlu0 %3006
        %3008 = vrot.lane.b32.xlu0 %v2937, 112
        %v3009 = vpop.permute.xlu0 %3008
        %3010 = vrot.lane.b32.xlu0 %v2938, 112
        %v3011 = vpop.permute.xlu0 %3010
        %3012 = vrot.lane.b32.xlu0 %v2939, 112
        %v3013 = vpop.permute.xlu0 %3012
        %3014 = vrot.lane.b32.xlu0 %v2940, 112
        %v3015 = vpop.permute.xlu0 %3014
        %3016 = vrot.lane.b32.xlu0 %v2941, 112
        %v3017 = vpop.permute.xlu0 %3016
        %3018 = vrot.lane.b32.xlu0 %v2942, 112
        %v3019 = vpop.permute.xlu0 %3018
        %3020 = vrot.lane.b32.xlu0 %v2943, 112
        %v3021 = vpop.permute.xlu0 %3020
        %3022 = vrot.lane.b32.xlu0 %v2944, 112
        %v3023 = vpop.permute.xlu0 %3022
        %3024 = vrot.lane.b32.xlu0 %v2945, 112
        %v3025 = vpop.permute.xlu0 %3024
        %3026 = vrot.lane.b32.xlu0 %v2946, 112
        %v3027 = vpop.permute.xlu0 %3026
        %3028 = vrot.lane.b32.xlu0 %v2947, 112
        %v3029 = vpop.permute.xlu0 %3028
        %3030 = vrot.lane.b32.xlu0 %v2948, 112
        %v3031 = vpop.permute.xlu0 %3030
        %3032 = vrot.lane.b32.xlu0 %v2949, 112
        %v3033 = vpop.permute.xlu0 %3032
        %3034 = vrot.lane.b32.xlu0 %v2950, 112
        %v3035 = vpop.permute.xlu0 %3034
        %3036 = vrot.lane.b32.xlu0 %v2951, 112
        %v3037 = vpop.permute.xlu0 %3036
        %3038 = vrot.lane.b32.xlu0 %v2952, 112
        %v3039 = vpop.permute.xlu0 %3038
        %3040 = vrot.lane.b32.xlu0 %v2953, 112
        %v3041 = vpop.permute.xlu0 %3040
        %3042 = vrot.lane.b32.xlu0 %v2954, 112
        %v3043 = vpop.permute.xlu0 %3042
        %3044 = vrot.lane.b32.xlu0 %v2955, 112
        %v3045 = vpop.permute.xlu0 %3044
        %3046 = vrot.lane.b32.xlu0 %v2956, 112
        %v3047 = vpop.permute.xlu0 %3046
        %3048 = vrot.lane.b32.xlu0 %v2957, 112
        %v3049 = vpop.permute.xlu0 %3048
        %3050 = vrot.lane.b32.xlu0 %v2958, 112
        %v3051 = vpop.permute.xlu0 %3050
        %3052 = vrot.lane.b32.xlu0 %v2959, 112
        %v3053 = vpop.permute.xlu0 %3052
        %3054 = vrot.lane.b32.xlu0 %v2960, 112
        %v3055 = vpop.permute.xlu0 %3054
        %3056 = vrot.lane.b32.xlu0 %v2961, 112
        %v3057 = vpop.permute.xlu0 %3056
        %v3090 = vsel %vm754, %v2995, 0.0
        %3091 = vadd.xlane.f32.xlu0 %v3090
        %v3092 = vpop.xlane.xlu0 %3091
        %v3093 = vsel %vm754, %v2997, 0.0
        %3094 = vadd.xlane.f32.xlu0 %v3093
        %v3095 = vpop.xlane.xlu0 %3094
        %v3096 = vsel %vm754, %v2999, 0.0
        %3097 = vadd.xlane.f32.xlu0 %v3096
        %v3098 = vpop.xlane.xlu0 %3097
        %v3099 = vsel %vm754, %v3001, 0.0
        %3100 = vadd.xlane.f32.xlu0 %v3099
        %v3101 = vpop.xlane.xlu0 %3100
        %v3102 = vsel %vm754, %v3003, 0.0
        %3103 = vadd.xlane.f32.xlu0 %v3102
        %v3104 = vpop.xlane.xlu0 %3103
        %v3105 = vsel %vm754, %v3005, 0.0
        %3106 = vadd.xlane.f32.xlu0 %v3105
        %v3107 = vpop.xlane.xlu0 %3106
        %v3108 = vsel %vm754, %v3007, 0.0
        %3109 = vadd.xlane.f32.xlu0 %v3108
        %v3110 = vpop.xlane.xlu0 %3109
        %v3111 = vsel %vm754, %v3009, 0.0
        %3112 = vadd.xlane.f32.xlu0 %v3111
        %v3113 = vpop.xlane.xlu0 %3112
        %v3114 = vsel %vm754, %v3011, 0.0
        %3115 = vadd.xlane.f32.xlu0 %v3114
        %v3116 = vpop.xlane.xlu0 %3115
        %v3117 = vsel %vm754, %v3013, 0.0
        %3118 = vadd.xlane.f32.xlu0 %v3117
        %v3119 = vpop.xlane.xlu0 %3118
        %v3120 = vsel %vm754, %v3015, 0.0
        %3121 = vadd.xlane.f32.xlu0 %v3120
        %v3122 = vpop.xlane.xlu0 %3121
        %v3123 = vsel %vm754, %v3017, 0.0
        %3124 = vadd.xlane.f32.xlu0 %v3123
        %v3125 = vpop.xlane.xlu0 %3124
        %v3126 = vsel %vm754, %v3019, 0.0
        %3127 = vadd.xlane.f32.xlu0 %v3126
        %v3128 = vpop.xlane.xlu0 %3127
        %v3129 = vsel %vm754, %v3021, 0.0
        %3130 = vadd.xlane.f32.xlu0 %v3129
        %v3131 = vpop.xlane.xlu0 %3130
        %v3132 = vsel %vm754, %v3023, 0.0
        %3133 = vadd.xlane.f32.xlu0 %v3132
        %v3134 = vpop.xlane.xlu0 %3133
        %v3135 = vsel %vm754, %v3025, 0.0
        %3136 = vadd.xlane.f32.xlu0 %v3135
        %v3137 = vpop.xlane.xlu0 %3136
        %v3138 = vsel %vm754, %v3027, 0.0
        %3139 = vadd.xlane.f32.xlu0 %v3138
        %v3140 = vpop.xlane.xlu0 %3139
        %v3141 = vsel %vm754, %v3029, 0.0
        %3142 = vadd.xlane.f32.xlu0 %v3141
        %v3143 = vpop.xlane.xlu0 %3142
        %v3144 = vsel %vm754, %v3031, 0.0
        %3145 = vadd.xlane.f32.xlu0 %v3144
        %v3146 = vpop.xlane.xlu0 %3145
        %v3147 = vsel %vm754, %v3033, 0.0
        %3148 = vadd.xlane.f32.xlu0 %v3147
        %v3149 = vpop.xlane.xlu0 %3148
        %v3150 = vsel %vm754, %v3035, 0.0
        %3151 = vadd.xlane.f32.xlu0 %v3150
        %v3152 = vpop.xlane.xlu0 %3151
        %v3153 = vsel %vm754, %v3037, 0.0
        %3154 = vadd.xlane.f32.xlu0 %v3153
        %v3155 = vpop.xlane.xlu0 %3154
        %v3156 = vsel %vm754, %v3039, 0.0
        %3157 = vadd.xlane.f32.xlu0 %v3156
        %v3158 = vpop.xlane.xlu0 %3157
        %v3159 = vsel %vm754, %v3041, 0.0
        %3160 = vadd.xlane.f32.xlu0 %v3159
        %v3161 = vpop.xlane.xlu0 %3160
        %v3162 = vsel %vm754, %v3043, 0.0
        %3163 = vadd.xlane.f32.xlu0 %v3162
        %v3164 = vpop.xlane.xlu0 %3163
        %v3165 = vsel %vm754, %v3045, 0.0
        %3166 = vadd.xlane.f32.xlu0 %v3165
        %v3167 = vpop.xlane.xlu0 %3166
        %v3168 = vsel %vm754, %v3047, 0.0
        %3169 = vadd.xlane.f32.xlu0 %v3168
        %v3170 = vpop.xlane.xlu0 %3169
        %v3171 = vsel %vm754, %v3049, 0.0
        %3172 = vadd.xlane.f32.xlu0 %v3171
        %v3173 = vpop.xlane.xlu0 %3172
        %v3174 = vsel %vm754, %v3051, 0.0
        %3175 = vadd.xlane.f32.xlu0 %v3174
        %v3176 = vpop.xlane.xlu0 %3175
        %v3177 = vsel %vm754, %v3053, 0.0
        %3178 = vadd.xlane.f32.xlu0 %v3177
        %v3179 = vpop.xlane.xlu0 %3178
        %v3180 = vsel %vm754, %v3055, 0.0
        %3181 = vadd.xlane.f32.xlu0 %v3180
        %v3182 = vpop.xlane.xlu0 %3181
        %v3183 = vsel %vm754, %v3057, 0.0
        %3184 = vadd.xlane.f32.xlu0 %v3183
        %v3185 = vpop.xlane.xlu0 %3184
        %v3186 = vadd.f32 %v2898, %v852
        %v3187 = vadd.f32 %v2899, %v854
        %v3188 = vadd.f32 %v2900, %v852
        %v3189 = vadd.f32 %v2901, %v854
        %v3190 = vadd.f32 %v2902, %v852
        %v3191 = vadd.f32 %v2903, %v854
        %v3192 = vadd.f32 %v2904, %v852
        %v3193 = vadd.f32 %v2905, %v854
        %v3194 = vadd.f32 %v2906, %v852
        %v3195 = vadd.f32 %v2907, %v854
        %v3196 = vadd.f32 %v2908, %v852
        %v3197 = vadd.f32 %v2909, %v854
        %v3198 = vadd.f32 %v2910, %v852
        %v3199 = vadd.f32 %v2911, %v854
        %v3200 = vadd.f32 %v2912, %v852
        %v3201 = vadd.f32 %v2913, %v854
        %v3202 = vadd.f32 %v2914, %v852
        %v3203 = vadd.f32 %v2915, %v854
        %v3204 = vadd.f32 %v2916, %v852
        %v3205 = vadd.f32 %v2917, %v854
        %v3206 = vadd.f32 %v2918, %v852
        %v3207 = vadd.f32 %v2919, %v854
        %v3208 = vadd.f32 %v2920, %v852
        %v3209 = vadd.f32 %v2921, %v854
        %v3210 = vadd.f32 %v2922, %v852
        %v3211 = vadd.f32 %v2923, %v854
        %v3212 = vadd.f32 %v2924, %v852
        %v3213 = vadd.f32 %v2925, %v854
        %v3214 = vadd.f32 %v2926, %v852
        %v3215 = vadd.f32 %v2927, %v854
        %v3216 = vadd.f32 %v2928, %v852
        %v3217 = vadd.f32 %v2929, %v854
        %v3218 = vmul.f32 %v3186, %v3186
        %v3219 = vmul.f32 %v3187, %v3187
        %v3220 = vmul.f32 %v3188, %v3188
        %v3221 = vmul.f32 %v3189, %v3189
        %v3222 = vmul.f32 %v3190, %v3190
        %v3223 = vmul.f32 %v3191, %v3191
        %v3224 = vmul.f32 %v3192, %v3192
        %v3225 = vmul.f32 %v3193, %v3193
        %v3226 = vmul.f32 %v3194, %v3194
        %v3227 = vmul.f32 %v3195, %v3195
        %v3228 = vmul.f32 %v3196, %v3196
        %v3229 = vmul.f32 %v3197, %v3197
        %v3230 = vmul.f32 %v3198, %v3198
        %v3231 = vmul.f32 %v3199, %v3199
        %v3232 = vmul.f32 %v3200, %v3200
        %v3233 = vmul.f32 %v3201, %v3201
        %v3234 = vmul.f32 %v3202, %v3202
        %v3235 = vmul.f32 %v3203, %v3203
        %v3236 = vmul.f32 %v3204, %v3204
        %v3237 = vmul.f32 %v3205, %v3205
        %v3238 = vmul.f32 %v3206, %v3206
        %v3239 = vmul.f32 %v3207, %v3207
        %v3240 = vmul.f32 %v3208, %v3208
        %v3241 = vmul.f32 %v3209, %v3209
        %v3242 = vmul.f32 %v3210, %v3210
        %v3243 = vmul.f32 %v3211, %v3211
        %v3244 = vmul.f32 %v3212, %v3212
        %v3245 = vmul.f32 %v3213, %v3213
        %v3246 = vmul.f32 %v3214, %v3214
        %v3247 = vmul.f32 %v3215, %v3215
        %v3248 = vmul.f32 %v3216, %v3216
        %v3249 = vmul.f32 %v3217, %v3217
        %3282 = vrot.lane.b32.xlu0 %v3218, 112
        %v3283 = vpop.permute.xlu0 %3282
        %3284 = vrot.lane.b32.xlu0 %v3219, 112
        %v3285 = vpop.permute.xlu0 %3284
        %3286 = vrot.lane.b32.xlu0 %v3220, 112
        %v3287 = vpop.permute.xlu0 %3286
        %3288 = vrot.lane.b32.xlu0 %v3221, 112
        %v3289 = vpop.permute.xlu0 %3288
        %3290 = vrot.lane.b32.xlu0 %v3222, 112
        %v3291 = vpop.permute.xlu0 %3290
        %3292 = vrot.lane.b32.xlu0 %v3223, 112
        %v3293 = vpop.permute.xlu0 %3292
        %3294 = vrot.lane.b32.xlu0 %v3224, 112
        %v3295 = vpop.permute.xlu0 %3294
        %3296 = vrot.lane.b32.xlu0 %v3225, 112
        %v3297 = vpop.permute.xlu0 %3296
        %3298 = vrot.lane.b32.xlu0 %v3226, 112
        %v3299 = vpop.permute.xlu0 %3298
        %3300 = vrot.lane.b32.xlu0 %v3227, 112
        %v3301 = vpop.permute.xlu0 %3300
        %3302 = vrot.lane.b32.xlu0 %v3228, 112
        %v3303 = vpop.permute.xlu0 %3302
        %3304 = vrot.lane.b32.xlu0 %v3229, 112
        %v3305 = vpop.permute.xlu0 %3304
        %3306 = vrot.lane.b32.xlu0 %v3230, 112
        %v3307 = vpop.permute.xlu0 %3306
        %3308 = vrot.lane.b32.xlu0 %v3231, 112
        %v3309 = vpop.permute.xlu0 %3308
        %3310 = vrot.lane.b32.xlu0 %v3232, 112
        %v3311 = vpop.permute.xlu0 %3310
        %3312 = vrot.lane.b32.xlu0 %v3233, 112
        %v3313 = vpop.permute.xlu0 %3312
        %3314 = vrot.lane.b32.xlu0 %v3234, 112
        %v3315 = vpop.permute.xlu0 %3314
        %3316 = vrot.lane.b32.xlu0 %v3235, 112
        %v3317 = vpop.permute.xlu0 %3316
        %3318 = vrot.lane.b32.xlu0 %v3236, 112
        %v3319 = vpop.permute.xlu0 %3318
        %3320 = vrot.lane.b32.xlu0 %v3237, 112
        %v3321 = vpop.permute.xlu0 %3320
        %3322 = vrot.lane.b32.xlu0 %v3238, 112
        %v3323 = vpop.permute.xlu0 %3322
        %3324 = vrot.lane.b32.xlu0 %v3239, 112
        %v3325 = vpop.permute.xlu0 %3324
        %3326 = vrot.lane.b32.xlu0 %v3240, 112
        %v3327 = vpop.permute.xlu0 %3326
        %3328 = vrot.lane.b32.xlu0 %v3241, 112
        %v3329 = vpop.permute.xlu0 %3328
        %3330 = vrot.lane.b32.xlu0 %v3242, 112
        %v3331 = vpop.permute.xlu0 %3330
        %3332 = vrot.lane.b32.xlu0 %v3243, 112
        %v3333 = vpop.permute.xlu0 %3332
        %3334 = vrot.lane.b32.xlu0 %v3244, 112
        %v3335 = vpop.permute.xlu0 %3334
        %3336 = vrot.lane.b32.xlu0 %v3245, 112
        %v3337 = vpop.permute.xlu0 %3336
        %3338 = vrot.lane.b32.xlu0 %v3246, 112
        %v3339 = vpop.permute.xlu0 %3338
        %3340 = vrot.lane.b32.xlu0 %v3247, 112
        %v3341 = vpop.permute.xlu0 %3340
        %3342 = vrot.lane.b32.xlu0 %v3248, 112
        %v3343 = vpop.permute.xlu0 %3342
        %3344 = vrot.lane.b32.xlu0 %v3249, 112
        %v3345 = vpop.permute.xlu0 %3344
        %v3378 = vsel %vm754, %v3283, 0.0
        %3379 = vadd.xlane.f32.xlu0 %v3378
        %v3380 = vpop.xlane.xlu0 %3379
        %v3381 = vsel %vm754, %v3285, 0.0
        %3382 = vadd.xlane.f32.xlu0 %v3381
        %v3383 = vpop.xlane.xlu0 %3382
        %v3384 = vsel %vm754, %v3287, 0.0
        %3385 = vadd.xlane.f32.xlu0 %v3384
        %v3386 = vpop.xlane.xlu0 %3385
        %v3387 = vsel %vm754, %v3289, 0.0
        %3388 = vadd.xlane.f32.xlu0 %v3387
        %v3389 = vpop.xlane.xlu0 %3388
        %v3390 = vsel %vm754, %v3291, 0.0
        %3391 = vadd.xlane.f32.xlu0 %v3390
        %v3392 = vpop.xlane.xlu0 %3391
        %v3393 = vsel %vm754, %v3293, 0.0
        %3394 = vadd.xlane.f32.xlu0 %v3393
        %v3395 = vpop.xlane.xlu0 %3394
        %v3396 = vsel %vm754, %v3295, 0.0
        %3397 = vadd.xlane.f32.xlu0 %v3396
        %v3398 = vpop.xlane.xlu0 %3397
        %v3399 = vsel %vm754, %v3297, 0.0
        %3400 = vadd.xlane.f32.xlu0 %v3399
        %v3401 = vpop.xlane.xlu0 %3400
        %v3402 = vsel %vm754, %v3299, 0.0
        %3403 = vadd.xlane.f32.xlu0 %v3402
        %v3404 = vpop.xlane.xlu0 %3403
        %v3405 = vsel %vm754, %v3301, 0.0
        %3406 = vadd.xlane.f32.xlu0 %v3405
        %v3407 = vpop.xlane.xlu0 %3406
        %v3408 = vsel %vm754, %v3303, 0.0
        %3409 = vadd.xlane.f32.xlu0 %v3408
        %v3410 = vpop.xlane.xlu0 %3409
        %v3411 = vsel %vm754, %v3305, 0.0
        %3412 = vadd.xlane.f32.xlu0 %v3411
        %v3413 = vpop.xlane.xlu0 %3412
        %v3414 = vsel %vm754, %v3307, 0.0
        %3415 = vadd.xlane.f32.xlu0 %v3414
        %v3416 = vpop.xlane.xlu0 %3415
        %v3417 = vsel %vm754, %v3309, 0.0
        %3418 = vadd.xlane.f32.xlu0 %v3417
        %v3419 = vpop.xlane.xlu0 %3418
        %v3420 = vsel %vm754, %v3311, 0.0
        %3421 = vadd.xlane.f32.xlu0 %v3420
        %v3422 = vpop.xlane.xlu0 %3421
        %v3423 = vsel %vm754, %v3313, 0.0
        %3424 = vadd.xlane.f32.xlu0 %v3423
        %v3425 = vpop.xlane.xlu0 %3424
        %v3426 = vsel %vm754, %v3315, 0.0
        %3427 = vadd.xlane.f32.xlu0 %v3426
        %v3428 = vpop.xlane.xlu0 %3427
        %v3429 = vsel %vm754, %v3317, 0.0
        %3430 = vadd.xlane.f32.xlu0 %v3429
        %v3431 = vpop.xlane.xlu0 %3430
        %v3432 = vsel %vm754, %v3319, 0.0
        %3433 = vadd.xlane.f32.xlu0 %v3432
        %v3434 = vpop.xlane.xlu0 %3433
        %v3435 = vsel %vm754, %v3321, 0.0
        %3436 = vadd.xlane.f32.xlu0 %v3435
        %v3437 = vpop.xlane.xlu0 %3436
        %v3438 = vsel %vm754, %v3323, 0.0
        %3439 = vadd.xlane.f32.xlu0 %v3438
        %v3440 = vpop.xlane.xlu0 %3439
        %v3441 = vsel %vm754, %v3325, 0.0
        %3442 = vadd.xlane.f32.xlu0 %v3441
        %v3443 = vpop.xlane.xlu0 %3442
        %v3444 = vsel %vm754, %v3327, 0.0
        %3445 = vadd.xlane.f32.xlu0 %v3444
        %v3446 = vpop.xlane.xlu0 %3445
        %v3447 = vsel %vm754, %v3329, 0.0
        %3448 = vadd.xlane.f32.xlu0 %v3447
        %v3449 = vpop.xlane.xlu0 %3448
        %v3450 = vsel %vm754, %v3331, 0.0
        %3451 = vadd.xlane.f32.xlu0 %v3450
        %v3452 = vpop.xlane.xlu0 %3451
        %v3453 = vsel %vm754, %v3333, 0.0
        %3454 = vadd.xlane.f32.xlu0 %v3453
        %v3455 = vpop.xlane.xlu0 %3454
        %v3456 = vsel %vm754, %v3335, 0.0
        %3457 = vadd.xlane.f32.xlu0 %v3456
        %v3458 = vpop.xlane.xlu0 %3457
        %v3459 = vsel %vm754, %v3337, 0.0
        %3460 = vadd.xlane.f32.xlu0 %v3459
        %v3461 = vpop.xlane.xlu0 %3460
        %v3462 = vsel %vm754, %v3339, 0.0
        %3463 = vadd.xlane.f32.xlu0 %v3462
        %v3464 = vpop.xlane.xlu0 %3463
        %v3465 = vsel %vm754, %v3341, 0.0
        %3466 = vadd.xlane.f32.xlu0 %v3465
        %v3467 = vpop.xlane.xlu0 %3466
        %v3468 = vsel %vm754, %v3343, 0.0
        %3469 = vadd.xlane.f32.xlu0 %v3468
        %v3470 = vpop.xlane.xlu0 %3469
        %v3471 = vsel %vm754, %v3345, 0.0
        %3472 = vadd.xlane.f32.xlu0 %v3471
        %v3473 = vpop.xlane.xlu0 %3472
        %v3474 = vrsqrt.pop %v3380
        %v3475 = vmul.f32 %v3380, %v3474
        %vm3476 = vcmp.eq.f32.partialorder %v3380, inf
        %v3477 = vsel %vm3476, %v3380, %v3475
        %vm3478 = vcmp.eq.f32.partialorder %v3380, 0.0
        %v3479 = vand.u32 %v3380, 2147483648
        %v3480 = vsel %vm3478, %v3479, %v3477
        %v3481 = vrsqrt.pop %v3383
        %v3482 = vmul.f32 %v3383, %v3481
        %vm3483 = vcmp.eq.f32.partialorder %v3383, inf
        %v3484 = vsel %vm3483, %v3383, %v3482
        %vm3485 = vcmp.eq.f32.partialorder %v3383, 0.0
        %v3486 = vand.u32 %v3383, 2147483648
        %v3487 = vsel %vm3485, %v3486, %v3484
        %v3488 = vrsqrt.pop %v3386
        %v3489 = vmul.f32 %v3386, %v3488
        %vm3490 = vcmp.eq.f32.partialorder %v3386, inf
        %v3491 = vsel %vm3490, %v3386, %v3489
        %vm3492 = vcmp.eq.f32.partialorder %v3386, 0.0
        %v3493 = vand.u32 %v3386, 2147483648
        %v3494 = vsel %vm3492, %v3493, %v3491
        %v3495 = vrsqrt.pop %v3389
        %v3496 = vmul.f32 %v3389, %v3495
        %vm3497 = vcmp.eq.f32.partialorder %v3389, inf
        %v3498 = vsel %vm3497, %v3389, %v3496
        %vm3499 = vcmp.eq.f32.partialorder %v3389, 0.0
        %v3500 = vand.u32 %v3389, 2147483648
        %v3501 = vsel %vm3499, %v3500, %v3498
        %v3502 = vrsqrt.pop %v3392
        %v3503 = vmul.f32 %v3392, %v3502
        %vm3504 = vcmp.eq.f32.partialorder %v3392, inf
        %v3505 = vsel %vm3504, %v3392, %v3503
        %vm3506 = vcmp.eq.f32.partialorder %v3392, 0.0
        %v3507 = vand.u32 %v3392, 2147483648
        %v3508 = vsel %vm3506, %v3507, %v3505
        %v3509 = vrsqrt.pop %v3395
        %v3510 = vmul.f32 %v3395, %v3509
        %vm3511 = vcmp.eq.f32.partialorder %v3395, inf
        %v3512 = vsel %vm3511, %v3395, %v3510
        %vm3513 = vcmp.eq.f32.partialorder %v3395, 0.0
        %v3514 = vand.u32 %v3395, 2147483648
        %v3515 = vsel %vm3513, %v3514, %v3512
        %v3516 = vrsqrt.pop %v3398
        %v3517 = vmul.f32 %v3398, %v3516
        %vm3518 = vcmp.eq.f32.partialorder %v3398, inf
        %v3519 = vsel %vm3518, %v3398, %v3517
        %vm3520 = vcmp.eq.f32.partialorder %v3398, 0.0
        %v3521 = vand.u32 %v3398, 2147483648
        %v3522 = vsel %vm3520, %v3521, %v3519
        %v3523 = vrsqrt.pop %v3401
        %v3524 = vmul.f32 %v3401, %v3523
        %vm3525 = vcmp.eq.f32.partialorder %v3401, inf
        %v3526 = vsel %vm3525, %v3401, %v3524
        %vm3527 = vcmp.eq.f32.partialorder %v3401, 0.0
        %v3528 = vand.u32 %v3401, 2147483648
        %v3529 = vsel %vm3527, %v3528, %v3526
        %v3530 = vrsqrt.pop %v3404
        %v3531 = vmul.f32 %v3404, %v3530
        %vm3532 = vcmp.eq.f32.partialorder %v3404, inf
        %v3533 = vsel %vm3532, %v3404, %v3531
        %vm3534 = vcmp.eq.f32.partialorder %v3404, 0.0
        %v3535 = vand.u32 %v3404, 2147483648
        %v3536 = vsel %vm3534, %v3535, %v3533
        %v3537 = vrsqrt.pop %v3407
        %v3538 = vmul.f32 %v3407, %v3537
        %vm3539 = vcmp.eq.f32.partialorder %v3407, inf
        %v3540 = vsel %vm3539, %v3407, %v3538
        %vm3541 = vcmp.eq.f32.partialorder %v3407, 0.0
        %v3542 = vand.u32 %v3407, 2147483648
        %v3543 = vsel %vm3541, %v3542, %v3540
        %v3544 = vrsqrt.pop %v3410
        %v3545 = vmul.f32 %v3410, %v3544
        %vm3546 = vcmp.eq.f32.partialorder %v3410, inf
        %v3547 = vsel %vm3546, %v3410, %v3545
        %vm3548 = vcmp.eq.f32.partialorder %v3410, 0.0
        %v3549 = vand.u32 %v3410, 2147483648
        %v3550 = vsel %vm3548, %v3549, %v3547
        %v3551 = vrsqrt.pop %v3413
        %v3552 = vmul.f32 %v3413, %v3551
        %vm3553 = vcmp.eq.f32.partialorder %v3413, inf
        %v3554 = vsel %vm3553, %v3413, %v3552
        %vm3555 = vcmp.eq.f32.partialorder %v3413, 0.0
        %v3556 = vand.u32 %v3413, 2147483648
        %v3557 = vsel %vm3555, %v3556, %v3554
        %v3558 = vrsqrt.pop %v3416
        %v3559 = vmul.f32 %v3416, %v3558
        %vm3560 = vcmp.eq.f32.partialorder %v3416, inf
        %v3561 = vsel %vm3560, %v3416, %v3559
        %vm3562 = vcmp.eq.f32.partialorder %v3416, 0.0
        %v3563 = vand.u32 %v3416, 2147483648
        %v3564 = vsel %vm3562, %v3563, %v3561
        %v3565 = vrsqrt.pop %v3419
        %v3566 = vmul.f32 %v3419, %v3565
        %vm3567 = vcmp.eq.f32.partialorder %v3419, inf
        %v3568 = vsel %vm3567, %v3419, %v3566
        %vm3569 = vcmp.eq.f32.partialorder %v3419, 0.0
        %v3570 = vand.u32 %v3419, 2147483648
        %v3571 = vsel %vm3569, %v3570, %v3568
        %v3572 = vrsqrt.pop %v3422
        %v3573 = vmul.f32 %v3422, %v3572
        %vm3574 = vcmp.eq.f32.partialorder %v3422, inf
        %v3575 = vsel %vm3574, %v3422, %v3573
        %vm3576 = vcmp.eq.f32.partialorder %v3422, 0.0
        %v3577 = vand.u32 %v3422, 2147483648
        %v3578 = vsel %vm3576, %v3577, %v3575
        %v3579 = vrsqrt.pop %v3425
        %v3580 = vmul.f32 %v3425, %v3579
        %vm3581 = vcmp.eq.f32.partialorder %v3425, inf
        %v3582 = vsel %vm3581, %v3425, %v3580
        %vm3583 = vcmp.eq.f32.partialorder %v3425, 0.0
        %v3584 = vand.u32 %v3425, 2147483648
        %v3585 = vsel %vm3583, %v3584, %v3582
        %v3586 = vrsqrt.pop %v3428
        %v3587 = vmul.f32 %v3428, %v3586
        %vm3588 = vcmp.eq.f32.partialorder %v3428, inf
        %v3589 = vsel %vm3588, %v3428, %v3587
        %vm3590 = vcmp.eq.f32.partialorder %v3428, 0.0
        %v3591 = vand.u32 %v3428, 2147483648
        %v3592 = vsel %vm3590, %v3591, %v3589
        %v3593 = vrsqrt.pop %v3431
        %v3594 = vmul.f32 %v3431, %v3593
        %vm3595 = vcmp.eq.f32.partialorder %v3431, inf
        %v3596 = vsel %vm3595, %v3431, %v3594
        %vm3597 = vcmp.eq.f32.partialorder %v3431, 0.0
        %v3598 = vand.u32 %v3431, 2147483648
        %v3599 = vsel %vm3597, %v3598, %v3596
        %v3600 = vrsqrt.pop %v3434
        %v3601 = vmul.f32 %v3434, %v3600
        %vm3602 = vcmp.eq.f32.partialorder %v3434, inf
        %v3603 = vsel %vm3602, %v3434, %v3601
        %vm3604 = vcmp.eq.f32.partialorder %v3434, 0.0
        %v3605 = vand.u32 %v3434, 2147483648
        %v3606 = vsel %vm3604, %v3605, %v3603
        %v3607 = vrsqrt.pop %v3437
        %v3608 = vmul.f32 %v3437, %v3607
        %vm3609 = vcmp.eq.f32.partialorder %v3437, inf
        %v3610 = vsel %vm3609, %v3437, %v3608
        %vm3611 = vcmp.eq.f32.partialorder %v3437, 0.0
        %v3612 = vand.u32 %v3437, 2147483648
        %v3613 = vsel %vm3611, %v3612, %v3610
        %v3614 = vrsqrt.pop %v3440
        %v3615 = vmul.f32 %v3440, %v3614
        %vm3616 = vcmp.eq.f32.partialorder %v3440, inf
        %v3617 = vsel %vm3616, %v3440, %v3615
        %vm3618 = vcmp.eq.f32.partialorder %v3440, 0.0
        %v3619 = vand.u32 %v3440, 2147483648
        %v3620 = vsel %vm3618, %v3619, %v3617
        %v3621 = vrsqrt.pop %v3443
        %v3622 = vmul.f32 %v3443, %v3621
        %vm3623 = vcmp.eq.f32.partialorder %v3443, inf
        %v3624 = vsel %vm3623, %v3443, %v3622
        %vm3625 = vcmp.eq.f32.partialorder %v3443, 0.0
        %v3626 = vand.u32 %v3443, 2147483648
        %v3627 = vsel %vm3625, %v3626, %v3624
        %v3628 = vrsqrt.pop %v3446
        %v3629 = vmul.f32 %v3446, %v3628
        %vm3630 = vcmp.eq.f32.partialorder %v3446, inf
        %v3631 = vsel %vm3630, %v3446, %v3629
        %vm3632 = vcmp.eq.f32.partialorder %v3446, 0.0
        %v3633 = vand.u32 %v3446, 2147483648
        %v3634 = vsel %vm3632, %v3633, %v3631
        %v3635 = vrsqrt.pop %v3449
        %v3636 = vmul.f32 %v3449, %v3635
        %vm3637 = vcmp.eq.f32.partialorder %v3449, inf
        %v3638 = vsel %vm3637, %v3449, %v3636
        %vm3639 = vcmp.eq.f32.partialorder %v3449, 0.0
        %v3640 = vand.u32 %v3449, 2147483648
        %v3641 = vsel %vm3639, %v3640, %v3638
        %v3642 = vrsqrt.pop %v3452
        %v3643 = vmul.f32 %v3452, %v3642
        %vm3644 = vcmp.eq.f32.partialorder %v3452, inf
        %v3645 = vsel %vm3644, %v3452, %v3643
        %vm3646 = vcmp.eq.f32.partialorder %v3452, 0.0
        %v3647 = vand.u32 %v3452, 2147483648
        %v3648 = vsel %vm3646, %v3647, %v3645
        %v3649 = vrsqrt.pop %v3455
        %v3650 = vmul.f32 %v3455, %v3649
        %vm3651 = vcmp.eq.f32.partialorder %v3455, inf
        %v3652 = vsel %vm3651, %v3455, %v3650
        %vm3653 = vcmp.eq.f32.partialorder %v3455, 0.0
        %v3654 = vand.u32 %v3455, 2147483648
        %v3655 = vsel %vm3653, %v3654, %v3652
        %v3656 = vrsqrt.pop %v3458
        %v3657 = vmul.f32 %v3458, %v3656
        %vm3658 = vcmp.eq.f32.partialorder %v3458, inf
        %v3659 = vsel %vm3658, %v3458, %v3657
        %vm3660 = vcmp.eq.f32.partialorder %v3458, 0.0
        %v3661 = vand.u32 %v3458, 2147483648
        %v3662 = vsel %vm3660, %v3661, %v3659
        %v3663 = vrsqrt.pop %v3461
        %v3664 = vmul.f32 %v3461, %v3663
        %vm3665 = vcmp.eq.f32.partialorder %v3461, inf
        %v3666 = vsel %vm3665, %v3461, %v3664
        %vm3667 = vcmp.eq.f32.partialorder %v3461, 0.0
        %v3668 = vand.u32 %v3461, 2147483648
        %v3669 = vsel %vm3667, %v3668, %v3666
        %v3670 = vrsqrt.pop %v3464
        %v3671 = vmul.f32 %v3464, %v3670
        %vm3672 = vcmp.eq.f32.partialorder %v3464, inf
        %v3673 = vsel %vm3672, %v3464, %v3671
        %vm3674 = vcmp.eq.f32.partialorder %v3464, 0.0
        %v3675 = vand.u32 %v3464, 2147483648
        %v3676 = vsel %vm3674, %v3675, %v3673
        %v3677 = vrsqrt.pop %v3467
        %v3678 = vmul.f32 %v3467, %v3677
        %vm3679 = vcmp.eq.f32.partialorder %v3467, inf
        %v3680 = vsel %vm3679, %v3467, %v3678
        %vm3681 = vcmp.eq.f32.partialorder %v3467, 0.0
        %v3682 = vand.u32 %v3467, 2147483648
        %v3683 = vsel %vm3681, %v3682, %v3680
        %v3684 = vrsqrt.pop %v3470
        %v3685 = vmul.f32 %v3470, %v3684
        %vm3686 = vcmp.eq.f32.partialorder %v3470, inf
        %v3687 = vsel %vm3686, %v3470, %v3685
        %vm3688 = vcmp.eq.f32.partialorder %v3470, 0.0
        %v3689 = vand.u32 %v3470, 2147483648
        %v3690 = vsel %vm3688, %v3689, %v3687
        %v3691 = vrsqrt.pop %v3473
        %v3692 = vmul.f32 %v3473, %v3691
        %vm3693 = vcmp.eq.f32.partialorder %v3473, inf
        %v3694 = vsel %vm3693, %v3473, %v3692
        %vm3695 = vcmp.eq.f32.partialorder %v3473, 0.0
        %v3696 = vand.u32 %v3473, 2147483648
        %v3697 = vsel %vm3695, %v3696, %v3694
        %3700 = vrot.lane.b32.xlu0 %v1241, 112
        %v3701 = vpop.permute.xlu0 %3700
        %3702 = vrot.lane.b32.xlu0 %v1242, 112
        %v3703 = vpop.permute.xlu0 %3702
        %v3706 = vsel %vm754, %v3701, 0.0
        %3707 = vadd.xlane.f32.xlu0 %v3706
        %v3708 = vpop.xlane.xlu0 %3707
        %v3709 = vsel %vm754, %v3703, 0.0
        %3710 = vadd.xlane.f32.xlu0 %v3709
        %v3711 = vpop.xlane.xlu0 %3710
        %v3712 = vrsqrt.pop %v3708
        %v3713 = vmul.f32 %v3708, %v3712
        %vm3714 = vcmp.eq.f32.partialorder %v3708, inf
        %v3715 = vsel %vm3714, %v3708, %v3713
        %vm3716 = vcmp.eq.f32.partialorder %v3708, 0.0
        %v3717 = vand.u32 %v3708, 2147483648
        %v3718 = vsel %vm3716, %v3717, %v3715
        %v3719 = vrsqrt.pop %v3711
        %v3720 = vmul.f32 %v3711, %v3719
        %vm3721 = vcmp.eq.f32.partialorder %v3711, inf
        %v3722 = vsel %vm3721, %v3711, %v3720
        %vm3723 = vcmp.eq.f32.partialorder %v3711, 0.0
        %v3724 = vand.u32 %v3711, 2147483648
        %v3725 = vsel %vm3723, %v3724, %v3722
        %3726 = vrot.lane.b32.xlu0 %v541, 112
        %v3727 = vpop.permute.xlu0 %3726
        %3728 = vrot.lane.b32.xlu0 %v541, 80
        %v3729 = vpop.permute.xlu0 %3728
        %v3762 = vlaneseq
        %v3763 = vshrl.u32 %v3762, 7
        %v3764 = vsub.s32 %v476, %v3763
        %v3765 = vrot.slane %v3092, %v3764
        %v3766 = vlaneseq
        %v3767 = vshrl.u32 %v3766, 7
        %v3768 = vsub.s32 %v1302, %v3767
        %v3769 = vrot.slane %v3095, %v3768
        %v3770 = vsel %vm1307, %v3769, %v3765
        %v3771 = vlaneseq
        %v3772 = vshrl.u32 %v3771, 7
        %v3773 = vsub.s32 %v476, %v3772
        %v3774 = vrot.slane %v3098, %v3773
        %v3775 = vlaneseq
        %v3776 = vshrl.u32 %v3775, 7
        %v3777 = vsub.s32 %v1302, %v3776
        %v3778 = vrot.slane %v3101, %v3777
        %v3779 = vsel %vm1307, %v3778, %v3774
        %v3780 = vlaneseq
        %v3781 = vshrl.u32 %v3780, 7
        %v3782 = vsub.s32 %v476, %v3781
        %v3783 = vrot.slane %v3104, %v3782
        %v3784 = vlaneseq
        %v3785 = vshrl.u32 %v3784, 7
        %v3786 = vsub.s32 %v1302, %v3785
        %v3787 = vrot.slane %v3107, %v3786
        %v3788 = vsel %vm1307, %v3787, %v3783
        %v3789 = vlaneseq
        %v3790 = vshrl.u32 %v3789, 7
        %v3791 = vsub.s32 %v476, %v3790
        %v3792 = vrot.slane %v3110, %v3791
        %v3793 = vlaneseq
        %v3794 = vshrl.u32 %v3793, 7
        %v3795 = vsub.s32 %v1302, %v3794
        %v3796 = vrot.slane %v3113, %v3795
        %v3797 = vsel %vm1307, %v3796, %v3792
        %v3798 = vlaneseq
        %v3799 = vshrl.u32 %v3798, 7
        %v3800 = vsub.s32 %v476, %v3799
        %v3801 = vrot.slane %v3116, %v3800
        %v3802 = vlaneseq
        %v3803 = vshrl.u32 %v3802, 7
        %v3804 = vsub.s32 %v1302, %v3803
        %v3805 = vrot.slane %v3119, %v3804
        %v3806 = vsel %vm1307, %v3805, %v3801
        %v3807 = vlaneseq
        %v3808 = vshrl.u32 %v3807, 7
        %v3809 = vsub.s32 %v476, %v3808
        %v3810 = vrot.slane %v3122, %v3809
        %v3811 = vlaneseq
        %v3812 = vshrl.u32 %v3811, 7
        %v3813 = vsub.s32 %v1302, %v3812
        %v3814 = vrot.slane %v3125, %v3813
        %v3815 = vsel %vm1307, %v3814, %v3810
        %v3816 = vlaneseq
        %v3817 = vshrl.u32 %v3816, 7
        %v3818 = vsub.s32 %v476, %v3817
        %v3819 = vrot.slane %v3128, %v3818
        %v3820 = vlaneseq
        %v3821 = vshrl.u32 %v3820, 7
        %v3822 = vsub.s32 %v1302, %v3821
        %v3823 = vrot.slane %v3131, %v3822
        %v3824 = vsel %vm1307, %v3823, %v3819
        %v3825 = vlaneseq
        %v3826 = vshrl.u32 %v3825, 7
        %v3827 = vsub.s32 %v476, %v3826
        %v3828 = vrot.slane %v3134, %v3827
        %v3829 = vlaneseq
        %v3830 = vshrl.u32 %v3829, 7
        %v3831 = vsub.s32 %v1302, %v3830
        %v3832 = vrot.slane %v3137, %v3831
        %v3833 = vsel %vm1307, %v3832, %v3828
        %v3834 = vlaneseq
        %v3835 = vshrl.u32 %v3834, 7
        %v3836 = vsub.s32 %v476, %v3835
        %v3837 = vrot.slane %v3140, %v3836
        %v3838 = vlaneseq
        %v3839 = vshrl.u32 %v3838, 7
        %v3840 = vsub.s32 %v1302, %v3839
        %v3841 = vrot.slane %v3143, %v3840
        %v3842 = vsel %vm1307, %v3841, %v3837
        %v3843 = vlaneseq
        %v3844 = vshrl.u32 %v3843, 7
        %v3845 = vsub.s32 %v476, %v3844
        %v3846 = vrot.slane %v3146, %v3845
        %v3847 = vlaneseq
        %v3848 = vshrl.u32 %v3847, 7
        %v3849 = vsub.s32 %v1302, %v3848
        %v3850 = vrot.slane %v3149, %v3849
        %v3851 = vsel %vm1307, %v3850, %v3846
        %v3852 = vlaneseq
        %v3853 = vshrl.u32 %v3852, 7
        %v3854 = vsub.s32 %v476, %v3853
        %v3855 = vrot.slane %v3152, %v3854
        %v3856 = vlaneseq
        %v3857 = vshrl.u32 %v3856, 7
        %v3858 = vsub.s32 %v1302, %v3857
        %v3859 = vrot.slane %v3155, %v3858
        %v3860 = vsel %vm1307, %v3859, %v3855
        %v3861 = vlaneseq
        %v3862 = vshrl.u32 %v3861, 7
        %v3863 = vsub.s32 %v476, %v3862
        %v3864 = vrot.slane %v3158, %v3863
        %v3865 = vlaneseq
        %v3866 = vshrl.u32 %v3865, 7
        %v3867 = vsub.s32 %v1302, %v3866
        %v3868 = vrot.slane %v3161, %v3867
        %v3869 = vsel %vm1307, %v3868, %v3864
        %v3870 = vlaneseq
        %v3871 = vshrl.u32 %v3870, 7
        %v3872 = vsub.s32 %v476, %v3871
        %v3873 = vrot.slane %v3164, %v3872
        %v3874 = vlaneseq
        %v3875 = vshrl.u32 %v3874, 7
        %v3876 = vsub.s32 %v1302, %v3875
        %v3877 = vrot.slane %v3167, %v3876
        %v3878 = vsel %vm1307, %v3877, %v3873
        %v3879 = vlaneseq
        %v3880 = vshrl.u32 %v3879, 7
        %v3881 = vsub.s32 %v476, %v3880
        %v3882 = vrot.slane %v3170, %v3881
        %v3883 = vlaneseq
        %v3884 = vshrl.u32 %v3883, 7
        %v3885 = vsub.s32 %v1302, %v3884
        %v3886 = vrot.slane %v3173, %v3885
        %v3887 = vsel %vm1307, %v3886, %v3882
        %v3888 = vlaneseq
        %v3889 = vshrl.u32 %v3888, 7
        %v3890 = vsub.s32 %v476, %v3889
        %v3891 = vrot.slane %v3176, %v3890
        %v3892 = vlaneseq
        %v3893 = vshrl.u32 %v3892, 7
        %v3894 = vsub.s32 %v1302, %v3893
        %v3895 = vrot.slane %v3179, %v3894
        %v3896 = vsel %vm1307, %v3895, %v3891
        %v3897 = vlaneseq
        %v3898 = vshrl.u32 %v3897, 7
        %v3899 = vsub.s32 %v476, %v3898
        %v3900 = vrot.slane %v3182, %v3899
        %v3901 = vlaneseq
        %v3902 = vshrl.u32 %v3901, 7
        %v3903 = vsub.s32 %v1302, %v3902
        %v3904 = vrot.slane %v3185, %v3903
        %v3905 = vsel %vm1307, %v3904, %v3900
        %v3906 = vsel %vm1444, %v3779, %v3770
        %v3907 = vsel %vm1446, %v3788, %v3906
        %v3908 = vsel %vm1448, %v3797, %v3907
        %v3909 = vsel %vm1450, %v3806, %v3908
        %v3910 = vsel %vm1452, %v3815, %v3909
        %v3911 = vsel %vm1454, %v3824, %v3910
        %v3912 = vsel %vm1456, %v3833, %v3911
        %v3913 = vsel %vm1444, %v3851, %v3842
        %v3914 = vsel %vm1446, %v3860, %v3913
        %v3915 = vsel %vm1448, %v3869, %v3914
        %v3916 = vsel %vm1450, %v3878, %v3915
        %v3917 = vsel %vm1452, %v3887, %v3916
        %v3918 = vsel %vm1454, %v3896, %v3917
        %v3919 = vsel %vm1456, %v3905, %v3918
        %v3923 = vsel %vm754, %v3727, 0
        %v3926 = vsel %vm754, %v3729, 0
        %3928 = vmatprep.subr.bf16.mxu0 0
        %3929 = vmatpush1.bf16.xpose.msra.mxu0 %v3926
        %3930 = vmatprep.subr.bf16.mxu0 0
        %3931 = vmatpush1.bf16.xpose.msra.mxu0 0
        %3932 = vmatprep.subr.bf16.mxu0 0
        %3933 = vmatpush1.bf16.xpose.msra.mxu0 0
        %3934 = vmatprep.subr.bf16.mxu0 0
        %3935 = vmatpush1.bf16.xpose.msra.mxu0 0
        %3936 = vmatprep.subr.bf16.mxu0 0
        %3937 = vmatpush1.bf16.xpose.msra.mxu0 0
        %3938 = vmatprep.subr.bf16.mxu0 0
        %3939 = vmatpush1.bf16.xpose.msra.mxu0 0
        %3940 = vmatprep.subr.bf16.mxu0 0
        %3941 = vmatpush1.bf16.xpose.msra.mxu0 0
        %3942 = vmatprep.subr.bf16.mxu0 0
        %3943 = vmatpush1.bf16.xpose.msra.mxu0 0
        %3944 = vmatprep.subr.bf16.mxu0 0
        %3945 = vmatpush1.bf16.xpose.msra.mxu0 0
        %3946 = vmatprep.subr.bf16.mxu0 0
        %3947 = vmatpush1.bf16.xpose.msra.mxu0 0
        %3948 = vmatprep.subr.bf16.mxu0 0
        %3949 = vmatpush1.bf16.xpose.msra.mxu0 0
        %3950 = vmatprep.subr.bf16.mxu0 0
        %3951 = vmatpush1.bf16.xpose.msra.mxu0 0
        %3952 = vmatprep.subr.bf16.mxu0 0
        %3953 = vmatpush1.bf16.xpose.msra.mxu0 0
        %3954 = vmatprep.subr.bf16.mxu0 0
        %3955 = vmatpush1.bf16.xpose.msra.mxu0 0
        %3956 = vmatprep.subr.bf16.mxu0 0
        %3957 = vmatpush1.bf16.xpose.msra.mxu0 0
        %3958 = vmatprep.subr.bf16.mxu0 0
        %3959 = vmatpush1.bf16.xpose.msra.mxu0 0
        %3960 = vmatprep.mubr.bf16.mxu0 0
        %3961 = vmatmul.mubr.bf16.gmra.mrb[0].mxu0 %v3923
        %v3962 = vpop.f32.mrb[0].mxu0
        %v3963 = vadd.f32 %v3912, %v3962
        %v3964 = vpop.f32.mrb[0].mxu0
        %v3965 = vpop.f32.mrb[0].mxu0
        %v3966 = vadd.f32 %v3919, %v3965
        %v3967 = vpop.f32.mrb[0].mxu0
        %3968 = vdwg.mxu0
        %v4001 = vlaneseq
        %v4002 = vshrl.u32 %v4001, 7
        %v4003 = vsub.s32 %v476, %v4002
        %v4004 = vrot.slane %v3480, %v4003
        %v4005 = vlaneseq
        %v4006 = vshrl.u32 %v4005, 7
        %v4007 = vsub.s32 %v1302, %v4006
        %v4008 = vrot.slane %v3487, %v4007
        %v4009 = vsel %vm1307, %v4008, %v4004
        %v4010 = vlaneseq
        %v4011 = vshrl.u32 %v4010, 7
        %v4012 = vsub.s32 %v476, %v4011
        %v4013 = vrot.slane %v3494, %v4012
        %v4014 = vlaneseq
        %v4015 = vshrl.u32 %v4014, 7
        %v4016 = vsub.s32 %v1302, %v4015
        %v4017 = vrot.slane %v3501, %v4016
        %v4018 = vsel %vm1307, %v4017, %v4013
        %v4019 = vlaneseq
        %v4020 = vshrl.u32 %v4019, 7
        %v4021 = vsub.s32 %v476, %v4020
        %v4022 = vrot.slane %v3508, %v4021
        %v4023 = vlaneseq
        %v4024 = vshrl.u32 %v4023, 7
        %v4025 = vsub.s32 %v1302, %v4024
        %v4026 = vrot.slane %v3515, %v4025
        %v4027 = vsel %vm1307, %v4026, %v4022
        %v4028 = vlaneseq
        %v4029 = vshrl.u32 %v4028, 7
        %v4030 = vsub.s32 %v476, %v4029
        %v4031 = vrot.slane %v3522, %v4030
        %v4032 = vlaneseq
        %v4033 = vshrl.u32 %v4032, 7
        %v4034 = vsub.s32 %v1302, %v4033
        %v4035 = vrot.slane %v3529, %v4034
        %v4036 = vsel %vm1307, %v4035, %v4031
        %v4037 = vlaneseq
        %v4038 = vshrl.u32 %v4037, 7
        %v4039 = vsub.s32 %v476, %v4038
        %v4040 = vrot.slane %v3536, %v4039
        %v4041 = vlaneseq
        %v4042 = vshrl.u32 %v4041, 7
        %v4043 = vsub.s32 %v1302, %v4042
        %v4044 = vrot.slane %v3543, %v4043
        %v4045 = vsel %vm1307, %v4044, %v4040
        %v4046 = vlaneseq
        %v4047 = vshrl.u32 %v4046, 7
        %v4048 = vsub.s32 %v476, %v4047
        %v4049 = vrot.slane %v3550, %v4048
        %v4050 = vlaneseq
        %v4051 = vshrl.u32 %v4050, 7
        %v4052 = vsub.s32 %v1302, %v4051
        %v4053 = vrot.slane %v3557, %v4052
        %v4054 = vsel %vm1307, %v4053, %v4049
        %v4055 = vlaneseq
        %v4056 = vshrl.u32 %v4055, 7
        %v4057 = vsub.s32 %v476, %v4056
        %v4058 = vrot.slane %v3564, %v4057
        %v4059 = vlaneseq
        %v4060 = vshrl.u32 %v4059, 7
        %v4061 = vsub.s32 %v1302, %v4060
        %v4062 = vrot.slane %v3571, %v4061
        %v4063 = vsel %vm1307, %v4062, %v4058
        %v4064 = vlaneseq
        %v4065 = vshrl.u32 %v4064, 7
        %v4066 = vsub.s32 %v476, %v4065
        %v4067 = vrot.slane %v3578, %v4066
        %v4068 = vlaneseq
        %v4069 = vshrl.u32 %v4068, 7
        %v4070 = vsub.s32 %v1302, %v4069
        %v4071 = vrot.slane %v3585, %v4070
        %v4072 = vsel %vm1307, %v4071, %v4067
        %v4073 = vlaneseq
        %v4074 = vshrl.u32 %v4073, 7
        %v4075 = vsub.s32 %v476, %v4074
        %v4076 = vrot.slane %v3592, %v4075
        %v4077 = vlaneseq
        %v4078 = vshrl.u32 %v4077, 7
        %v4079 = vsub.s32 %v1302, %v4078
        %v4080 = vrot.slane %v3599, %v4079
        %v4081 = vsel %vm1307, %v4080, %v4076
        %v4082 = vlaneseq
        %v4083 = vshrl.u32 %v4082, 7
        %v4084 = vsub.s32 %v476, %v4083
        %v4085 = vrot.slane %v3606, %v4084
        %v4086 = vlaneseq
        %v4087 = vshrl.u32 %v4086, 7
        %v4088 = vsub.s32 %v1302, %v4087
        %v4089 = vrot.slane %v3613, %v4088
        %v4090 = vsel %vm1307, %v4089, %v4085
        %v4091 = vlaneseq
        %v4092 = vshrl.u32 %v4091, 7
        %v4093 = vsub.s32 %v476, %v4092
        %v4094 = vrot.slane %v3620, %v4093
        %v4095 = vlaneseq
        %v4096 = vshrl.u32 %v4095, 7
        %v4097 = vsub.s32 %v1302, %v4096
        %v4098 = vrot.slane %v3627, %v4097
        %v4099 = vsel %vm1307, %v4098, %v4094
        %v4100 = vlaneseq
        %v4101 = vshrl.u32 %v4100, 7
        %v4102 = vsub.s32 %v476, %v4101
        %v4103 = vrot.slane %v3634, %v4102
        %v4104 = vlaneseq
        %v4105 = vshrl.u32 %v4104, 7
        %v4106 = vsub.s32 %v1302, %v4105
        %v4107 = vrot.slane %v3641, %v4106
        %v4108 = vsel %vm1307, %v4107, %v4103
        %v4109 = vlaneseq
        %v4110 = vshrl.u32 %v4109, 7
        %v4111 = vsub.s32 %v476, %v4110
        %v4112 = vrot.slane %v3648, %v4111
        %v4113 = vlaneseq
        %v4114 = vshrl.u32 %v4113, 7
        %v4115 = vsub.s32 %v1302, %v4114
        %v4116 = vrot.slane %v3655, %v4115
        %v4117 = vsel %vm1307, %v4116, %v4112
        %v4118 = vlaneseq
        %v4119 = vshrl.u32 %v4118, 7
        %v4120 = vsub.s32 %v476, %v4119
        %v4121 = vrot.slane %v3662, %v4120
        %v4122 = vlaneseq
        %v4123 = vshrl.u32 %v4122, 7
        %v4124 = vsub.s32 %v1302, %v4123
        %v4125 = vrot.slane %v3669, %v4124
        %v4126 = vsel %vm1307, %v4125, %v4121
        %v4127 = vlaneseq
        %v4128 = vshrl.u32 %v4127, 7
        %v4129 = vsub.s32 %v476, %v4128
        %v4130 = vrot.slane %v3676, %v4129
        %v4131 = vlaneseq
        %v4132 = vshrl.u32 %v4131, 7
        %v4133 = vsub.s32 %v1302, %v4132
        %v4134 = vrot.slane %v3683, %v4133
        %v4135 = vsel %vm1307, %v4134, %v4130
        %v4136 = vlaneseq
        %v4137 = vshrl.u32 %v4136, 7
        %v4138 = vsub.s32 %v476, %v4137
        %v4139 = vrot.slane %v3690, %v4138
        %v4140 = vlaneseq
        %v4141 = vshrl.u32 %v4140, 7
        %v4142 = vsub.s32 %v1302, %v4141
        %v4143 = vrot.slane %v3697, %v4142
        %v4144 = vsel %vm1307, %v4143, %v4139
        %v4145 = vsel %vm1444, %v4018, %v4009
        %v4146 = vsel %vm1446, %v4027, %v4145
        %v4147 = vsel %vm1448, %v4036, %v4146
        %v4148 = vsel %vm1450, %v4045, %v4147
        %v4149 = vsel %vm1452, %v4054, %v4148
        %v4150 = vsel %vm1454, %v4063, %v4149
        %v4151 = vsel %vm1456, %v4072, %v4150
        %v4152 = vsel %vm1444, %v4090, %v4081
        %v4153 = vsel %vm1446, %v4099, %v4152
        %v4154 = vsel %vm1448, %v4108, %v4153
        %v4155 = vsel %vm1450, %v4117, %v4154
        %v4156 = vsel %vm1452, %v4126, %v4155
        %v4157 = vsel %vm1454, %v4135, %v4156
        %v4158 = vsel %vm1456, %v4144, %v4157
        %v4161 = vmul.f32 %v3718, %v4151
        %v4162 = vmul.f32 %v3725, %v4158
        %v4163 = vadd.f32 %v4161, 1e-06
        %v4164 = vadd.f32 %v4162, 1e-06
        %v4165 = vrcp.pop %v4163
        %v4166 = vmul.f32 %v3963, %v4165
        %v4167 = vrcp.pop %v4164
        %v4168 = vmul.f32 %v3966, %v4167
        %v4169 = vsel %vm361, 0.0, %v4166
        %v4170 = vsel %vm362, 0.0, %v4168
        %v4171 = vsel %vm754, %v4169, -inf
        %4172 = vmax.xlane.f32.xlu0 %v4171
        %v4173 = vpop.xlane.xlu0 %4172
        %v4174 = vsel %vm754, %v4170, -inf
        %4175 = vmax.xlane.f32.xlu0 %v4174
        %v4176 = vpop.xlane.xlu0 %4175
        %vm4177 = vcmp.eq.f32.partialorder %v4169, %v4173
        %vm4178 = vcmp.eq.f32.partialorder %v4170, %v4176
        %v4179 = vsel %vm4177, %v476, 16
        %v4180 = vsel %vm4178, %v476, 16
        %v4181 = vsel %vm754, %v4179, 2147483647
        %v4182 = vand.u32 %v4181, 65535
        %v4183 = vshra.s32 %v4181, 16
        %v4184 = vcvt.s32.f32 %v4182
        %v4185 = vcvt.s32.f32 %v4183
        %4186 = vmin.xlane.f32.xlu0 %v4185
        %v4187 = vpop.xlane.xlu0 %4186
        %vm4188 = vcmp.eq.f32.partialorder %v4185, %v4187
        %v4189 = vsel %vm4188, %v4184, inf
        %4190 = vmin.xlane.f32.xlu0 %v4189
        %v4191 = vpop.xlane.xlu0 %4190
        %v4192 = vcvt.f32.s32 %v4191
        %v4193 = vcvt.f32.s32 %v4187
        %v4194 = vshll.u32 %v4193, 16
        %v4195 = vadd.s32 %v4194, %v4192
        %v4196 = vsel %vm754, %v4180, 2147483647
        %v4197 = vand.u32 %v4196, 65535
        %v4198 = vshra.s32 %v4196, 16
        %v4199 = vcvt.s32.f32 %v4197
        %v4200 = vcvt.s32.f32 %v4198
        %4201 = vmin.xlane.f32.xlu0 %v4200
        %v4202 = vpop.xlane.xlu0 %4201
        %vm4203 = vcmp.eq.f32.partialorder %v4200, %v4202
        %v4204 = vsel %vm4203, %v4199, inf
        %4205 = vmin.xlane.f32.xlu0 %v4204
        %v4206 = vpop.xlane.xlu0 %4205
        %v4207 = vcvt.f32.s32 %v4206
        %v4208 = vcvt.f32.s32 %v4202
        %v4209 = vshll.u32 %v4208, 16
        %v4210 = vadd.s32 %v4209, %v4207
        %vm4211 = vcmp.eq.s32.totalorder %v476, %v4195
        %vm4212 = vcmp.eq.s32.totalorder %v476, %v4210
        %v4213 = vsel %vm4211, -inf, %v4169
        %v4214 = vsel %vm4212, -inf, %v4170
        %v4215 = vsel %vm4211, 1.0, 0.0
        %v4216 = vsel %vm4212, 1.0, 0.0
        %v4217 = vsel %vm754, %v4213, -inf
        %4218 = vmax.xlane.f32.xlu0 %v4217
        %v4219 = vpop.xlane.xlu0 %4218
        %v4220 = vsel %vm754, %v4214, -inf
        %4221 = vmax.xlane.f32.xlu0 %v4220
        %v4222 = vpop.xlane.xlu0 %4221
        %vm4223 = vcmp.eq.f32.partialorder %v4213, %v4219
        %vm4224 = vcmp.eq.f32.partialorder %v4214, %v4222
        %v4225 = vsel %vm4223, %v476, 16
        %v4226 = vsel %vm4224, %v476, 16
        %v4227 = vsel %vm754, %v4225, 2147483647
        %v4228 = vand.u32 %v4227, 65535
        %v4229 = vshra.s32 %v4227, 16
        %v4230 = vcvt.s32.f32 %v4228
        %v4231 = vcvt.s32.f32 %v4229
        %4232 = vmin.xlane.f32.xlu0 %v4231
        %v4233 = vpop.xlane.xlu0 %4232
        %vm4234 = vcmp.eq.f32.partialorder %v4231, %v4233
        %v4235 = vsel %vm4234, %v4230, inf
        %4236 = vmin.xlane.f32.xlu0 %v4235
        %v4237 = vpop.xlane.xlu0 %4236
        %v4238 = vcvt.f32.s32 %v4237
        %v4239 = vcvt.f32.s32 %v4233
        %v4240 = vshll.u32 %v4239, 16
        %v4241 = vadd.s32 %v4240, %v4238
        %v4242 = vsel %vm754, %v4226, 2147483647
        %v4243 = vand.u32 %v4242, 65535
        %v4244 = vshra.s32 %v4242, 16
        %v4245 = vcvt.s32.f32 %v4243
        %v4246 = vcvt.s32.f32 %v4244
        %4247 = vmin.xlane.f32.xlu0 %v4246
        %v4248 = vpop.xlane.xlu0 %4247
        %vm4249 = vcmp.eq.f32.partialorder %v4246, %v4248
        %v4250 = vsel %vm4249, %v4245, inf
        %4251 = vmin.xlane.f32.xlu0 %v4250
        %v4252 = vpop.xlane.xlu0 %4251
        %v4253 = vcvt.f32.s32 %v4252
        %v4254 = vcvt.f32.s32 %v4248
        %v4255 = vshll.u32 %v4254, 16
        %v4256 = vadd.s32 %v4255, %v4253
        %vm4257 = vcmp.eq.s32.totalorder %v476, %v4241
        %vm4258 = vcmp.eq.s32.totalorder %v476, %v4256
        %v4259 = vsel %vm4257, -inf, %v4213
        %v4260 = vsel %vm4258, -inf, %v4214
        %v4261 = vsel %vm4257, 1.0, %v4215
        %v4262 = vsel %vm4258, 1.0, %v4216
        %v4263 = vsel %vm754, %v4259, -inf
        %4264 = vmax.xlane.f32.xlu0 %v4263
        %v4265 = vpop.xlane.xlu0 %4264
        %v4266 = vsel %vm754, %v4260, -inf
        %4267 = vmax.xlane.f32.xlu0 %v4266
        %v4268 = vpop.xlane.xlu0 %4267
        %vm4269 = vcmp.eq.f32.partialorder %v4259, %v4265
        %vm4270 = vcmp.eq.f32.partialorder %v4260, %v4268
        %v4271 = vsel %vm4269, %v476, 16
        %v4272 = vsel %vm4270, %v476, 16
        %v4273 = vsel %vm754, %v4271, 2147483647
        %v4274 = vand.u32 %v4273, 65535
        %v4275 = vshra.s32 %v4273, 16
        %v4276 = vcvt.s32.f32 %v4274
        %v4277 = vcvt.s32.f32 %v4275
        %4278 = vmin.xlane.f32.xlu0 %v4277
        %v4279 = vpop.xlane.xlu0 %4278
        %vm4280 = vcmp.eq.f32.partialorder %v4277, %v4279
        %v4281 = vsel %vm4280, %v4276, inf
        %4282 = vmin.xlane.f32.xlu0 %v4281
        %v4283 = vpop.xlane.xlu0 %4282
        %v4284 = vcvt.f32.s32 %v4283
        %v4285 = vcvt.f32.s32 %v4279
        %v4286 = vshll.u32 %v4285, 16
        %v4287 = vadd.s32 %v4286, %v4284
        %v4288 = vsel %vm754, %v4272, 2147483647
        %v4289 = vand.u32 %v4288, 65535
        %v4290 = vshra.s32 %v4288, 16
        %v4291 = vcvt.s32.f32 %v4289
        %v4292 = vcvt.s32.f32 %v4290
        %4293 = vmin.xlane.f32.xlu0 %v4292
        %v4294 = vpop.xlane.xlu0 %4293
        %vm4295 = vcmp.eq.f32.partialorder %v4292, %v4294
        %v4296 = vsel %vm4295, %v4291, inf
        %4297 = vmin.xlane.f32.xlu0 %v4296
        %v4298 = vpop.xlane.xlu0 %4297
        %v4299 = vcvt.f32.s32 %v4298
        %v4300 = vcvt.f32.s32 %v4294
        %v4301 = vshll.u32 %v4300, 16
        %v4302 = vadd.s32 %v4301, %v4299
        %vm4303 = vcmp.eq.s32.totalorder %v476, %v4287
        %vm4304 = vcmp.eq.s32.totalorder %v476, %v4302
        %v4305 = vsel %vm4303, 1.0, %v4261
        %v4306 = vsel %vm4304, 1.0, %v4262
        %4307 = vxpose.xlu0.b32.start [1/16] %v4305, 128
        %4308 = vxpose.xlu0.b32.cont [2/16] %v4306, 128
        %4309 = vxpose.xlu0.b32.cont [3/16] 0.0, 128
        %4310 = vxpose.xlu0.b32.cont [4/16] 0.0, 128
        %4311 = vxpose.xlu0.b32.cont [5/16] 0.0, 128
        %4312 = vxpose.xlu0.b32.cont [6/16] 0.0, 128
        %4313 = vxpose.xlu0.b32.cont [7/16] 0.0, 128
        %4314 = vxpose.xlu0.b32.cont [8/16] 0.0, 128
        %4315 = vxpose.xlu0.b32.cont [9/16] 0.0, 128
        %4316 = vxpose.xlu0.b32.cont [10/16] 0.0, 128
        %4317 = vxpose.xlu0.b32.cont [11/16] 0.0, 128
        %4318 = vxpose.xlu0.b32.cont [12/16] 0.0, 128
        %4319 = vxpose.xlu0.b32.cont [13/16] 0.0, 128
        %4320 = vxpose.xlu0.b32.cont [14/16] 0.0, 128
        %4321 = vxpose.xlu0.b32.cont [15/16] 0.0, 128
        %4322 = vxpose.xlu0.b32.end [16/16] 0.0, 128
        %v4323 = vpop.trf.xlu0
        %v4324 = vpop.trf.xlu0
        %v4325 = vpop.trf.xlu0
        %v4326 = vpop.trf.xlu0
        %v4327 = vpop.trf.xlu0
        %v4328 = vpop.trf.xlu0
        %v4329 = vpop.trf.xlu0
        %v4330 = vpop.trf.xlu0
        %v4331 = vpop.trf.xlu0
        %v4332 = vpop.trf.xlu0
        %v4333 = vpop.trf.xlu0
        %v4334 = vpop.trf.xlu0
        %v4335 = vpop.trf.xlu0
        %v4336 = vpop.trf.xlu0
        %v4337 = vpop.trf.xlu0
        %v4338 = vpop.trf.xlu0
        %v4339 = vmax.f32 %v4305, %v4323
        %v4340 = vmax.f32 %v4306, %v4324
        %v4341 = vmul.f32 %v4169, %v4339
        %v4342 = vmul.f32 %v4170, %v4340
        %v4343 = vpack.c.bf16 %v4342, %v4341
        %4344 = vrot.lane.b32.xlu0 %v541, 48
        %v4345 = vpop.permute.xlu0 %4344
        %v4348 = vsel %vm754, %v4343, 0
        %4350 = vmatprep.subr.bf16.mxu0 0
        %4351 = vmatpush1.bf16.msra.mxu0 %v4345
        %4352 = vmatprep.subr.bf16.mxu0 0
        %4353 = vmatpush1.bf16.msra.mxu0 0
        %4354 = vmatprep.subr.bf16.mxu0 0
        %4355 = vmatpush1.bf16.msra.mxu0 0
        %4356 = vmatprep.subr.bf16.mxu0 0
        %4357 = vmatpush1.bf16.msra.mxu0 0
        %4358 = vmatprep.subr.bf16.mxu0 0
        %4359 = vmatpush1.bf16.msra.mxu0 0
        %4360 = vmatprep.subr.bf16.mxu0 0
        %4361 = vmatpush1.bf16.msra.mxu0 0
        %4362 = vmatprep.subr.bf16.mxu0 0
        %4363 = vmatpush1.bf16.msra.mxu0 0
        %4364 = vmatprep.subr.bf16.mxu0 0
        %4365 = vmatpush1.bf16.msra.mxu0 0
        %4366 = vmatprep.subr.bf16.mxu0 0
        %4367 = vmatpush1.bf16.msra.mxu0 0
        %4368 = vmatprep.subr.bf16.mxu0 0
        %4369 = vmatpush1.bf16.msra.mxu0 0
        %4370 = vmatprep.subr.bf16.mxu0 0
        %4371 = vmatpush1.bf16.msra.mxu0 0
        %4372 = vmatprep.subr.bf16.mxu0 0
        %4373 = vmatpush1.bf16.msra.mxu0 0
        %4374 = vmatprep.subr.bf16.mxu0 0
        %4375 = vmatpush1.bf16.msra.mxu0 0
        %4376 = vmatprep.subr.bf16.mxu0 0
        %4377 = vmatpush1.bf16.msra.mxu0 0
        %4378 = vmatprep.subr.bf16.mxu0 0
        %4379 = vmatpush1.bf16.msra.mxu0 0
        %4380 = vmatprep.subr.bf16.mxu0 0
        %4381 = vmatpush1.bf16.msra.mxu0 0
        %4382 = vmatprep.mubr.bf16.mxu0 0
        %4383 = vmatmul.mubr.bf16.gmra.mrb[0].mxu0 %v4348
        %v4384 = vpop.f32.mrb[0].mxu0
        %v4385 = vadd.f32 0.0, %v4384
        %v4386 = vpop.f32.mrb[0].mxu0
        %v4387 = vpop.f32.mrb[0].mxu0
        %v4388 = vadd.f32 0.0, %v4387
        %v4389 = vpop.f32.mrb[0].mxu0
        %4390 = vdwg.mxu0
        %v4392 = vcombine.high %v4343, %v4343
        %v4394 = vunpack.c.l.s4 1966171168
        %v4395 = vunpack.c.0.s8 %v4394
        %v4396 = vlaneseq
        %v4397 = vshrl.u32 %v4396, 7
        %v4398 = vsub.s32 %v4395, %v4397
        %v4399 = vrot.slane %v4343, %v4398
        %v4401 = vunpack.c.l.s4 1966171168
        %v4402 = vunpack.c.0.s8 %v4401
        %v4403 = vlaneseq
        %v4404 = vshrl.u32 %v4403, 7
        %v4405 = vsub.s32 %v4402, %v4404
        %v4406 = vrot.slane %v4392, %v4405
        %v4407 = vcombine.high %v4399, %v4399
        %v4408 = vcombine.high %v4406, %v4406
        %v4410 = vunpack.c.l.s4 1966171168
        %v4411 = vunpack.c.0.s8 %v4410
        %v4412 = vlaneseq
        %v4413 = vshrl.u32 %v4412, 7
        %v4414 = vsub.s32 %v4411, %v4413
        %v4415 = vrot.slane %v4399, %v4414
        %v4417 = vunpack.c.l.s4 1966171168
        %v4418 = vunpack.c.0.s8 %v4417
        %v4419 = vlaneseq
        %v4420 = vshrl.u32 %v4419, 7
        %v4421 = vsub.s32 %v4418, %v4420
        %v4422 = vrot.slane %v4406, %v4421
        %v4424 = vunpack.c.l.s4 1966171168
        %v4425 = vunpack.c.0.s8 %v4424
        %v4426 = vlaneseq
        %v4427 = vshrl.u32 %v4426, 7
        %v4428 = vsub.s32 %v4425, %v4427
        %v4429 = vrot.slane %v4407, %v4428
        %v4431 = vunpack.c.l.s4 1966171168
        %v4432 = vunpack.c.0.s8 %v4431
        %v4433 = vlaneseq
        %v4434 = vshrl.u32 %v4433, 7
        %v4435 = vsub.s32 %v4432, %v4434
        %v4436 = vrot.slane %v4408, %v4435
        %v4437 = vcombine.high %v4415, %v4415
        %v4438 = vcombine.high %v4422, %v4422
        %v4439 = vcombine.high %v4429, %v4429
        %v4440 = vcombine.high %v4436, %v4436
        %v4441 = vunpack.i.l.s16 %v4415
        %v4442 = vunpack.i.h.s16 %v4415
        %v4443 = vunpack.i.l.s16 %v4429
        %v4444 = vunpack.i.h.s16 %v4429
        %v4445 = vunpack.i.l.s16 %v4437
        %v4446 = vunpack.i.h.s16 %v4437
        %v4447 = vunpack.i.l.s16 %v4439
        %v4448 = vunpack.i.h.s16 %v4439
        %v4449 = vunpack.i.l.s16 %v4422
        %v4450 = vunpack.i.h.s16 %v4422
        %v4451 = vunpack.i.l.s16 %v4436
        %v4452 = vunpack.i.h.s16 %v4436
        %v4453 = vunpack.i.l.s16 %v4438
        %v4454 = vunpack.i.h.s16 %v4438
        %v4455 = vunpack.i.l.s16 %v4440
        %v4456 = vunpack.i.h.s16 %v4440
        %v4457 = vpack.i.b16 %v4441, %v4441
        %v4458 = vlaneseq
        %v4459 = vshrl.u32 %v4458, 7
        %v4460 = vsub.s32 0, %v4459
        %v4461 = vrot.slane %v4457, %v4460
        %v4464 = vunpack.c.l.b16 %v2866
        %v4465 = vunpack.c.l.b16 %v2867
        %v4466 = vpack.c.b16 %v4465, %v4464
        %4467 = vrot.lane.b32.xlu0 %v4466, 112
        %v4468 = vpop.permute.xlu0 %4467
        %v4471 = vsel %vm754, %v4461, 0
        %4473 = vmatprep.subr.bf16.mxu0 0
        %4474 = vmatpush1.bf16.msra.mxu0 %v4468
        %4475 = vmatprep.subr.bf16.mxu0 0
        %4476 = vmatpush1.bf16.msra.mxu0 0
        %4477 = vmatprep.subr.bf16.mxu0 0
        %4478 = vmatpush1.bf16.msra.mxu0 0
        %4479 = vmatprep.subr.bf16.mxu0 0
        %4480 = vmatpush1.bf16.msra.mxu0 0
        %4481 = vmatprep.subr.bf16.mxu0 0
        %4482 = vmatpush1.bf16.msra.mxu0 0
        %4483 = vmatprep.subr.bf16.mxu0 0
        %4484 = vmatpush1.bf16.msra.mxu0 0
        %4485 = vmatprep.subr.bf16.mxu0 0
        %4486 = vmatpush1.bf16.msra.mxu0 0
        %4487 = vmatprep.subr.bf16.mxu0 0
        %4488 = vmatpush1.bf16.msra.mxu0 0
        %4489 = vmatprep.subr.bf16.mxu0 0
        %4490 = vmatpush1.bf16.msra.mxu0 0
        %4491 = vmatprep.subr.bf16.mxu0 0
        %4492 = vmatpush1.bf16.msra.mxu0 0
        %4493 = vmatprep.subr.bf16.mxu0 0
        %4494 = vmatpush1.bf16.msra.mxu0 0
        %4495 = vmatprep.subr.bf16.mxu0 0
        %4496 = vmatpush1.bf16.msra.mxu0 0
        %4497 = vmatprep.subr.bf16.mxu0 0
        %4498 = vmatpush1.bf16.msra.mxu0 0
        %4499 = vmatprep.subr.bf16.mxu0 0
        %4500 = vmatpush1.bf16.msra.mxu0 0
        %4501 = vmatprep.subr.bf16.mxu0 0
        %4502 = vmatpush1.bf16.msra.mxu0 0
        %4503 = vmatprep.subr.bf16.mxu0 0
        %4504 = vmatpush1.bf16.msra.mxu0 0
        %4505 = vmatprep.mubr.bf16.mxu0 0
        %4506 = vmatmul.mubr.bf16.gmra.mrb[0].mxu0 %v4471
        %v4507 = vpop.f32.mrb[0].mxu0
        %v4508 = vadd.f32 0.0, %v4507
        %v4509 = vpop.f32.mrb[0].mxu0
        %v4510 = vpop.f32.mrb[0].mxu0
        %v4511 = vpop.f32.mrb[0].mxu0
        %4512 = vdwg.mxu0
        %v4513 = vpack.i.b16 %v4442, %v4442
        %v4514 = vlaneseq
        %v4515 = vshrl.u32 %v4514, 7
        %v4516 = vsub.s32 0, %v4515
        %v4517 = vrot.slane %v4513, %v4516
        %v4520 = vunpack.c.l.b16 %v2868
        %v4521 = vunpack.c.l.b16 %v2869
        %v4522 = vpack.c.b16 %v4521, %v4520
        %4523 = vrot.lane.b32.xlu0 %v4522, 112
        %v4524 = vpop.permute.xlu0 %4523
        %v4527 = vsel %vm754, %v4517, 0
        %4529 = vmatprep.subr.bf16.mxu0 0
        %4530 = vmatpush1.bf16.msra.mxu0 %v4524
        %4531 = vmatprep.subr.bf16.mxu0 0
        %4532 = vmatpush1.bf16.msra.mxu0 0
        %4533 = vmatprep.subr.bf16.mxu0 0
        %4534 = vmatpush1.bf16.msra.mxu0 0
        %4535 = vmatprep.subr.bf16.mxu0 0
        %4536 = vmatpush1.bf16.msra.mxu0 0
        %4537 = vmatprep.subr.bf16.mxu0 0
        %4538 = vmatpush1.bf16.msra.mxu0 0
        %4539 = vmatprep.subr.bf16.mxu0 0
        %4540 = vmatpush1.bf16.msra.mxu0 0
        %4541 = vmatprep.subr.bf16.mxu0 0
        %4542 = vmatpush1.bf16.msra.mxu0 0
        %4543 = vmatprep.subr.bf16.mxu0 0
        %4544 = vmatpush1.bf16.msra.mxu0 0
        %4545 = vmatprep.subr.bf16.mxu0 0
        %4546 = vmatpush1.bf16.msra.mxu0 0
        %4547 = vmatprep.subr.bf16.mxu0 0
        %4548 = vmatpush1.bf16.msra.mxu0 0
        %4549 = vmatprep.subr.bf16.mxu0 0
        %4550 = vmatpush1.bf16.msra.mxu0 0
        %4551 = vmatprep.subr.bf16.mxu0 0
        %4552 = vmatpush1.bf16.msra.mxu0 0
        %4553 = vmatprep.subr.bf16.mxu0 0
        %4554 = vmatpush1.bf16.msra.mxu0 0
        %4555 = vmatprep.subr.bf16.mxu0 0
        %4556 = vmatpush1.bf16.msra.mxu0 0
        %4557 = vmatprep.subr.bf16.mxu0 0
        %4558 = vmatpush1.bf16.msra.mxu0 0
        %4559 = vmatprep.subr.bf16.mxu0 0
        %4560 = vmatpush1.bf16.msra.mxu0 0
        %4561 = vmatprep.mubr.bf16.mxu0 0
        %4562 = vmatmul.mubr.bf16.gmra.mrb[0].mxu0 %v4527
        %v4563 = vpop.f32.mrb[0].mxu0
        %v4564 = vadd.f32 0.0, %v4563
        %v4565 = vpop.f32.mrb[0].mxu0
        %v4566 = vpop.f32.mrb[0].mxu0
        %v4567 = vpop.f32.mrb[0].mxu0
        %4568 = vdwg.mxu0
        %v4569 = vpack.i.b16 %v4443, %v4443
        %v4570 = vlaneseq
        %v4571 = vshrl.u32 %v4570, 7
        %v4572 = vsub.s32 0, %v4571
        %v4573 = vrot.slane %v4569, %v4572
        %v4576 = vunpack.c.l.b16 %v2870
        %v4577 = vunpack.c.l.b16 %v2871
        %v4578 = vpack.c.b16 %v4577, %v4576
        %4579 = vrot.lane.b32.xlu0 %v4578, 112
        %v4580 = vpop.permute.xlu0 %4579
        %v4583 = vsel %vm754, %v4573, 0
        %4585 = vmatprep.subr.bf16.mxu0 0
        %4586 = vmatpush1.bf16.msra.mxu0 %v4580
        %4587 = vmatprep.subr.bf16.mxu0 0
        %4588 = vmatpush1.bf16.msra.mxu0 0
        %4589 = vmatprep.subr.bf16.mxu0 0
        %4590 = vmatpush1.bf16.msra.mxu0 0
        %4591 = vmatprep.subr.bf16.mxu0 0
        %4592 = vmatpush1.bf16.msra.mxu0 0
        %4593 = vmatprep.subr.bf16.mxu0 0
        %4594 = vmatpush1.bf16.msra.mxu0 0
        %4595 = vmatprep.subr.bf16.mxu0 0
        %4596 = vmatpush1.bf16.msra.mxu0 0
        %4597 = vmatprep.subr.bf16.mxu0 0
        %4598 = vmatpush1.bf16.msra.mxu0 0
        %4599 = vmatprep.subr.bf16.mxu0 0
        %4600 = vmatpush1.bf16.msra.mxu0 0
        %4601 = vmatprep.subr.bf16.mxu0 0
        %4602 = vmatpush1.bf16.msra.mxu0 0
        %4603 = vmatprep.subr.bf16.mxu0 0
        %4604 = vmatpush1.bf16.msra.mxu0 0
        %4605 = vmatprep.subr.bf16.mxu0 0
        %4606 = vmatpush1.bf16.msra.mxu0 0
        %4607 = vmatprep.subr.bf16.mxu0 0
        %4608 = vmatpush1.bf16.msra.mxu0 0
        %4609 = vmatprep.subr.bf16.mxu0 0
        %4610 = vmatpush1.bf16.msra.mxu0 0
        %4611 = vmatprep.subr.bf16.mxu0 0
        %4612 = vmatpush1.bf16.msra.mxu0 0
        %4613 = vmatprep.subr.bf16.mxu0 0
        %4614 = vmatpush1.bf16.msra.mxu0 0
        %4615 = vmatprep.subr.bf16.mxu0 0
        %4616 = vmatpush1.bf16.msra.mxu0 0
        %4617 = vmatprep.mubr.bf16.mxu0 0
        %4618 = vmatmul.mubr.bf16.gmra.mrb[0].mxu0 %v4583
        %v4619 = vpop.f32.mrb[0].mxu0
        %v4620 = vadd.f32 0.0, %v4619
        %v4621 = vpop.f32.mrb[0].mxu0
        %v4622 = vpop.f32.mrb[0].mxu0
        %v4623 = vpop.f32.mrb[0].mxu0
        %4624 = vdwg.mxu0
        %v4625 = vpack.i.b16 %v4444, %v4444
        %v4626 = vlaneseq
        %v4627 = vshrl.u32 %v4626, 7
        %v4628 = vsub.s32 0, %v4627
        %v4629 = vrot.slane %v4625, %v4628
        %v4632 = vunpack.c.l.b16 %v2872
        %v4633 = vunpack.c.l.b16 %v2873
        %v4634 = vpack.c.b16 %v4633, %v4632
        %4635 = vrot.lane.b32.xlu0 %v4634, 112
        %v4636 = vpop.permute.xlu0 %4635
        %v4639 = vsel %vm754, %v4629, 0
        %4641 = vmatprep.subr.bf16.mxu0 0
        %4642 = vmatpush1.bf16.msra.mxu0 %v4636
        %4643 = vmatprep.subr.bf16.mxu0 0
        %4644 = vmatpush1.bf16.msra.mxu0 0
        %4645 = vmatprep.subr.bf16.mxu0 0
        %4646 = vmatpush1.bf16.msra.mxu0 0
        %4647 = vmatprep.subr.bf16.mxu0 0
        %4648 = vmatpush1.bf16.msra.mxu0 0
        %4649 = vmatprep.subr.bf16.mxu0 0
        %4650 = vmatpush1.bf16.msra.mxu0 0
        %4651 = vmatprep.subr.bf16.mxu0 0
        %4652 = vmatpush1.bf16.msra.mxu0 0
        %4653 = vmatprep.subr.bf16.mxu0 0
        %4654 = vmatpush1.bf16.msra.mxu0 0
        %4655 = vmatprep.subr.bf16.mxu0 0
        %4656 = vmatpush1.bf16.msra.mxu0 0
        %4657 = vmatprep.subr.bf16.mxu0 0
        %4658 = vmatpush1.bf16.msra.mxu0 0
        %4659 = vmatprep.subr.bf16.mxu0 0
        %4660 = vmatpush1.bf16.msra.mxu0 0
        %4661 = vmatprep.subr.bf16.mxu0 0
        %4662 = vmatpush1.bf16.msra.mxu0 0
        %4663 = vmatprep.subr.bf16.mxu0 0
        %4664 = vmatpush1.bf16.msra.mxu0 0
        %4665 = vmatprep.subr.bf16.mxu0 0
        %4666 = vmatpush1.bf16.msra.mxu0 0
        %4667 = vmatprep.subr.bf16.mxu0 0
        %4668 = vmatpush1.bf16.msra.mxu0 0
        %4669 = vmatprep.subr.bf16.mxu0 0
        %4670 = vmatpush1.bf16.msra.mxu0 0
        %4671 = vmatprep.subr.bf16.mxu0 0
        %4672 = vmatpush1.bf16.msra.mxu0 0
        %4673 = vmatprep.mubr.bf16.mxu0 0
        %4674 = vmatmul.mubr.bf16.gmra.mrb[0].mxu0 %v4639
        %v4675 = vpop.f32.mrb[0].mxu0
        %v4676 = vadd.f32 0.0, %v4675
        %v4677 = vpop.f32.mrb[0].mxu0
        %v4678 = vpop.f32.mrb[0].mxu0
        %v4679 = vpop.f32.mrb[0].mxu0
        %4680 = vdwg.mxu0
        %v4681 = vpack.i.b16 %v4445, %v4445
        %v4682 = vlaneseq
        %v4683 = vshrl.u32 %v4682, 7
        %v4684 = vsub.s32 0, %v4683
        %v4685 = vrot.slane %v4681, %v4684
        %v4688 = vunpack.c.l.b16 %v2874
        %v4689 = vunpack.c.l.b16 %v2875
        %v4690 = vpack.c.b16 %v4689, %v4688
        %4691 = vrot.lane.b32.xlu0 %v4690, 112
        %v4692 = vpop.permute.xlu0 %4691
        %v4695 = vsel %vm754, %v4685, 0
        %4697 = vmatprep.subr.bf16.mxu0 0
        %4698 = vmatpush1.bf16.msra.mxu0 %v4692
        %4699 = vmatprep.subr.bf16.mxu0 0
        %4700 = vmatpush1.bf16.msra.mxu0 0
        %4701 = vmatprep.subr.bf16.mxu0 0
        %4702 = vmatpush1.bf16.msra.mxu0 0
        %4703 = vmatprep.subr.bf16.mxu0 0
        %4704 = vmatpush1.bf16.msra.mxu0 0
        %4705 = vmatprep.subr.bf16.mxu0 0
        %4706 = vmatpush1.bf16.msra.mxu0 0
        %4707 = vmatprep.subr.bf16.mxu0 0
        %4708 = vmatpush1.bf16.msra.mxu0 0
        %4709 = vmatprep.subr.bf16.mxu0 0
        %4710 = vmatpush1.bf16.msra.mxu0 0
        %4711 = vmatprep.subr.bf16.mxu0 0
        %4712 = vmatpush1.bf16.msra.mxu0 0
        %4713 = vmatprep.subr.bf16.mxu0 0
        %4714 = vmatpush1.bf16.msra.mxu0 0
        %4715 = vmatprep.subr.bf16.mxu0 0
        %4716 = vmatpush1.bf16.msra.mxu0 0
        %4717 = vmatprep.subr.bf16.mxu0 0
        %4718 = vmatpush1.bf16.msra.mxu0 0
        %4719 = vmatprep.subr.bf16.mxu0 0
        %4720 = vmatpush1.bf16.msra.mxu0 0
        %4721 = vmatprep.subr.bf16.mxu0 0
        %4722 = vmatpush1.bf16.msra.mxu0 0
        %4723 = vmatprep.subr.bf16.mxu0 0
        %4724 = vmatpush1.bf16.msra.mxu0 0
        %4725 = vmatprep.subr.bf16.mxu0 0
        %4726 = vmatpush1.bf16.msra.mxu0 0
        %4727 = vmatprep.subr.bf16.mxu0 0
        %4728 = vmatpush1.bf16.msra.mxu0 0
        %4729 = vmatprep.mubr.bf16.mxu0 0
        %4730 = vmatmul.mubr.bf16.gmra.mrb[0].mxu0 %v4695
        %v4731 = vpop.f32.mrb[0].mxu0
        %v4732 = vadd.f32 0.0, %v4731
        %v4733 = vpop.f32.mrb[0].mxu0
        %v4734 = vpop.f32.mrb[0].mxu0
        %v4735 = vpop.f32.mrb[0].mxu0
        %4736 = vdwg.mxu0
        %v4737 = vpack.i.b16 %v4446, %v4446
        %v4738 = vlaneseq
        %v4739 = vshrl.u32 %v4738, 7
        %v4740 = vsub.s32 0, %v4739
        %v4741 = vrot.slane %v4737, %v4740
        %v4744 = vunpack.c.l.b16 %v2876
        %v4745 = vunpack.c.l.b16 %v2877
        %v4746 = vpack.c.b16 %v4745, %v4744
        %4747 = vrot.lane.b32.xlu0 %v4746, 112
        %v4748 = vpop.permute.xlu0 %4747
        %v4751 = vsel %vm754, %v4741, 0
        %4753 = vmatprep.subr.bf16.mxu0 0
        %4754 = vmatpush1.bf16.msra.mxu0 %v4748
        %4755 = vmatprep.subr.bf16.mxu0 0
        %4756 = vmatpush1.bf16.msra.mxu0 0
        %4757 = vmatprep.subr.bf16.mxu0 0
        %4758 = vmatpush1.bf16.msra.mxu0 0
        %4759 = vmatprep.subr.bf16.mxu0 0
        %4760 = vmatpush1.bf16.msra.mxu0 0
        %4761 = vmatprep.subr.bf16.mxu0 0
        %4762 = vmatpush1.bf16.msra.mxu0 0
        %4763 = vmatprep.subr.bf16.mxu0 0
        %4764 = vmatpush1.bf16.msra.mxu0 0
        %4765 = vmatprep.subr.bf16.mxu0 0
        %4766 = vmatpush1.bf16.msra.mxu0 0
        %4767 = vmatprep.subr.bf16.mxu0 0
        %4768 = vmatpush1.bf16.msra.mxu0 0
        %4769 = vmatprep.subr.bf16.mxu0 0
        %4770 = vmatpush1.bf16.msra.mxu0 0
        %4771 = vmatprep.subr.bf16.mxu0 0
        %4772 = vmatpush1.bf16.msra.mxu0 0
        %4773 = vmatprep.subr.bf16.mxu0 0
        %4774 = vmatpush1.bf16.msra.mxu0 0
        %4775 = vmatprep.subr.bf16.mxu0 0
        %4776 = vmatpush1.bf16.msra.mxu0 0
        %4777 = vmatprep.subr.bf16.mxu0 0
        %4778 = vmatpush1.bf16.msra.mxu0 0
        %4779 = vmatprep.subr.bf16.mxu0 0
        %4780 = vmatpush1.bf16.msra.mxu0 0
        %4781 = vmatprep.subr.bf16.mxu0 0
        %4782 = vmatpush1.bf16.msra.mxu0 0
        %4783 = vmatprep.subr.bf16.mxu0 0
        %4784 = vmatpush1.bf16.msra.mxu0 0
        %4785 = vmatprep.mubr.bf16.mxu0 0
        %4786 = vmatmul.mubr.bf16.gmra.mrb[0].mxu0 %v4751
        %v4787 = vpop.f32.mrb[0].mxu0
        %v4788 = vadd.f32 0.0, %v4787
        %v4789 = vpop.f32.mrb[0].mxu0
        %v4790 = vpop.f32.mrb[0].mxu0
        %v4791 = vpop.f32.mrb[0].mxu0
        %4792 = vdwg.mxu0
        %v4793 = vpack.i.b16 %v4447, %v4447
        %v4794 = vlaneseq
        %v4795 = vshrl.u32 %v4794, 7
        %v4796 = vsub.s32 0, %v4795
        %v4797 = vrot.slane %v4793, %v4796
        %v4800 = vunpack.c.l.b16 %v2878
        %v4801 = vunpack.c.l.b16 %v2879
        %v4802 = vpack.c.b16 %v4801, %v4800
        %4803 = vrot.lane.b32.xlu0 %v4802, 112
        %v4804 = vpop.permute.xlu0 %4803
        %v4807 = vsel %vm754, %v4797, 0
        %4809 = vmatprep.subr.bf16.mxu0 0
        %4810 = vmatpush1.bf16.msra.mxu0 %v4804
        %4811 = vmatprep.subr.bf16.mxu0 0
        %4812 = vmatpush1.bf16.msra.mxu0 0
        %4813 = vmatprep.subr.bf16.mxu0 0
        %4814 = vmatpush1.bf16.msra.mxu0 0
        %4815 = vmatprep.subr.bf16.mxu0 0
        %4816 = vmatpush1.bf16.msra.mxu0 0
        %4817 = vmatprep.subr.bf16.mxu0 0
        %4818 = vmatpush1.bf16.msra.mxu0 0
        %4819 = vmatprep.subr.bf16.mxu0 0
        %4820 = vmatpush1.bf16.msra.mxu0 0
        %4821 = vmatprep.subr.bf16.mxu0 0
        %4822 = vmatpush1.bf16.msra.mxu0 0
        %4823 = vmatprep.subr.bf16.mxu0 0
        %4824 = vmatpush1.bf16.msra.mxu0 0
        %4825 = vmatprep.subr.bf16.mxu0 0
        %4826 = vmatpush1.bf16.msra.mxu0 0
        %4827 = vmatprep.subr.bf16.mxu0 0
        %4828 = vmatpush1.bf16.msra.mxu0 0
        %4829 = vmatprep.subr.bf16.mxu0 0
        %4830 = vmatpush1.bf16.msra.mxu0 0
        %4831 = vmatprep.subr.bf16.mxu0 0
        %4832 = vmatpush1.bf16.msra.mxu0 0
        %4833 = vmatprep.subr.bf16.mxu0 0
        %4834 = vmatpush1.bf16.msra.mxu0 0
        %4835 = vmatprep.subr.bf16.mxu0 0
        %4836 = vmatpush1.bf16.msra.mxu0 0
        %4837 = vmatprep.subr.bf16.mxu0 0
        %4838 = vmatpush1.bf16.msra.mxu0 0
        %4839 = vmatprep.subr.bf16.mxu0 0
        %4840 = vmatpush1.bf16.msra.mxu0 0
        %4841 = vmatprep.mubr.bf16.mxu0 0
        %4842 = vmatmul.mubr.bf16.gmra.mrb[0].mxu0 %v4807
        %v4843 = vpop.f32.mrb[0].mxu0
        %v4844 = vadd.f32 0.0, %v4843
        %v4845 = vpop.f32.mrb[0].mxu0
        %v4846 = vpop.f32.mrb[0].mxu0
        %v4847 = vpop.f32.mrb[0].mxu0
        %4848 = vdwg.mxu0
        %v4849 = vpack.i.b16 %v4448, %v4448
        %v4850 = vlaneseq
        %v4851 = vshrl.u32 %v4850, 7
        %v4852 = vsub.s32 0, %v4851
        %v4853 = vrot.slane %v4849, %v4852
        %v4856 = vunpack.c.l.b16 %v2880
        %v4857 = vunpack.c.l.b16 %v2881
        %v4858 = vpack.c.b16 %v4857, %v4856
        %4859 = vrot.lane.b32.xlu0 %v4858, 112
        %v4860 = vpop.permute.xlu0 %4859
        %v4863 = vsel %vm754, %v4853, 0
        %4865 = vmatprep.subr.bf16.mxu0 0
        %4866 = vmatpush1.bf16.msra.mxu0 %v4860
        %4867 = vmatprep.subr.bf16.mxu0 0
        %4868 = vmatpush1.bf16.msra.mxu0 0
        %4869 = vmatprep.subr.bf16.mxu0 0
        %4870 = vmatpush1.bf16.msra.mxu0 0
        %4871 = vmatprep.subr.bf16.mxu0 0
        %4872 = vmatpush1.bf16.msra.mxu0 0
        %4873 = vmatprep.subr.bf16.mxu0 0
        %4874 = vmatpush1.bf16.msra.mxu0 0
        %4875 = vmatprep.subr.bf16.mxu0 0
        %4876 = vmatpush1.bf16.msra.mxu0 0
        %4877 = vmatprep.subr.bf16.mxu0 0
        %4878 = vmatpush1.bf16.msra.mxu0 0
        %4879 = vmatprep.subr.bf16.mxu0 0
        %4880 = vmatpush1.bf16.msra.mxu0 0
        %4881 = vmatprep.subr.bf16.mxu0 0
        %4882 = vmatpush1.bf16.msra.mxu0 0
        %4883 = vmatprep.subr.bf16.mxu0 0
        %4884 = vmatpush1.bf16.msra.mxu0 0
        %4885 = vmatprep.subr.bf16.mxu0 0
        %4886 = vmatpush1.bf16.msra.mxu0 0
        %4887 = vmatprep.subr.bf16.mxu0 0
        %4888 = vmatpush1.bf16.msra.mxu0 0
        %4889 = vmatprep.subr.bf16.mxu0 0
        %4890 = vmatpush1.bf16.msra.mxu0 0
        %4891 = vmatprep.subr.bf16.mxu0 0
        %4892 = vmatpush1.bf16.msra.mxu0 0
        %4893 = vmatprep.subr.bf16.mxu0 0
        %4894 = vmatpush1.bf16.msra.mxu0 0
        %4895 = vmatprep.subr.bf16.mxu0 0
        %4896 = vmatpush1.bf16.msra.mxu0 0
        %4897 = vmatprep.mubr.bf16.mxu0 0
        %4898 = vmatmul.mubr.bf16.gmra.mrb[0].mxu0 %v4863
        %v4899 = vpop.f32.mrb[0].mxu0
        %v4900 = vadd.f32 0.0, %v4899
        %v4901 = vpop.f32.mrb[0].mxu0
        %v4902 = vpop.f32.mrb[0].mxu0
        %v4903 = vpop.f32.mrb[0].mxu0
        %4904 = vdwg.mxu0
        %v4905 = vpack.i.b16 %v4449, %v4449
        %v4906 = vlaneseq
        %v4907 = vshrl.u32 %v4906, 7
        %v4908 = vsub.s32 0, %v4907
        %v4909 = vrot.slane %v4905, %v4908
        %v4912 = vunpack.c.l.b16 %v2882
        %v4913 = vunpack.c.l.b16 %v2883
        %v4914 = vpack.c.b16 %v4913, %v4912
        %4915 = vrot.lane.b32.xlu0 %v4914, 112
        %v4916 = vpop.permute.xlu0 %4915
        %v4919 = vsel %vm754, %v4909, 0
        %4921 = vmatprep.subr.bf16.mxu0 0
        %4922 = vmatpush1.bf16.msra.mxu0 %v4916
        %4923 = vmatprep.subr.bf16.mxu0 0
        %4924 = vmatpush1.bf16.msra.mxu0 0
        %4925 = vmatprep.subr.bf16.mxu0 0
        %4926 = vmatpush1.bf16.msra.mxu0 0
        %4927 = vmatprep.subr.bf16.mxu0 0
        %4928 = vmatpush1.bf16.msra.mxu0 0
        %4929 = vmatprep.subr.bf16.mxu0 0
        %4930 = vmatpush1.bf16.msra.mxu0 0
        %4931 = vmatprep.subr.bf16.mxu0 0
        %4932 = vmatpush1.bf16.msra.mxu0 0
        %4933 = vmatprep.subr.bf16.mxu0 0
        %4934 = vmatpush1.bf16.msra.mxu0 0
        %4935 = vmatprep.subr.bf16.mxu0 0
        %4936 = vmatpush1.bf16.msra.mxu0 0
        %4937 = vmatprep.subr.bf16.mxu0 0
        %4938 = vmatpush1.bf16.msra.mxu0 0
        %4939 = vmatprep.subr.bf16.mxu0 0
        %4940 = vmatpush1.bf16.msra.mxu0 0
        %4941 = vmatprep.subr.bf16.mxu0 0
        %4942 = vmatpush1.bf16.msra.mxu0 0
        %4943 = vmatprep.subr.bf16.mxu0 0
        %4944 = vmatpush1.bf16.msra.mxu0 0
        %4945 = vmatprep.subr.bf16.mxu0 0
        %4946 = vmatpush1.bf16.msra.mxu0 0
        %4947 = vmatprep.subr.bf16.mxu0 0
        %4948 = vmatpush1.bf16.msra.mxu0 0
        %4949 = vmatprep.subr.bf16.mxu0 0
        %4950 = vmatpush1.bf16.msra.mxu0 0
        %4951 = vmatprep.subr.bf16.mxu0 0
        %4952 = vmatpush1.bf16.msra.mxu0 0
        %4953 = vmatprep.mubr.bf16.mxu0 0
        %4954 = vmatmul.mubr.bf16.gmra.mrb[0].mxu0 %v4919
        %v4955 = vpop.f32.mrb[0].mxu0
        %v4956 = vadd.f32 0.0, %v4955
        %v4957 = vpop.f32.mrb[0].mxu0
        %v4958 = vpop.f32.mrb[0].mxu0
        %v4959 = vpop.f32.mrb[0].mxu0
        %4960 = vdwg.mxu0
        %v4961 = vpack.i.b16 %v4450, %v4450
        %v4962 = vlaneseq
        %v4963 = vshrl.u32 %v4962, 7
        %v4964 = vsub.s32 0, %v4963
        %v4965 = vrot.slane %v4961, %v4964
        %v4968 = vunpack.c.l.b16 %v2884
        %v4969 = vunpack.c.l.b16 %v2885
        %v4970 = vpack.c.b16 %v4969, %v4968
        %4971 = vrot.lane.b32.xlu0 %v4970, 112
        %v4972 = vpop.permute.xlu0 %4971
        %v4975 = vsel %vm754, %v4965, 0
        %4977 = vmatprep.subr.bf16.mxu0 0
        %4978 = vmatpush1.bf16.msra.mxu0 %v4972
        %4979 = vmatprep.subr.bf16.mxu0 0
        %4980 = vmatpush1.bf16.msra.mxu0 0
        %4981 = vmatprep.subr.bf16.mxu0 0
        %4982 = vmatpush1.bf16.msra.mxu0 0
        %4983 = vmatprep.subr.bf16.mxu0 0
        %4984 = vmatpush1.bf16.msra.mxu0 0
        %4985 = vmatprep.subr.bf16.mxu0 0
        %4986 = vmatpush1.bf16.msra.mxu0 0
        %4987 = vmatprep.subr.bf16.mxu0 0
        %4988 = vmatpush1.bf16.msra.mxu0 0
        %4989 = vmatprep.subr.bf16.mxu0 0
        %4990 = vmatpush1.bf16.msra.mxu0 0
        %4991 = vmatprep.subr.bf16.mxu0 0
        %4992 = vmatpush1.bf16.msra.mxu0 0
        %4993 = vmatprep.subr.bf16.mxu0 0
        %4994 = vmatpush1.bf16.msra.mxu0 0
        %4995 = vmatprep.subr.bf16.mxu0 0
        %4996 = vmatpush1.bf16.msra.mxu0 0
        %4997 = vmatprep.subr.bf16.mxu0 0
        %4998 = vmatpush1.bf16.msra.mxu0 0
        %4999 = vmatprep.subr.bf16.mxu0 0
        %5000 = vmatpush1.bf16.msra.mxu0 0
        %5001 = vmatprep.subr.bf16.mxu0 0
        %5002 = vmatpush1.bf16.msra.mxu0 0
        %5003 = vmatprep.subr.bf16.mxu0 0
        %5004 = vmatpush1.bf16.msra.mxu0 0
        %5005 = vmatprep.subr.bf16.mxu0 0
        %5006 = vmatpush1.bf16.msra.mxu0 0
        %5007 = vmatprep.subr.bf16.mxu0 0
        %5008 = vmatpush1.bf16.msra.mxu0 0
        %5009 = vmatprep.mubr.bf16.mxu0 0
        %5010 = vmatmul.mubr.bf16.gmra.mrb[0].mxu0 %v4975
        %v5011 = vpop.f32.mrb[0].mxu0
        %v5012 = vadd.f32 0.0, %v5011
        %v5013 = vpop.f32.mrb[0].mxu0
        %v5014 = vpop.f32.mrb[0].mxu0
        %v5015 = vpop.f32.mrb[0].mxu0
        %5016 = vdwg.mxu0
        %v5017 = vpack.i.b16 %v4451, %v4451
        %v5018 = vlaneseq
        %v5019 = vshrl.u32 %v5018, 7
        %v5020 = vsub.s32 0, %v5019
        %v5021 = vrot.slane %v5017, %v5020
        %v5024 = vunpack.c.l.b16 %v2886
        %v5025 = vunpack.c.l.b16 %v2887
        %v5026 = vpack.c.b16 %v5025, %v5024
        %5027 = vrot.lane.b32.xlu0 %v5026, 112
        %v5028 = vpop.permute.xlu0 %5027
        %v5031 = vsel %vm754, %v5021, 0
        %5033 = vmatprep.subr.bf16.mxu0 0
        %5034 = vmatpush1.bf16.msra.mxu0 %v5028
        %5035 = vmatprep.subr.bf16.mxu0 0
        %5036 = vmatpush1.bf16.msra.mxu0 0
        %5037 = vmatprep.subr.bf16.mxu0 0
        %5038 = vmatpush1.bf16.msra.mxu0 0
        %5039 = vmatprep.subr.bf16.mxu0 0
        %5040 = vmatpush1.bf16.msra.mxu0 0
        %5041 = vmatprep.subr.bf16.mxu0 0
        %5042 = vmatpush1.bf16.msra.mxu0 0
        %5043 = vmatprep.subr.bf16.mxu0 0
        %5044 = vmatpush1.bf16.msra.mxu0 0
        %5045 = vmatprep.subr.bf16.mxu0 0
        %5046 = vmatpush1.bf16.msra.mxu0 0
        %5047 = vmatprep.subr.bf16.mxu0 0
        %5048 = vmatpush1.bf16.msra.mxu0 0
        %5049 = vmatprep.subr.bf16.mxu0 0
        %5050 = vmatpush1.bf16.msra.mxu0 0
        %5051 = vmatprep.subr.bf16.mxu0 0
        %5052 = vmatpush1.bf16.msra.mxu0 0
        %5053 = vmatprep.subr.bf16.mxu0 0
        %5054 = vmatpush1.bf16.msra.mxu0 0
        %5055 = vmatprep.subr.bf16.mxu0 0
        %5056 = vmatpush1.bf16.msra.mxu0 0
        %5057 = vmatprep.subr.bf16.mxu0 0
        %5058 = vmatpush1.bf16.msra.mxu0 0
        %5059 = vmatprep.subr.bf16.mxu0 0
        %5060 = vmatpush1.bf16.msra.mxu0 0
        %5061 = vmatprep.subr.bf16.mxu0 0
        %5062 = vmatpush1.bf16.msra.mxu0 0
        %5063 = vmatprep.subr.bf16.mxu0 0
        %5064 = vmatpush1.bf16.msra.mxu0 0
        %5065 = vmatprep.mubr.bf16.mxu0 0
        %5066 = vmatmul.mubr.bf16.gmra.mrb[0].mxu0 %v5031
        %v5067 = vpop.f32.mrb[0].mxu0
        %v5068 = vadd.f32 0.0, %v5067
        %v5069 = vpop.f32.mrb[0].mxu0
        %v5070 = vpop.f32.mrb[0].mxu0
        %v5071 = vpop.f32.mrb[0].mxu0
        %5072 = vdwg.mxu0
        %v5073 = vpack.i.b16 %v4452, %v4452
        %v5074 = vlaneseq
        %v5075 = vshrl.u32 %v5074, 7
        %v5076 = vsub.s32 0, %v5075
        %v5077 = vrot.slane %v5073, %v5076
        %v5080 = vunpack.c.l.b16 %v2888
        %v5081 = vunpack.c.l.b16 %v2889
        %v5082 = vpack.c.b16 %v5081, %v5080
        %5083 = vrot.lane.b32.xlu0 %v5082, 112
        %v5084 = vpop.permute.xlu0 %5083
        %v5087 = vsel %vm754, %v5077, 0
        %5089 = vmatprep.subr.bf16.mxu0 0
        %5090 = vmatpush1.bf16.msra.mxu0 %v5084
        %5091 = vmatprep.subr.bf16.mxu0 0
        %5092 = vmatpush1.bf16.msra.mxu0 0
        %5093 = vmatprep.subr.bf16.mxu0 0
        %5094 = vmatpush1.bf16.msra.mxu0 0
        %5095 = vmatprep.subr.bf16.mxu0 0
        %5096 = vmatpush1.bf16.msra.mxu0 0
        %5097 = vmatprep.subr.bf16.mxu0 0
        %5098 = vmatpush1.bf16.msra.mxu0 0
        %5099 = vmatprep.subr.bf16.mxu0 0
        %5100 = vmatpush1.bf16.msra.mxu0 0
        %5101 = vmatprep.subr.bf16.mxu0 0
        %5102 = vmatpush1.bf16.msra.mxu0 0
        %5103 = vmatprep.subr.bf16.mxu0 0
        %5104 = vmatpush1.bf16.msra.mxu0 0
        %5105 = vmatprep.subr.bf16.mxu0 0
        %5106 = vmatpush1.bf16.msra.mxu0 0
        %5107 = vmatprep.subr.bf16.mxu0 0
        %5108 = vmatpush1.bf16.msra.mxu0 0
        %5109 = vmatprep.subr.bf16.mxu0 0
        %5110 = vmatpush1.bf16.msra.mxu0 0
        %5111 = vmatprep.subr.bf16.mxu0 0
        %5112 = vmatpush1.bf16.msra.mxu0 0
        %5113 = vmatprep.subr.bf16.mxu0 0
        %5114 = vmatpush1.bf16.msra.mxu0 0
        %5115 = vmatprep.subr.bf16.mxu0 0
        %5116 = vmatpush1.bf16.msra.mxu0 0
        %5117 = vmatprep.subr.bf16.mxu0 0
        %5118 = vmatpush1.bf16.msra.mxu0 0
        %5119 = vmatprep.subr.bf16.mxu0 0
        %5120 = vmatpush1.bf16.msra.mxu0 0
        %5121 = vmatprep.mubr.bf16.mxu0 0
        %5122 = vmatmul.mubr.bf16.gmra.mrb[0].mxu0 %v5087
        %v5123 = vpop.f32.mrb[0].mxu0
        %v5124 = vadd.f32 0.0, %v5123
        %v5125 = vpop.f32.mrb[0].mxu0
        %v5126 = vpop.f32.mrb[0].mxu0
        %v5127 = vpop.f32.mrb[0].mxu0
        %5128 = vdwg.mxu0
        %v5129 = vpack.i.b16 %v4453, %v4453
        %v5130 = vlaneseq
        %v5131 = vshrl.u32 %v5130, 7
        %v5132 = vsub.s32 0, %v5131
        %v5133 = vrot.slane %v5129, %v5132
        %v5136 = vunpack.c.l.b16 %v2890
        %v5137 = vunpack.c.l.b16 %v2891
        %v5138 = vpack.c.b16 %v5137, %v5136
        %5139 = vrot.lane.b32.xlu0 %v5138, 112
        %v5140 = vpop.permute.xlu0 %5139
        %v5143 = vsel %vm754, %v5133, 0
        %5145 = vmatprep.subr.bf16.mxu0 0
        %5146 = vmatpush1.bf16.msra.mxu0 %v5140
        %5147 = vmatprep.subr.bf16.mxu0 0
        %5148 = vmatpush1.bf16.msra.mxu0 0
        %5149 = vmatprep.subr.bf16.mxu0 0
        %5150 = vmatpush1.bf16.msra.mxu0 0
        %5151 = vmatprep.subr.bf16.mxu0 0
        %5152 = vmatpush1.bf16.msra.mxu0 0
        %5153 = vmatprep.subr.bf16.mxu0 0
        %5154 = vmatpush1.bf16.msra.mxu0 0
        %5155 = vmatprep.subr.bf16.mxu0 0
        %5156 = vmatpush1.bf16.msra.mxu0 0
        %5157 = vmatprep.subr.bf16.mxu0 0
        %5158 = vmatpush1.bf16.msra.mxu0 0
        %5159 = vmatprep.subr.bf16.mxu0 0
        %5160 = vmatpush1.bf16.msra.mxu0 0
        %5161 = vmatprep.subr.bf16.mxu0 0
        %5162 = vmatpush1.bf16.msra.mxu0 0
        %5163 = vmatprep.subr.bf16.mxu0 0
        %5164 = vmatpush1.bf16.msra.mxu0 0
        %5165 = vmatprep.subr.bf16.mxu0 0
        %5166 = vmatpush1.bf16.msra.mxu0 0
        %5167 = vmatprep.subr.bf16.mxu0 0
        %5168 = vmatpush1.bf16.msra.mxu0 0
        %5169 = vmatprep.subr.bf16.mxu0 0
        %5170 = vmatpush1.bf16.msra.mxu0 0
        %5171 = vmatprep.subr.bf16.mxu0 0
        %5172 = vmatpush1.bf16.msra.mxu0 0
        %5173 = vmatprep.subr.bf16.mxu0 0
        %5174 = vmatpush1.bf16.msra.mxu0 0
        %5175 = vmatprep.subr.bf16.mxu0 0
        %5176 = vmatpush1.bf16.msra.mxu0 0
        %5177 = vmatprep.mubr.bf16.mxu0 0
        %5178 = vmatmul.mubr.bf16.gmra.mrb[0].mxu0 %v5143
        %v5179 = vpop.f32.mrb[0].mxu0
        %v5180 = vadd.f32 0.0, %v5179
        %v5181 = vpop.f32.mrb[0].mxu0
        %v5182 = vpop.f32.mrb[0].mxu0
        %v5183 = vpop.f32.mrb[0].mxu0
        %5184 = vdwg.mxu0
        %v5185 = vpack.i.b16 %v4454, %v4454
        %v5186 = vlaneseq
        %v5187 = vshrl.u32 %v5186, 7
        %v5188 = vsub.s32 0, %v5187
        %v5189 = vrot.slane %v5185, %v5188
        %v5192 = vunpack.c.l.b16 %v2892
        %v5193 = vunpack.c.l.b16 %v2893
        %v5194 = vpack.c.b16 %v5193, %v5192
        %5195 = vrot.lane.b32.xlu0 %v5194, 112
        %v5196 = vpop.permute.xlu0 %5195
        %v5199 = vsel %vm754, %v5189, 0
        %5201 = vmatprep.subr.bf16.mxu0 0
        %5202 = vmatpush1.bf16.msra.mxu0 %v5196
        %5203 = vmatprep.subr.bf16.mxu0 0
        %5204 = vmatpush1.bf16.msra.mxu0 0
        %5205 = vmatprep.subr.bf16.mxu0 0
        %5206 = vmatpush1.bf16.msra.mxu0 0
        %5207 = vmatprep.subr.bf16.mxu0 0
        %5208 = vmatpush1.bf16.msra.mxu0 0
        %5209 = vmatprep.subr.bf16.mxu0 0
        %5210 = vmatpush1.bf16.msra.mxu0 0
        %5211 = vmatprep.subr.bf16.mxu0 0
        %5212 = vmatpush1.bf16.msra.mxu0 0
        %5213 = vmatprep.subr.bf16.mxu0 0
        %5214 = vmatpush1.bf16.msra.mxu0 0
        %5215 = vmatprep.subr.bf16.mxu0 0
        %5216 = vmatpush1.bf16.msra.mxu0 0
        %5217 = vmatprep.subr.bf16.mxu0 0
        %5218 = vmatpush1.bf16.msra.mxu0 0
        %5219 = vmatprep.subr.bf16.mxu0 0
        %5220 = vmatpush1.bf16.msra.mxu0 0
        %5221 = vmatprep.subr.bf16.mxu0 0
        %5222 = vmatpush1.bf16.msra.mxu0 0
        %5223 = vmatprep.subr.bf16.mxu0 0
        %5224 = vmatpush1.bf16.msra.mxu0 0
        %5225 = vmatprep.subr.bf16.mxu0 0
        %5226 = vmatpush1.bf16.msra.mxu0 0
        %5227 = vmatprep.subr.bf16.mxu0 0
        %5228 = vmatpush1.bf16.msra.mxu0 0
        %5229 = vmatprep.subr.bf16.mxu0 0
        %5230 = vmatpush1.bf16.msra.mxu0 0
        %5231 = vmatprep.subr.bf16.mxu0 0
        %5232 = vmatpush1.bf16.msra.mxu0 0
        %5233 = vmatprep.mubr.bf16.mxu0 0
        %5234 = vmatmul.mubr.bf16.gmra.mrb[0].mxu0 %v5199
        %v5235 = vpop.f32.mrb[0].mxu0
        %v5236 = vadd.f32 0.0, %v5235
        %v5237 = vpop.f32.mrb[0].mxu0
        %v5238 = vpop.f32.mrb[0].mxu0
        %v5239 = vpop.f32.mrb[0].mxu0
        %5240 = vdwg.mxu0
        %v5241 = vpack.i.b16 %v4455, %v4455
        %v5242 = vlaneseq
        %v5243 = vshrl.u32 %v5242, 7
        %v5244 = vsub.s32 0, %v5243
        %v5245 = vrot.slane %v5241, %v5244
        %v5248 = vunpack.c.l.b16 %v2894
        %v5249 = vunpack.c.l.b16 %v2895
        %v5250 = vpack.c.b16 %v5249, %v5248
        %5251 = vrot.lane.b32.xlu0 %v5250, 112
        %v5252 = vpop.permute.xlu0 %5251
        %v5255 = vsel %vm754, %v5245, 0
        %5257 = vmatprep.subr.bf16.mxu0 0
        %5258 = vmatpush1.bf16.msra.mxu0 %v5252
        %5259 = vmatprep.subr.bf16.mxu0 0
        %5260 = vmatpush1.bf16.msra.mxu0 0
        %5261 = vmatprep.subr.bf16.mxu0 0
        %5262 = vmatpush1.bf16.msra.mxu0 0
        %5263 = vmatprep.subr.bf16.mxu0 0
        %5264 = vmatpush1.bf16.msra.mxu0 0
        %5265 = vmatprep.subr.bf16.mxu0 0
        %5266 = vmatpush1.bf16.msra.mxu0 0
        %5267 = vmatprep.subr.bf16.mxu0 0
        %5268 = vmatpush1.bf16.msra.mxu0 0
        %5269 = vmatprep.subr.bf16.mxu0 0
        %5270 = vmatpush1.bf16.msra.mxu0 0
        %5271 = vmatprep.subr.bf16.mxu0 0
        %5272 = vmatpush1.bf16.msra.mxu0 0
        %5273 = vmatprep.subr.bf16.mxu0 0
        %5274 = vmatpush1.bf16.msra.mxu0 0
        %5275 = vmatprep.subr.bf16.mxu0 0
        %5276 = vmatpush1.bf16.msra.mxu0 0
        %5277 = vmatprep.subr.bf16.mxu0 0
        %5278 = vmatpush1.bf16.msra.mxu0 0
        %5279 = vmatprep.subr.bf16.mxu0 0
        %5280 = vmatpush1.bf16.msra.mxu0 0
        %5281 = vmatprep.subr.bf16.mxu0 0
        %5282 = vmatpush1.bf16.msra.mxu0 0
        %5283 = vmatprep.subr.bf16.mxu0 0
        %5284 = vmatpush1.bf16.msra.mxu0 0
        %5285 = vmatprep.subr.bf16.mxu0 0
        %5286 = vmatpush1.bf16.msra.mxu0 0
        %5287 = vmatprep.subr.bf16.mxu0 0
        %5288 = vmatpush1.bf16.msra.mxu0 0
        %5289 = vmatprep.mubr.bf16.mxu0 0
        %5290 = vmatmul.mubr.bf16.gmra.mrb[0].mxu0 %v5255
        %v5291 = vpop.f32.mrb[0].mxu0
        %v5292 = vadd.f32 0.0, %v5291
        %v5293 = vpop.f32.mrb[0].mxu0
        %v5294 = vpop.f32.mrb[0].mxu0
        %v5295 = vpop.f32.mrb[0].mxu0
        %5296 = vdwg.mxu0
        %v5297 = vpack.i.b16 %v4456, %v4456
        %v5298 = vlaneseq
        %v5299 = vshrl.u32 %v5298, 7
        %v5300 = vsub.s32 0, %v5299
        %v5301 = vrot.slane %v5297, %v5300
        %v5304 = vunpack.c.l.b16 %v2896
        %v5305 = vunpack.c.l.b16 %v2897
        %v5306 = vpack.c.b16 %v5305, %v5304
        %5307 = vrot.lane.b32.xlu0 %v5306, 112
        %v5308 = vpop.permute.xlu0 %5307
        %v5311 = vsel %vm754, %v5301, 0
        %5313 = vmatprep.subr.bf16.mxu0 0
        %5314 = vmatpush1.bf16.msra.mxu0 %v5308
        %5315 = vmatprep.subr.bf16.mxu0 0
        %5316 = vmatpush1.bf16.msra.mxu0 0
        %5317 = vmatprep.subr.bf16.mxu0 0
        %5318 = vmatpush1.bf16.msra.mxu0 0
        %5319 = vmatprep.subr.bf16.mxu0 0
        %5320 = vmatpush1.bf16.msra.mxu0 0
        %5321 = vmatprep.subr.bf16.mxu0 0
        %5322 = vmatpush1.bf16.msra.mxu0 0
        %5323 = vmatprep.subr.bf16.mxu0 0
        %5324 = vmatpush1.bf16.msra.mxu0 0
        %5325 = vmatprep.subr.bf16.mxu0 0
        %5326 = vmatpush1.bf16.msra.mxu0 0
        %5327 = vmatprep.subr.bf16.mxu0 0
        %5328 = vmatpush1.bf16.msra.mxu0 0
        %5329 = vmatprep.subr.bf16.mxu0 0
        %5330 = vmatpush1.bf16.msra.mxu0 0
        %5331 = vmatprep.subr.bf16.mxu0 0
        %5332 = vmatpush1.bf16.msra.mxu0 0
        %5333 = vmatprep.subr.bf16.mxu0 0
        %5334 = vmatpush1.bf16.msra.mxu0 0
        %5335 = vmatprep.subr.bf16.mxu0 0
        %5336 = vmatpush1.bf16.msra.mxu0 0
        %5337 = vmatprep.subr.bf16.mxu0 0
        %5338 = vmatpush1.bf16.msra.mxu0 0
        %5339 = vmatprep.subr.bf16.mxu0 0
        %5340 = vmatpush1.bf16.msra.mxu0 0
        %5341 = vmatprep.subr.bf16.mxu0 0
        %5342 = vmatpush1.bf16.msra.mxu0 0
        %5343 = vmatprep.subr.bf16.mxu0 0
        %5344 = vmatpush1.bf16.msra.mxu0 0
        %5345 = vmatprep.mubr.bf16.mxu0 0
        %5346 = vmatmul.mubr.bf16.gmra.mrb[0].mxu0 %v5311
        %v5347 = vpop.f32.mrb[0].mxu0
        %v5348 = vadd.f32 0.0, %v5347
        %v5349 = vpop.f32.mrb[0].mxu0
        %v5350 = vpop.f32.mrb[0].mxu0
        %v5351 = vpop.f32.mrb[0].mxu0
        %5352 = vdwg.mxu0
        %5355 = vrot.lane.b32.xlu0 %v4385, 16
        %v5356 = vpop.permute.xlu0 %5355
        %5357 = vrot.lane.b32.xlu0 %v4388, 16
        %v5358 = vpop.permute.xlu0 %5357
        %v5361 = vsel %vm754, %v1930, %v5356
        %v5362 = vsel %vm754, %v1933, %v5358
        %v5379 = vrot.slane %v2105, 7
        %v5380 = vsel %vm1444, %v5379, %v2051
        %v5381 = vrot.slane %v2159, 6
        %v5382 = vsel %vm1446, %v5381, %v5380
        %v5383 = vrot.slane %v2213, 5
        %v5384 = vsel %vm1448, %v5383, %v5382
        %v5385 = vrot.slane %v2267, 4
        %v5386 = vsel %vm1450, %v5385, %v5384
        %v5387 = vrot.slane %v2321, 3
        %v5388 = vsel %vm1452, %v5387, %v5386
        %v5389 = vrot.slane %v2375, 2
        %v5390 = vsel %vm1454, %v5389, %v5388
        %v5391 = vrot.slane %v2429, 1
        %v5392 = vsel %vm1456, %v5391, %v5390
        %v5393 = vrot.slane %v2537, 7
        %v5394 = vsel %vm1444, %v5393, %v2483
        %v5395 = vrot.slane %v2591, 6
        %v5396 = vsel %vm1446, %v5395, %v5394
        %v5397 = vrot.slane %v2645, 5
        %v5398 = vsel %vm1448, %v5397, %v5396
        %v5399 = vrot.slane %v2699, 4
        %v5400 = vsel %vm1450, %v5399, %v5398
        %v5401 = vrot.slane %v2753, 3
        %v5402 = vsel %vm1452, %v5401, %v5400
        %v5403 = vrot.slane %v2807, 2
        %v5404 = vsel %vm1454, %v5403, %v5402
        %v5405 = vrot.slane %v2861, 1
        %v5406 = vsel %vm1456, %v5405, %v5404
        %v5425 = vrot.slane %v4564, 7
        %v5426 = vsel %vm1444, %v5425, %v4508
        %v5427 = vrot.slane %v4620, 6
        %v5428 = vsel %vm1446, %v5427, %v5426
        %v5429 = vrot.slane %v4676, 5
        %v5430 = vsel %vm1448, %v5429, %v5428
        %v5431 = vrot.slane %v4732, 4
        %v5432 = vsel %vm1450, %v5431, %v5430
        %v5433 = vrot.slane %v4788, 3
        %v5434 = vsel %vm1452, %v5433, %v5432
        %v5435 = vrot.slane %v4844, 2
        %v5436 = vsel %vm1454, %v5435, %v5434
        %v5437 = vrot.slane %v4900, 1
        %v5438 = vsel %vm1456, %v5437, %v5436
        %v5439 = vrot.slane %v5012, 7
        %v5440 = vsel %vm1444, %v5439, %v4956
        %v5441 = vrot.slane %v5068, 6
        %v5442 = vsel %vm1446, %v5441, %v5440
        %v5443 = vrot.slane %v5124, 5
        %v5444 = vsel %vm1448, %v5443, %v5442
        %v5445 = vrot.slane %v5180, 4
        %v5446 = vsel %vm1450, %v5445, %v5444
        %v5447 = vrot.slane %v5236, 3
        %v5448 = vsel %vm1452, %v5447, %v5446
        %v5449 = vrot.slane %v5292, 2
        %v5450 = vsel %vm1454, %v5449, %v5448
        %v5451 = vrot.slane %v5348, 1
        %v5452 = vsel %vm1456, %v5451, %v5450
        %5453 = vrot.lane.b32.xlu0 %v5438, 16
        %v5454 = vpop.permute.xlu0 %5453
        %5455 = vrot.lane.b32.xlu0 %v5452, 16
        %v5456 = vpop.permute.xlu0 %5455
        %v5459 = vsel %vm754, %v5392, %v5454
        %v5460 = vsel %vm754, %v5406, %v5456
        %v5461 = vsel %vm412, %v5361, 0.0
        %5462 = vadd.xlane.f32.xlu0 %v5461
        %v5463 = vpop.xlane.xlu0 %5462
        %v5464 = vsel %vm412, %v5362, 0.0
        %5465 = vadd.xlane.f32.xlu0 %v5464
        %v5466 = vpop.xlane.xlu0 %5465
        %v5467 = vrcp.pop 32.0
        %v5468 = vmul.f32 %v5463, %v5467
        %v5469 = vmul.f32 %v5466, %v5467
        %v5470 = vsub.f32 %v5361, %v5468
        %v5471 = vsub.f32 %v5362, %v5469
        %v5472 = vmul.f32 %v5470, %v5470
        %v5473 = vmul.f32 %v5471, %v5471
        %v5474 = vsel %vm412, %v5472, 0.0
        %5475 = vadd.xlane.f32.xlu0 %v5474
        %v5476 = vpop.xlane.xlu0 %5475
        %v5477 = vsel %vm412, %v5473, 0.0
        %5478 = vadd.xlane.f32.xlu0 %v5477
        %v5479 = vpop.xlane.xlu0 %5478
        %v5480 = vmul.f32 %v5476, %v5467
        %v5481 = vmul.f32 %v5479, %v5467
        %v5482 = vadd.f32 %v5480, 1e-08
        %v5483 = vadd.f32 %v5481, 1e-08
        %v5484 = vrsqrt.pop %v5482
        %v5485 = vrsqrt.pop %v5483
        %v5486 = vmul.f32 %v5470, %v5484
        %v5487 = vmul.f32 %v5471, %v5485
        %v5488 = vld [vmem:[%s5] sm:$0x1]
        %v5490 = vlaneseq
        %v5491 = vshrl.u32 %v5490, 7
        %v5492 = vsub.s32 0, %v5491
        %v5493 = vrot.slane %v5488, %v5492
        %v5495 = vmul.f32 %v5486, %v5493
        %v5496 = vmul.f32 %v5487, %v5493
        %v5497 = vld [vmem:[%s6] sm:$0x1]
        %v5499 = vlaneseq
        %v5500 = vshrl.u32 %v5499, 7
        %v5501 = vsub.s32 0, %v5500
        %v5502 = vrot.slane %v5497, %v5501
        %v5504 = vadd.f32 %v5495, %v5502
        %v5505 = vadd.f32 %v5496, %v5502
        %5506 = vst.msk [vmem:[%s342] sm:$0xff] %vm412, %v5504
        %5507 = vst.msk [vmem:[%s342 + $0x8] sm:$0xff] %vm412, %v5505
        %5508 = vst.msk [vmem:[%s349] sm:$0xff] %vm412, %v5459
        %5509 = vst.msk [vmem:[%s349 + $0x8] sm:$0xff] %vm412, %v5460
        %s5510 = sand.u32 %s194, 1
        %s5511 = scalar_lea.sflag [#allocation4], %s5510
        %s5512 = sand.u32 %s194, 1
        %s5513 = smul.addr %s5512, 16
        %s5514 = scalar_lea.vmem [#allocation5], %s5513
        %s5515 = sand.u32 %s220, 1
        %s5516 = scalar_lea.sflag [#allocation7], %s5515
        %s5517 = sand.u32 %s220, 1
        %s5518 = smul.addr %s5517, 16
        %s5519 = scalar_lea.vmem [#allocation6], %s5518
        // Predicated region
        $region53: #{tpu_custom_call.1} parent=47 // pred_check
          %p5520 = pneg %p204
        $region54: #{tpu_custom_call.1} parent=47 // pred_check_branch
          %5522 = sbr.rel (%p5520) target = $region56
        $region55: #{tpu_custom_call.1} parent=47 // pred_region
          %s5524 = ssub.s32 256, 256
          %5525 = vsyncadd %s5511, %s5524
          %s5526 = smul.addr %s29, 2
          %s5527 = smul.addr %s5526, 128
          %s5528 = scalar_lea.hbm %s7, %s5527
          %s5529 = sshll.u32 %s5514, 4
          %s5530 = int_to_ptr.vmem [resolvable:$true] %s5529
          %5535 = dma.vmem_to_hbm [thread:$0]  %s5530, 256, %s5528, %s5511, 128, 128, 8
        $region56: #{tpu_custom_call.1} parent=47 // pred_fallthru
          _
        // Predicated region
        $region57: #{tpu_custom_call.1} parent=47 // pred_check
          %p5536 = pneg %p230
        $region58: #{tpu_custom_call.1} parent=47 // pred_check_branch
          %5538 = sbr.rel (%p5536) target = $region60
        $region59: #{tpu_custom_call.1} parent=47 // pred_region
          %s5540 = ssub.s32 256, 256
          %5541 = vsyncadd %s5516, %s5540
          %s5542 = smul.addr %s29, 2
          %s5543 = smul.addr %s5542, 128
          %s5544 = scalar_lea.hbm %s8, %s5543
          %s5545 = sshll.u32 %s5519, 4
          %s5546 = int_to_ptr.vmem [resolvable:$true] %s5545
          %5551 = dma.vmem_to_hbm [thread:$0]  %s5546, 256, %s5544, %s5516, 128, 128, 8
        $region60: #{tpu_custom_call.1} parent=47 // pred_fallthru
          _
      $region48: #{tpu_custom_call.1} parent=5 // pred_fallthru
        _
      %p5552 = scmp.le.s32.totalorder 2, %s24
      // Predicated region
      $region61: #{tpu_custom_call.1} parent=5 // pred_check
        %p5553 = pneg %p5552
      $region62: #{tpu_custom_call.1} parent=5 // pred_check_branch
        %5555 = sbr.rel (%p5553) target = $region64
      $region63: #{tpu_custom_call.1} parent=5 // pred_region
        %s5556 = ssub.s32 %s24, 2
        // Predicated region
        $region65: #{tpu_custom_call.1} parent=63 // pred_check
          %p5557 = pneg %p210
        $region66: #{tpu_custom_call.1} parent=63 // pred_check_branch
          %5559 = sbr.rel (%p5557) target = $region68
        $region67: #{tpu_custom_call.1} parent=63 // pred_region
          %s5560 = sand.u32 %s195, 1
          %s5561 = scalar_lea.sflag [#allocation4], %s5560
          %s5562 = sand.u32 %s195, 1
          %s5563 = smul.addr %s5562, 16
          %s5564 = scalar_lea.vmem [#allocation5], %s5563
          %5565 = dma.done %s5561, 256
        $region68: #{tpu_custom_call.1} parent=63 // pred_fallthru
          _
        // Predicated region
        $region69: #{tpu_custom_call.1} parent=63 // pred_check
          %p5566 = pneg %p236
        $region70: #{tpu_custom_call.1} parent=63 // pred_check_branch
          %5568 = sbr.rel (%p5566) target = $region72
        $region71: #{tpu_custom_call.1} parent=63 // pred_region
          %s5569 = sand.u32 %s221, 1
          %s5570 = scalar_lea.sflag [#allocation7], %s5569
          %s5571 = sand.u32 %s221, 1
          %s5572 = smul.addr %s5571, 16
          %s5573 = scalar_lea.vmem [#allocation6], %s5572
          %5574 = dma.done %s5570, 256
        $region72: #{tpu_custom_call.1} parent=63 // pred_fallthru
          _
      $region64: #{tpu_custom_call.1} parent=5 // pred_fallthru
        _
    $region6: #{tpu_custom_call.1} parent=1 // loop_footer
      %s28 = sadd.s32 1, %s24
    $region7: #{tpu_custom_call.1} parent=1 // loop_footer_branch
      %23 = sbr.rel target = $region3
    $region8: #{tpu_custom_call.1} parent=1 // loop_exit
      _
    %5575 = vsyncpa [#allocation3], 1
    %s5576 = scalar_lea.sflag [#allocation3], 1
    %5577 = vsyncpa %s5576, 1
    %5578 = vsyncpa [#allocation4], 1
    %s5579 = scalar_lea.sflag [#allocation4], 1
    %5580 = vsyncpa %s5579, 1
    %5581 = vsyncpa [#allocation7], 1
    %s5582 = scalar_lea.sflag [#allocation7], 1
    %5583 = vsyncpa %s5582, 1

</llo_original>
